<compile_context>
chip_gen: v7x
topology: tpu7x:2x2x1
jax: 0.10.0
libtpu: 0.0.40
codegen_flags: <defaults>
</compile_context>

<pallas_src>
import functools
import math

import jax
import jax.numpy as jnp
from jax import lax
from jax.experimental import pallas as pl
from jax.experimental.pallas import tpu as pltpu


# ------------------------------ fused kernel -------------------------------

def _fused_mha_kernel(qt_ref, kt_ref, vt_ref, wq_ref, wk_ref, wv_ref,
                      wo_ref, bo_ref, *rest, nb, n_heads, hd, has_mask):
    # qt/kt/vt_ref : (nb, HW, 9C+1) im2col tap matrices (ones column appended)
    # w{q,k,v}_ref : (C, 9C+1)      conv weight with bias folded in as the last
    #                               column; the q weight also carries 1/sqrt(hd)
    # wo_ref       : (n_heads, C, hd) out-Linear weight pre-split per head
    # bo_ref       : (1, C)         out-Linear bias (lane-aligned row)
    # mask_ref     : (nb, C, C)     optional attention mask (==0 -> -1e9)
    # o_ref        : (nb, C, C)     output block
    if has_mask:
        mask_ref, o_ref = rest
    else:
        (o_ref,) = rest

    f32 = jnp.float32
    neg_inf = f32(-1e9)
    trans_b = (((1,), (1,)), ((), ()))   # contract last dims of both operands
    std = (((1,), (0,)), ((), ()))       # standard (M,K)x(K,N)

    wq = wq_ref[...]
    wk = wk_ref[...]
    wv = wv_ref[...]
    bo = bo_ref[...]

    for s in range(nb):                  # static unroll over samples in block
        # Three clean conv dots per sample: (C, 9C+1) x (HW, 9C+1)^T -> (C, HW).
        # Bias (and for q: the attention scale) is folded into the contraction.
        qc = lax.dot_general(wq, qt_ref[s], trans_b, preferred_element_type=f32)
        kc = lax.dot_general(wk, kt_ref[s], trans_b, preferred_element_type=f32)
        vc = lax.dot_general(wv, vt_ref[s], trans_b, preferred_element_type=f32)

        if has_mask:
            mzero = mask_ref[s] == 0     # hoisted out of the head loop

        acc = None
        for h in range(n_heads):         # static unroll over heads
            lo = h * hd
            q_h = qc[:, lo:lo + hd]       # (C, hd) -- scale already folded in
            k_h = kc[:, lo:lo + hd]
            v_h = vc[:, lo:lo + hd]
            s_mat = lax.dot_general(q_h, k_h, trans_b,
                                    preferred_element_type=f32)      # (C, C)
            if has_mask:
                s_mat = jnp.where(mzero, neg_inf, s_mat)             # replace
            s_mat = s_mat - jnp.max(s_mat, axis=-1, keepdims=True)
            p = jnp.exp(s_mat)
            p = p * pl.reciprocal(jnp.sum(p, axis=-1, keepdims=True))  # exact
            o_h = lax.dot_general(p, v_h, std,
                                  preferred_element_type=f32)        # (C, hd)
            # Output Linear applied per head against its Wo column block,
            # accumulated -- no lane-axis concat of head outputs.
            c_h = lax.dot_general(o_h, wo_ref[h], trans_b,
                                  preferred_element_type=f32)        # (C, C)
            acc = c_h if acc is None else acc + c_h
        o_ref[s] = (acc + bo).astype(o_ref.dtype)


def _num_parallel_blocks(batch):
    """2 pipeline blocks on multi-TensorCore chips (v4/v5p/v7x), else 1."""
    kind = ""
    try:
        kind = jax.devices()[0].device_kind.lower()
    except Exception:
        pass
    multi_tc = any(tag in kind for tag in ("v7", "7x", "v4", "v5p"))
    return min(batch, 2) if multi_tc else 1


def _fused_mha(q_taps, k_taps, v_taps, wq_aug, wk_aug, wv_aug, wo_heads, bo_row,
               *, n_heads, mask=None, num_blocks=None):
    B, HW, _KK = q_taps.shape
    C = wq_aug.shape[0]
    dout = wo_heads.shape[1]
    hd = HW // n_heads

    n_blocks = _num_parallel_blocks(B) if num_blocks is None else max(1, min(num_blocks, B))
    nb = -(-B // n_blocks)               # samples per grid step
    B_pad = nb * n_blocks

    def pad_b(x):
        if x.shape[0] == B_pad:
            return x
        return jnp.pad(x, ((0, B_pad - x.shape[0]),) + ((0, 0),) * (x.ndim - 1))

    q_taps, k_taps, v_taps = pad_b(q_taps), pad_b(k_taps), pad_b(v_taps)

    def block3(a):  # batch-blocked, trailing dims full (no (8,128) ambiguity)
        return pl.BlockSpec((nb,) + a.shape[1:], lambda i: (i, 0, 0))

    def full_spec(a):  # grid-invariant operand (fetched once, index constant)
        return pl.BlockSpec(a.shape, lambda i, _nd=a.ndim: (0,) * _nd)

    in_specs = [block3(q_taps), block3(k_taps), block3(v_taps),
                full_spec(wq_aug), full_spec(wk_aug), full_spec(wv_aug),
                full_spec(wo_heads), full_spec(bo_row)]
    args = [q_taps, k_taps, v_taps, wq_aug, wk_aug, wv_aug, wo_heads, bo_row]
    if mask is not None:
        mask = pad_b(mask)
        in_specs.append(block3(mask))
        args.append(mask)

    kernel = functools.partial(_fused_mha_kernel, nb=nb, n_heads=n_heads, hd=hd,
                               has_mask=mask is not None)
    out = pl.pallas_call(
        kernel,
        out_shape=jax.ShapeDtypeStruct((B_pad, C, dout), q_taps.dtype),
        grid=(n_blocks,),
        in_specs=in_specs,
        out_specs=pl.BlockSpec((nb, C, dout), lambda i: (i, 0, 0)),
        compiler_params=pltpu.CompilerParams(dimension_semantics=("parallel",)),
    )(*args)
    return out[:B]


# --------------------------- module forward pass ---------------------------

def init_params(key, dim):
    ks = jax.random.split(key, 8)

    def conv_init(kw, kb):
        fan_in = dim * 9
        bound = 1.0 / math.sqrt(fan_in)
        w = jax.random.uniform(kw, (dim, dim, 3, 3), jnp.float32, -bound, bound)
        bb = jax.random.uniform(kb, (dim,), jnp.float32, -bound, bound)
        return w, bb

    qw, qb = conv_init(ks[0], ks[1])
    kw_, kb_ = conv_init(ks[2], ks[3])
    vw, vb = conv_init(ks[4], ks[5])
    bound = 1.0 / math.sqrt(dim)
    ow = jax.random.uniform(ks[6], (dim, dim), jnp.float32, -bound, bound)
    ob = jax.random.uniform(ks[7], (dim,), jnp.float32, -bound, bound)
    return dict(q_w=qw, q_b=qb, k_w=kw_, k_b=kb_, v_w=vw, v_b=vb,
                out_w=ow, out_b=ob)


def multi_head_attn_forward(params, q, k, v, n_heads, mask=None, num_blocks=None):
    # q: (B, T, C, H, W) with C == dim, H == W == 4 (module hard-codes
    # reshape(-1, dim, 4, 4)); k, v: (B, dim, 4, 4) NCHW.
    dim = params["q_w"].shape[0]                 # static Python int
    H = W = 4
    HW = H * W
    q4 = q.reshape(-1, dim, H, W)
    if q4.shape[0] != k.shape[0] or q4.shape[0] != v.shape[0]:
        raise ValueError("MultiHeadAttn requires T == 1 so q/k/v batches match; "
                         f"got q4 {q4.shape}, k {k.shape}, v {v.shape}")
    if k.shape[1:] != (dim, H, W) or v.shape[1:] != (dim, H, W):
        raise ValueError("k / v must be (B, dim, 4, 4)")
    if HW % n_heads:
        raise ValueError(f"n_heads={n_heads} must divide H*W={HW}")
    if dim != HW:
        # out_fc is Linear(dim, dim) applied to the HW-wide concatenated heads;
        # the PyTorch module only works when dim == 16 as well.
        raise ValueError(f"module requires dim == H*W == {HW}, got dim={dim}")

    hd = HW // n_heads
    scale = 1.0 / math.sqrt(hd)

    def im2col_aug(x):   # (B, C, H, W) NCHW -> (B, HW, 9C+1), ones column last
        b = x.shape[0]
        xp = jnp.pad(jnp.transpose(x, (0, 2, 3, 1)),
                     ((0, 0), (1, 1), (1, 1), (0, 0)))
        cols = [xp[:, ky:ky + H, kx:kx + W, :].reshape(b, HW, dim)
                for ky in range(3) for kx in range(3)]
        cols.append(jnp.ones((b, HW, 1), x.dtype))
        return jnp.concatenate(cols, axis=-1)

    def conv_w_aug(w, bias, gain=1.0):   # (O, I, 3, 3), (O,) -> (O, 9I+1)
        w_mat = jnp.transpose(w, (0, 2, 3, 1)).reshape(w.shape[0], -1)
        return jnp.concatenate([w_mat, bias[:, None]], axis=1) * gain

    # Pre-split the out-Linear weight per head: wo[e, h*hd+p] -> wo_heads[h, e, p]
    wo_heads = jnp.transpose(params["out_w"].reshape(dim, n_heads, hd), (1, 0, 2))

    out = _fused_mha(
        im2col_aug(q4), im2col_aug(k), im2col_aug(v),
        conv_w_aug(params["q_w"], params["q_b"], scale),   # scale folded into q conv
        conv_w_aug(params["k_w"], params["k_b"]),
        conv_w_aug(params["v_w"], params["v_b"]),
        wo_heads, params["out_b"].reshape(1, dim),
        n_heads=n_heads, mask=mask, num_blocks=num_blocks)

    # attn_dropout / fc_dropout are identity in eval mode; vis=False -> None.
    return out, None


# ------------------------------ JAX reference ------------------------------

def reference_forward(params, q, k, v, n_heads, mask=None):
    hp = jax.lax.Precision.HIGHEST
    dim = params["q_w"].shape[0]
    B = q.shape[0]

    def conv(x, w, b):
        y = lax.conv_general_dilated(
            x, w, window_strides=(1, 1), padding="SAME",
            dimension_numbers=("NCHW", "OIHW", "NCHW"), precision=hp)
        return y + b.reshape(1, -1, 1, 1)

    qc = conv(q.reshape(-1, dim, 4, 4), params["q_w"], params["q_b"])
    qh = jnp.transpose(qc.reshape(B, qc.shape[1], n_heads, -1), (0, 2, 1, 3))
    kc = conv(k, params["k_w"], params["k_b"])
    kh = jnp.transpose(kc.reshape(kc.shape[0], kc.shape[1], n_heads, -1), (0, 2, 1, 3))
    vc = conv(v, params["v_w"], params["v_b"])
    vh = jnp.transpose(vc.reshape(vc.shape[0], vc.shape[1], n_heads, -1), (0, 2, 1, 3))

    attn = jnp.einsum("bhld,bhmd->bhlm", qh, kh, precision=hp) / jnp.sqrt(
        jnp.float32(qh.shape[-1]))
    if mask is not None:
        attn = jnp.where(mask[:, None, :, :] == 0, jnp.float32(-1e9), attn)
    attn_w = jax.nn.softmax(attn, axis=-1)
    out = jnp.einsum("bhlm,bhmd->bhld", attn_w, vh, precision=hp)
    out = jnp.transpose(out, (0, 2, 1, 3)).reshape(qh.shape[0], qh.shape[2], -1)
    out = jnp.einsum("bld,ed->ble", out, params["out_w"], precision=hp) + params["out_b"]
    return out


if __name__ == "__main__":
    dim, n_heads = 16, 4
    B, T, Hs, Ws = 2, 1, 4, 4   # q is 5-D (B, T, C, H, W); k, v are 4-D NCHW

    key = jax.random.PRNGKey(0)
    kq, kk, kv, kparam, kmask = jax.random.split(key, 5)
    params = init_params(kparam, dim)
    q = jax.random.normal(kq, (B, T, dim, Hs, Ws), jnp.float32)
    k = jax.random.normal(kk, (B, dim, Hs, Ws), jnp.float32)
    v = jax.random.normal(kv, (B, dim, Hs, Ws), jnp.float32)

    fwd = jax.jit(functools.partial(multi_head_attn_forward, n_heads=n_heads))

    # unmasked path (how EncoderBlock exercises the module)
    out, weights = fwd(params, q, k, v)
    out = jax.block_until_ready(out)
    ref = reference_forward(params, q, k, v, n_heads)
    assert out.shape == ref.shape == (B, dim, dim), (out.shape, ref.shape)
    assert weights is None
    err = float(jnp.max(jnp.abs(out - ref)))
    assert jnp.allclose(out, ref, atol=2e-3, rtol=2e-3), err

    # masked path (mask == 0 -> -1e9 before softmax, as in the PyTorch module)
    mask = (jax.random.uniform(kmask, (B, dim, dim)) > 0.3).astype(jnp.float32)
    out_m, _ = fwd(params, q, k, v, mask=mask)
    out_m = jax.block_until_ready(out_m)
    ref_m = reference_forward(params, q, k, v, n_heads, mask=mask)
    err_m = float(jnp.max(jnp.abs(out_m - ref_m)))
    assert jnp.allclose(out_m, ref_m, atol=2e-3, rtol=2e-3), err_m

    print("KERNEL_OK")
</pallas_src>

<mosaic_0001>
module attributes {stable_mosaic.version = 11 : i64} {
  func.func @_fused_mha_kernel(%arg0: i32, %arg1: memref<2x16x145xf32, #tpu.memory_space<vmem>>, %arg2: memref<2x16x145xf32, #tpu.memory_space<vmem>>, %arg3: memref<2x16x145xf32, #tpu.memory_space<vmem>>, %arg4: memref<16x145xf32, #tpu.memory_space<vmem>>, %arg5: memref<16x145xf32, #tpu.memory_space<vmem>>, %arg6: memref<16x145xf32, #tpu.memory_space<vmem>>, %arg7: memref<4x16x4xf32, #tpu.memory_space<vmem>>, %arg8: memref<1x16xf32, #tpu.memory_space<vmem>>, %arg9: memref<2x16x16xf32, #tpu.memory_space<vmem>>) attributes {dimension_semantics = [#tpu.dimension_semantics<parallel>], iteration_bounds = array<i64: 1>, scalar_prefetch = 0 : i64, scratch_operands = 0 : i64, tpu.core_type = #tpu.core_type<tc>, window_params = [{transform_indices = @transform_0, window_bounds = array<i64: 2, 16, 145>}, {transform_indices = @transform_1, window_bounds = array<i64: 2, 16, 145>}, {transform_indices = @transform_2, window_bounds = array<i64: 2, 16, 145>}, {pipeline_mode = #tpu.pipeline_mode<synchronous>, transform_indices = @transform_3, window_bounds = array<i64: 16, 145>}, {pipeline_mode = #tpu.pipeline_mode<synchronous>, transform_indices = @transform_4, window_bounds = array<i64: 16, 145>}, {pipeline_mode = #tpu.pipeline_mode<synchronous>, transform_indices = @transform_5, window_bounds = array<i64: 16, 145>}, {pipeline_mode = #tpu.pipeline_mode<synchronous>, transform_indices = @transform_6, window_bounds = array<i64: 4, 16, 4>}, {pipeline_mode = #tpu.pipeline_mode<synchronous>, transform_indices = @transform_7, window_bounds = array<i64: 1, 16>}, {transform_indices = @transform_8, window_bounds = array<i64: 2, 16, 16>}]} {
    %c0 = arith.constant 0 : index
    %c0_0 = arith.constant 0 : index
    %0 = vector.load %arg4[%c0, %c0_0] : memref<16x145xf32, #tpu.memory_space<vmem>>, vector<16x145xf32>
    %c0_1 = arith.constant 0 : index
    %c0_2 = arith.constant 0 : index
    %1 = vector.load %arg5[%c0_1, %c0_2] : memref<16x145xf32, #tpu.memory_space<vmem>>, vector<16x145xf32>
    %c0_3 = arith.constant 0 : index
    %c0_4 = arith.constant 0 : index
    %2 = vector.load %arg6[%c0_3, %c0_4] : memref<16x145xf32, #tpu.memory_space<vmem>>, vector<16x145xf32>
    %c0_5 = arith.constant 0 : index
    %c0_6 = arith.constant 0 : index
    %3 = vector.load %arg8[%c0_5, %c0_6] : memref<1x16xf32, #tpu.memory_space<vmem>>, vector<1x16xf32>
    %c0_7 = arith.constant 0 : index
    %c0_8 = arith.constant 0 : index
    %c0_9 = arith.constant 0 : index
    %4 = vector.load %arg1[%c0_7, %c0_8, %c0_9] : memref<2x16x145xf32, #tpu.memory_space<vmem>>, vector<1x16x145xf32>
    %5 = vector.shape_cast %4 : vector<1x16x145xf32> to vector<16x145xf32>
    %cst = arith.constant dense<0.000000e+00> : vector<16x16xf32>
    %6 = tpu.matmul %0, %5, %cst {dimension_numbers = #tpu.dot_dimension_numbers<[1], [1], [0], [0], [0, 0, 1, 0], [], []>} : vector<16x145xf32>, vector<16x145xf32>, vector<16x16xf32> -> vector<16x16xf32>
    %c0_10 = arith.constant 0 : index
    %c0_11 = arith.constant 0 : index
    %c0_12 = arith.constant 0 : index
    %7 = vector.load %arg2[%c0_10, %c0_11, %c0_12] : memref<2x16x145xf32, #tpu.memory_space<vmem>>, vector<1x16x145xf32>
    %8 = vector.shape_cast %7 : vector<1x16x145xf32> to vector<16x145xf32>
    %cst_13 = arith.constant dense<0.000000e+00> : vector<16x16xf32>
    %9 = tpu.matmul %1, %8, %cst_13 {dimension_numbers = #tpu.dot_dimension_numbers<[1], [1], [0], [0], [0, 0, 1, 0], [], []>} : vector<16x145xf32>, vector<16x145xf32>, vector<16x16xf32> -> vector<16x16xf32>
    %c0_14 = arith.constant 0 : index
    %c0_15 = arith.constant 0 : index
    %c0_16 = arith.constant 0 : index
    %10 = vector.load %arg3[%c0_14, %c0_15, %c0_16] : memref<2x16x145xf32, #tpu.memory_space<vmem>>, vector<1x16x145xf32>
    %11 = vector.shape_cast %10 : vector<1x16x145xf32> to vector<16x145xf32>
    %cst_17 = arith.constant dense<0.000000e+00> : vector<16x16xf32>
    %12 = tpu.matmul %2, %11, %cst_17 {dimension_numbers = #tpu.dot_dimension_numbers<[1], [1], [0], [0], [0, 0, 1, 0], [], []>} : vector<16x145xf32>, vector<16x145xf32>, vector<16x16xf32> -> vector<16x16xf32>
    %13 = vector.extract_strided_slice %6 {offsets = [0, 0], sizes = [16, 4], strides = [1, 1]} : vector<16x16xf32> to vector<16x4xf32>
    %14 = vector.extract_strided_slice %9 {offsets = [0, 0], sizes = [16, 4], strides = [1, 1]} : vector<16x16xf32> to vector<16x4xf32>
    %15 = vector.extract_strided_slice %12 {offsets = [0, 0], sizes = [16, 4], strides = [1, 1]} : vector<16x16xf32> to vector<16x4xf32>
    %cst_18 = arith.constant dense<0.000000e+00> : vector<16x16xf32>
    %16 = tpu.matmul %13, %14, %cst_18 {dimension_numbers = #tpu.dot_dimension_numbers<[1], [1], [0], [0], [0, 0, 1, 0], [], []>} : vector<16x4xf32>, vector<16x4xf32>, vector<16x16xf32> -> vector<16x16xf32>
    %cst_19 = arith.constant dense<0xFF800000> : vector<16xf32>
    %17 = vector.multi_reduction <maximumf>, %16, %cst_19 [1] : vector<16x16xf32> to vector<16xf32>
    %18 = vector.shape_cast %17 : vector<16xf32> to vector<16x1xf32>
    %19 = vector.broadcast %18 : vector<16x1xf32> to vector<16x16xf32>
    %20 = arith.subf %16, %19 : vector<16x16xf32>
    %21 = math.exp %20 : vector<16x16xf32>
    %cst_20 = arith.constant dense<0.000000e+00> : vector<16xf32>
    %22 = vector.multi_reduction <add>, %21, %cst_20 [1] : vector<16x16xf32> to vector<16xf32>
    %23 = vector.shape_cast %22 : vector<16xf32> to vector<16x1xf32>
    %24 = tpu.reciprocal %23 : vector<16x1xf32> -> vector<16x1xf32>
    %25 = vector.broadcast %24 : vector<16x1xf32> to vector<16x16xf32>
    %26 = arith.mulf %21, %25 : vector<16x16xf32>
    %cst_21 = arith.constant dense<0.000000e+00> : vector<16x4xf32>
    %27 = tpu.matmul %26, %15, %cst_21 {dimension_numbers = #tpu.dot_dimension_numbers<[1], [0], [0], [1], [0, 0, 1, 1], [], []>} : vector<16x16xf32>, vector<16x4xf32>, vector<16x4xf32> -> vector<16x4xf32>
    %c0_22 = arith.constant 0 : index
    %c0_23 = arith.constant 0 : index
    %c0_24 = arith.constant 0 : index
    %28 = vector.load %arg7[%c0_22, %c0_23, %c0_24] : memref<4x16x4xf32, #tpu.memory_space<vmem>>, vector<1x16x4xf32>
    %29 = vector.shape_cast %28 : vector<1x16x4xf32> to vector<16x4xf32>
    %cst_25 = arith.constant dense<0.000000e+00> : vector<16x16xf32>
    %30 = tpu.matmul %27, %29, %cst_25 {dimension_numbers = #tpu.dot_dimension_numbers<[1], [1], [0], [0], [0, 0, 1, 0], [], []>} : vector<16x4xf32>, vector<16x4xf32>, vector<16x16xf32> -> vector<16x16xf32>
    %31 = vector.extract_strided_slice %6 {offsets = [0, 4], sizes = [16, 4], strides = [1, 1]} : vector<16x16xf32> to vector<16x4xf32>
    %32 = vector.extract_strided_slice %9 {offsets = [0, 4], sizes = [16, 4], strides = [1, 1]} : vector<16x16xf32> to vector<16x4xf32>
    %33 = vector.extract_strided_slice %12 {offsets = [0, 4], sizes = [16, 4], strides = [1, 1]} : vector<16x16xf32> to vector<16x4xf32>
    %cst_26 = arith.constant dense<0.000000e+00> : vector<16x16xf32>
    %34 = tpu.matmul %31, %32, %cst_26 {dimension_numbers = #tpu.dot_dimension_numbers<[1], [1], [0], [0], [0, 0, 1, 0], [], []>} : vector<16x4xf32>, vector<16x4xf32>, vector<16x16xf32> -> vector<16x16xf32>
    %cst_27 = arith.constant dense<0xFF800000> : vector<16xf32>
    %35 = vector.multi_reduction <maximumf>, %34, %cst_27 [1] : vector<16x16xf32> to vector<16xf32>
    %36 = vector.shape_cast %35 : vector<16xf32> to vector<16x1xf32>
    %37 = vector.broadcast %36 : vector<16x1xf32> to vector<16x16xf32>
    %38 = arith.subf %34, %37 : vector<16x16xf32>
    %39 = math.exp %38 : vector<16x16xf32>
    %cst_28 = arith.constant dense<0.000000e+00> : vector<16xf32>
    %40 = vector.multi_reduction <add>, %39, %cst_28 [1] : vector<16x16xf32> to vector<16xf32>
    %41 = vector.shape_cast %40 : vector<16xf32> to vector<16x1xf32>
    %42 = tpu.reciprocal %41 : vector<16x1xf32> -> vector<16x1xf32>
    %43 = vector.broadcast %42 : vector<16x1xf32> to vector<16x16xf32>
    %44 = arith.mulf %39, %43 : vector<16x16xf32>
    %cst_29 = arith.constant dense<0.000000e+00> : vector<16x4xf32>
    %45 = tpu.matmul %44, %33, %cst_29 {dimension_numbers = #tpu.dot_dimension_numbers<[1], [0], [0], [1], [0, 0, 1, 1], [], []>} : vector<16x16xf32>, vector<16x4xf32>, vector<16x4xf32> -> vector<16x4xf32>
    %c1 = arith.constant 1 : index
    %c0_30 = arith.constant 0 : index
    %c0_31 = arith.constant 0 : index
    %46 = vector.load %arg7[%c1, %c0_30, %c0_31] : memref<4x16x4xf32, #tpu.memory_space<vmem>>, vector<1x16x4xf32>
    %47 = vector.shape_cast %46 : vector<1x16x4xf32> to vector<16x4xf32>
    %cst_32 = arith.constant dense<0.000000e+00> : vector<16x16xf32>
    %48 = tpu.matmul %45, %47, %cst_32 {dimension_numbers = #tpu.dot_dimension_numbers<[1], [1], [0], [0], [0, 0, 1, 0], [], []>} : vector<16x4xf32>, vector<16x4xf32>, vector<16x16xf32> -> vector<16x16xf32>
    %49 = arith.addf %30, %48 : vector<16x16xf32>
    %50 = vector.extract_strided_slice %6 {offsets = [0, 8], sizes = [16, 4], strides = [1, 1]} : vector<16x16xf32> to vector<16x4xf32>
    %51 = vector.extract_strided_slice %9 {offsets = [0, 8], sizes = [16, 4], strides = [1, 1]} : vector<16x16xf32> to vector<16x4xf32>
    %52 = vector.extract_strided_slice %12 {offsets = [0, 8], sizes = [16, 4], strides = [1, 1]} : vector<16x16xf32> to vector<16x4xf32>
    %cst_33 = arith.constant dense<0.000000e+00> : vector<16x16xf32>
    %53 = tpu.matmul %50, %51, %cst_33 {dimension_numbers = #tpu.dot_dimension_numbers<[1], [1], [0], [0], [0, 0, 1, 0], [], []>} : vector<16x4xf32>, vector<16x4xf32>, vector<16x16xf32> -> vector<16x16xf32>
    %cst_34 = arith.constant dense<0xFF800000> : vector<16xf32>
    %54 = vector.multi_reduction <maximumf>, %53, %cst_34 [1] : vector<16x16xf32> to vector<16xf32>
    %55 = vector.shape_cast %54 : vector<16xf32> to vector<16x1xf32>
    %56 = vector.broadcast %55 : vector<16x1xf32> to vector<16x16xf32>
    %57 = arith.subf %53, %56 : vector<16x16xf32>
    %58 = math.exp %57 : vector<16x16xf32>
    %cst_35 = arith.constant dense<0.000000e+00> : vector<16xf32>
    %59 = vector.multi_reduction <add>, %58, %cst_35 [1] : vector<16x16xf32> to vector<16xf32>
    %60 = vector.shape_cast %59 : vector<16xf32> to vector<16x1xf32>
    %61 = tpu.reciprocal %60 : vector<16x1xf32> -> vector<16x1xf32>
    %62 = vector.broadcast %61 : vector<16x1xf32> to vector<16x16xf32>
    %63 = arith.mulf %58, %62 : vector<16x16xf32>
    %cst_36 = arith.constant dense<0.000000e+00> : vector<16x4xf32>
    %64 = tpu.matmul %63, %52, %cst_36 {dimension_numbers = #tpu.dot_dimension_numbers<[1], [0], [0], [1], [0, 0, 1, 1], [], []>} : vector<16x16xf32>, vector<16x4xf32>, vector<16x4xf32> -> vector<16x4xf32>
    %c2 = arith.constant 2 : index
    %c0_37 = arith.constant 0 : index
    %c0_38 = arith.constant 0 : index
    %65 = vector.load %arg7[%c2, %c0_37, %c0_38] : memref<4x16x4xf32, #tpu.memory_space<vmem>>, vector<1x16x4xf32>
    %66 = vector.shape_cast %65 : vector<1x16x4xf32> to vector<16x4xf32>
    %cst_39 = arith.constant dense<0.000000e+00> : vector<16x16xf32>
    %67 = tpu.matmul %64, %66, %cst_39 {dimension_numbers = #tpu.dot_dimension_numbers<[1], [1], [0], [0], [0, 0, 1, 0], [], []>} : vector<16x4xf32>, vector<16x4xf32>, vector<16x16xf32> -> vector<16x16xf32>
    %68 = arith.addf %49, %67 : vector<16x16xf32>
    %69 = vector.extract_strided_slice %6 {offsets = [0, 12], sizes = [16, 4], strides = [1, 1]} : vector<16x16xf32> to vector<16x4xf32>
    %70 = vector.extract_strided_slice %9 {offsets = [0, 12], sizes = [16, 4], strides = [1, 1]} : vector<16x16xf32> to vector<16x4xf32>
    %71 = vector.extract_strided_slice %12 {offsets = [0, 12], sizes = [16, 4], strides = [1, 1]} : vector<16x16xf32> to vector<16x4xf32>
    %cst_40 = arith.constant dense<0.000000e+00> : vector<16x16xf32>
    %72 = tpu.matmul %69, %70, %cst_40 {dimension_numbers = #tpu.dot_dimension_numbers<[1], [1], [0], [0], [0, 0, 1, 0], [], []>} : vector<16x4xf32>, vector<16x4xf32>, vector<16x16xf32> -> vector<16x16xf32>
    %cst_41 = arith.constant dense<0xFF800000> : vector<16xf32>
    %73 = vector.multi_reduction <maximumf>, %72, %cst_41 [1] : vector<16x16xf32> to vector<16xf32>
    %74 = vector.shape_cast %73 : vector<16xf32> to vector<16x1xf32>
    %75 = vector.broadcast %74 : vector<16x1xf32> to vector<16x16xf32>
    %76 = arith.subf %72, %75 : vector<16x16xf32>
    %77 = math.exp %76 : vector<16x16xf32>
    %cst_42 = arith.constant dense<0.000000e+00> : vector<16xf32>
    %78 = vector.multi_reduction <add>, %77, %cst_42 [1] : vector<16x16xf32> to vector<16xf32>
    %79 = vector.shape_cast %78 : vector<16xf32> to vector<16x1xf32>
    %80 = tpu.reciprocal %79 : vector<16x1xf32> -> vector<16x1xf32>
    %81 = vector.broadcast %80 : vector<16x1xf32> to vector<16x16xf32>
    %82 = arith.mulf %77, %81 : vector<16x16xf32>
    %cst_43 = arith.constant dense<0.000000e+00> : vector<16x4xf32>
    %83 = tpu.matmul %82, %71, %cst_43 {dimension_numbers = #tpu.dot_dimension_numbers<[1], [0], [0], [1], [0, 0, 1, 1], [], []>} : vector<16x16xf32>, vector<16x4xf32>, vector<16x4xf32> -> vector<16x4xf32>
    %c3 = arith.constant 3 : index
    %c0_44 = arith.constant 0 : index
    %c0_45 = arith.constant 0 : index
    %84 = vector.load %arg7[%c3, %c0_44, %c0_45] : memref<4x16x4xf32, #tpu.memory_space<vmem>>, vector<1x16x4xf32>
    %85 = vector.shape_cast %84 : vector<1x16x4xf32> to vector<16x4xf32>
    %cst_46 = arith.constant dense<0.000000e+00> : vector<16x16xf32>
    %86 = tpu.matmul %83, %85, %cst_46 {dimension_numbers = #tpu.dot_dimension_numbers<[1], [1], [0], [0], [0, 0, 1, 0], [], []>} : vector<16x4xf32>, vector<16x4xf32>, vector<16x16xf32> -> vector<16x16xf32>
    %87 = arith.addf %68, %86 : vector<16x16xf32>
    %88 = vector.broadcast %3 : vector<1x16xf32> to vector<16x16xf32>
    %89 = arith.addf %87, %88 : vector<16x16xf32>
    %c0_47 = arith.constant 0 : index
    %c0_48 = arith.constant 0 : index
    %c0_49 = arith.constant 0 : index
    %90 = vector.load %arg9[%c0_47, %c0_48, %c0_49] : memref<2x16x16xf32, #tpu.memory_space<vmem>>, vector<1x16x16xf32>
    %91 = vector.shape_cast %90 : vector<1x16x16xf32> to vector<16x16xf32>
    %92 = vector.shape_cast %89 : vector<16x16xf32> to vector<1x16x16xf32>
    tpu.vector_store %arg9[%c0_47, %c0_48, %c0_49], %92 {strides = array<i32>} : memref<2x16x16xf32, #tpu.memory_space<vmem>>, vector<1x16x16xf32>,
    %c1_50 = arith.constant 1 : index
    %c0_51 = arith.constant 0 : index
    %c0_52 = arith.constant 0 : index
    %93 = vector.load %arg1[%c1_50, %c0_51, %c0_52] : memref<2x16x145xf32, #tpu.memory_space<vmem>>, vector<1x16x145xf32>
    %94 = vector.shape_cast %93 : vector<1x16x145xf32> to vector<16x145xf32>
    %cst_53 = arith.constant dense<0.000000e+00> : vector<16x16xf32>
    %95 = tpu.matmul %0, %94, %cst_53 {dimension_numbers = #tpu.dot_dimension_numbers<[1], [1], [0], [0], [0, 0, 1, 0], [], []>} : vector<16x145xf32>, vector<16x145xf32>, vector<16x16xf32> -> vector<16x16xf32>
    %c1_54 = arith.constant 1 : index
    %c0_55 = arith.constant 0 : index
    %c0_56 = arith.constant 0 : index
    %96 = vector.load %arg2[%c1_54, %c0_55, %c0_56] : memref<2x16x145xf32, #tpu.memory_space<vmem>>, vector<1x16x145xf32>
    %97 = vector.shape_cast %96 : vector<1x16x145xf32> to vector<16x145xf32>
    %cst_57 = arith.constant dense<0.000000e+00> : vector<16x16xf32>
    %98 = tpu.matmul %1, %97, %cst_57 {dimension_numbers = #tpu.dot_dimension_numbers<[1], [1], [0], [0], [0, 0, 1, 0], [], []>} : vector<16x145xf32>, vector<16x145xf32>, vector<16x16xf32> -> vector<16x16xf32>
    %c1_58 = arith.constant 1 : index
    %c0_59 = arith.constant 0 : index
    %c0_60 = arith.constant 0 : index
    %99 = vector.load %arg3[%c1_58, %c0_59, %c0_60] : memref<2x16x145xf32, #tpu.memory_space<vmem>>, vector<1x16x145xf32>
    %100 = vector.shape_cast %99 : vector<1x16x145xf32> to vector<16x145xf32>
    %cst_61 = arith.constant dense<0.000000e+00> : vector<16x16xf32>
    %101 = tpu.matmul %2, %100, %cst_61 {dimension_numbers = #tpu.dot_dimension_numbers<[1], [1], [0], [0], [0, 0, 1, 0], [], []>} : vector<16x145xf32>, vector<16x145xf32>, vector<16x16xf32> -> vector<16x16xf32>
    %102 = vector.extract_strided_slice %95 {offsets = [0, 0], sizes = [16, 4], strides = [1, 1]} : vector<16x16xf32> to vector<16x4xf32>
    %103 = vector.extract_strided_slice %98 {offsets = [0, 0], sizes = [16, 4], strides = [1, 1]} : vector<16x16xf32> to vector<16x4xf32>
    %104 = vector.extract_strided_slice %101 {offsets = [0, 0], sizes = [16, 4], strides = [1, 1]} : vector<16x16xf32> to vector<16x4xf32>
    %cst_62 = arith.constant dense<0.000000e+00> : vector<16x16xf32>
    %105 = tpu.matmul %102, %103, %cst_62 {dimension_numbers = #tpu.dot_dimension_numbers<[1], [1], [0], [0], [0, 0, 1, 0], [], []>} : vector<16x4xf32>, vector<16x4xf32>, vector<16x16xf32> -> vector<16x16xf32>
    %cst_63 = arith.constant dense<0xFF800000> : vector<16xf32>
    %106 = vector.multi_reduction <maximumf>, %105, %cst_63 [1] : vector<16x16xf32> to vector<16xf32>
    %107 = vector.shape_cast %106 : vector<16xf32> to vector<16x1xf32>
    %108 = vector.broadcast %107 : vector<16x1xf32> to vector<16x16xf32>
    %109 = arith.subf %105, %108 : vector<16x16xf32>
    %110 = math.exp %109 : vector<16x16xf32>
    %cst_64 = arith.constant dense<0.000000e+00> : vector<16xf32>
    %111 = vector.multi_reduction <add>, %110, %cst_64 [1] : vector<16x16xf32> to vector<16xf32>
    %112 = vector.shape_cast %111 : vector<16xf32> to vector<16x1xf32>
    %113 = tpu.reciprocal %112 : vector<16x1xf32> -> vector<16x1xf32>
    %114 = vector.broadcast %113 : vector<16x1xf32> to vector<16x16xf32>
    %115 = arith.mulf %110, %114 : vector<16x16xf32>
    %cst_65 = arith.constant dense<0.000000e+00> : vector<16x4xf32>
    %116 = tpu.matmul %115, %104, %cst_65 {dimension_numbers = #tpu.dot_dimension_numbers<[1], [0], [0], [1], [0, 0, 1, 1], [], []>} : vector<16x16xf32>, vector<16x4xf32>, vector<16x4xf32> -> vector<16x4xf32>
    %c0_66 = arith.constant 0 : index
    %c0_67 = arith.constant 0 : index
    %c0_68 = arith.constant 0 : index
    %117 = vector.load %arg7[%c0_66, %c0_67, %c0_68] : memref<4x16x4xf32, #tpu.memory_space<vmem>>, vector<1x16x4xf32>
    %118 = vector.shape_cast %117 : vector<1x16x4xf32> to vector<16x4xf32>
    %cst_69 = arith.constant dense<0.000000e+00> : vector<16x16xf32>
    %119 = tpu.matmul %116, %118, %cst_69 {dimension_numbers = #tpu.dot_dimension_numbers<[1], [1], [0], [0], [0, 0, 1, 0], [], []>} : vector<16x4xf32>, vector<16x4xf32>, vector<16x16xf32> -> vector<16x16xf32>
    %120 = vector.extract_strided_slice %95 {offsets = [0, 4], sizes = [16, 4], strides = [1, 1]} : vector<16x16xf32> to vector<16x4xf32>
    %121 = vector.extract_strided_slice %98 {offsets = [0, 4], sizes = [16, 4], strides = [1, 1]} : vector<16x16xf32> to vector<16x4xf32>
    %122 = vector.extract_strided_slice %101 {offsets = [0, 4], sizes = [16, 4], strides = [1, 1]} : vector<16x16xf32> to vector<16x4xf32>
    %cst_70 = arith.constant dense<0.000000e+00> : vector<16x16xf32>
    %123 = tpu.matmul %120, %121, %cst_70 {dimension_numbers = #tpu.dot_dimension_numbers<[1], [1], [0], [0], [0, 0, 1, 0], [], []>} : vector<16x4xf32>, vector<16x4xf32>, vector<16x16xf32> -> vector<16x16xf32>
    %cst_71 = arith.constant dense<0xFF800000> : vector<16xf32>
    %124 = vector.multi_reduction <maximumf>, %123, %cst_71 [1] : vector<16x16xf32> to vector<16xf32>
    %125 = vector.shape_cast %124 : vector<16xf32> to vector<16x1xf32>
    %126 = vector.broadcast %125 : vector<16x1xf32> to vector<16x16xf32>
    %127 = arith.subf %123, %126 : vector<16x16xf32>
    %128 = math.exp %127 : vector<16x16xf32>
    %cst_72 = arith.constant dense<0.000000e+00> : vector<16xf32>
    %129 = vector.multi_reduction <add>, %128, %cst_72 [1] : vector<16x16xf32> to vector<16xf32>
    %130 = vector.shape_cast %129 : vector<16xf32> to vector<16x1xf32>
    %131 = tpu.reciprocal %130 : vector<16x1xf32> -> vector<16x1xf32>
    %132 = vector.broadcast %131 : vector<16x1xf32> to vector<16x16xf32>
    %133 = arith.mulf %128, %132 : vector<16x16xf32>
    %cst_73 = arith.constant dense<0.000000e+00> : vector<16x4xf32>
    %134 = tpu.matmul %133, %122, %cst_73 {dimension_numbers = #tpu.dot_dimension_numbers<[1], [0], [0], [1], [0, 0, 1, 1], [], []>} : vector<16x16xf32>, vector<16x4xf32>, vector<16x4xf32> -> vector<16x4xf32>
    %c1_74 = arith.constant 1 : index
    %c0_75 = arith.constant 0 : index
    %c0_76 = arith.constant 0 : index
    %135 = vector.load %arg7[%c1_74, %c0_75, %c0_76] : memref<4x16x4xf32, #tpu.memory_space<vmem>>, vector<1x16x4xf32>
    %136 = vector.shape_cast %135 : vector<1x16x4xf32> to vector<16x4xf32>
    %cst_77 = arith.constant dense<0.000000e+00> : vector<16x16xf32>
    %137 = tpu.matmul %134, %136, %cst_77 {dimension_numbers = #tpu.dot_dimension_numbers<[1], [1], [0], [0], [0, 0, 1, 0], [], []>} : vector<16x4xf32>, vector<16x4xf32>, vector<16x16xf32> -> vector<16x16xf32>
    %138 = arith.addf %119, %137 : vector<16x16xf32>
    %139 = vector.extract_strided_slice %95 {offsets = [0, 8], sizes = [16, 4], strides = [1, 1]} : vector<16x16xf32> to vector<16x4xf32>
    %140 = vector.extract_strided_slice %98 {offsets = [0, 8], sizes = [16, 4], strides = [1, 1]} : vector<16x16xf32> to vector<16x4xf32>
    %141 = vector.extract_strided_slice %101 {offsets = [0, 8], sizes = [16, 4], strides = [1, 1]} : vector<16x16xf32> to vector<16x4xf32>
    %cst_78 = arith.constant dense<0.000000e+00> : vector<16x16xf32>
    %142 = tpu.matmul %139, %140, %cst_78 {dimension_numbers = #tpu.dot_dimension_numbers<[1], [1], [0], [0], [0, 0, 1, 0], [], []>} : vector<16x4xf32>, vector<16x4xf32>, vector<16x16xf32> -> vector<16x16xf32>
    %cst_79 = arith.constant dense<0xFF800000> : vector<16xf32>
    %143 = vector.multi_reduction <maximumf>, %142, %cst_79 [1] : vector<16x16xf32> to vector<16xf32>
    %144 = vector.shape_cast %143 : vector<16xf32> to vector<16x1xf32>
    %145 = vector.broadcast %144 : vector<16x1xf32> to vector<16x16xf32>
    %146 = arith.subf %142, %145 : vector<16x16xf32>
    %147 = math.exp %146 : vector<16x16xf32>
    %cst_80 = arith.constant dense<0.000000e+00> : vector<16xf32>
    %148 = vector.multi_reduction <add>, %147, %cst_80 [1] : vector<16x16xf32> to vector<16xf32>
    %149 = vector.shape_cast %148 : vector<16xf32> to vector<16x1xf32>
    %150 = tpu.reciprocal %149 : vector<16x1xf32> -> vector<16x1xf32>
    %151 = vector.broadcast %150 : vector<16x1xf32> to vector<16x16xf32>
    %152 = arith.mulf %147, %151 : vector<16x16xf32>
    %cst_81 = arith.constant dense<0.000000e+00> : vector<16x4xf32>
    %153 = tpu.matmul %152, %141, %cst_81 {dimension_numbers = #tpu.dot_dimension_numbers<[1], [0], [0], [1], [0, 0, 1, 1], [], []>} : vector<16x16xf32>, vector<16x4xf32>, vector<16x4xf32> -> vector<16x4xf32>
    %c2_82 = arith.constant 2 : index
    %c0_83 = arith.constant 0 : index
    %c0_84 = arith.constant 0 : index
    %154 = vector.load %arg7[%c2_82, %c0_83, %c0_84] : memref<4x16x4xf32, #tpu.memory_space<vmem>>, vector<1x16x4xf32>
    %155 = vector.shape_cast %154 : vector<1x16x4xf32> to vector<16x4xf32>
    %cst_85 = arith.constant dense<0.000000e+00> : vector<16x16xf32>
    %156 = tpu.matmul %153, %155, %cst_85 {dimension_numbers = #tpu.dot_dimension_numbers<[1], [1], [0], [0], [0, 0, 1, 0], [], []>} : vector<16x4xf32>, vector<16x4xf32>, vector<16x16xf32> -> vector<16x16xf32>
    %157 = arith.addf %138, %156 : vector<16x16xf32>
    %158 = vector.extract_strided_slice %95 {offsets = [0, 12], sizes = [16, 4], strides = [1, 1]} : vector<16x16xf32> to vector<16x4xf32>
    %159 = vector.extract_strided_slice %98 {offsets = [0, 12], sizes = [16, 4], strides = [1, 1]} : vector<16x16xf32> to vector<16x4xf32>
    %160 = vector.extract_strided_slice %101 {offsets = [0, 12], sizes = [16, 4], strides = [1, 1]} : vector<16x16xf32> to vector<16x4xf32>
    %cst_86 = arith.constant dense<0.000000e+00> : vector<16x16xf32>
    %161 = tpu.matmul %158, %159, %cst_86 {dimension_numbers = #tpu.dot_dimension_numbers<[1], [1], [0], [0], [0, 0, 1, 0], [], []>} : vector<16x4xf32>, vector<16x4xf32>, vector<16x16xf32> -> vector<16x16xf32>
    %cst_87 = arith.constant dense<0xFF800000> : vector<16xf32>
    %162 = vector.multi_reduction <maximumf>, %161, %cst_87 [1] : vector<16x16xf32> to vector<16xf32>
    %163 = vector.shape_cast %162 : vector<16xf32> to vector<16x1xf32>
    %164 = vector.broadcast %163 : vector<16x1xf32> to vector<16x16xf32>
    %165 = arith.subf %161, %164 : vector<16x16xf32>
    %166 = math.exp %165 : vector<16x16xf32>
    %cst_88 = arith.constant dense<0.000000e+00> : vector<16xf32>
    %167 = vector.multi_reduction <add>, %166, %cst_88 [1] : vector<16x16xf32> to vector<16xf32>
    %168 = vector.shape_cast %167 : vector<16xf32> to vector<16x1xf32>
    %169 = tpu.reciprocal %168 : vector<16x1xf32> -> vector<16x1xf32>
    %170 = vector.broadcast %169 : vector<16x1xf32> to vector<16x16xf32>
    %171 = arith.mulf %166, %170 : vector<16x16xf32>
    %cst_89 = arith.constant dense<0.000000e+00> : vector<16x4xf32>
    %172 = tpu.matmul %171, %160, %cst_89 {dimension_numbers = #tpu.dot_dimension_numbers<[1], [0], [0], [1], [0, 0, 1, 1], [], []>} : vector<16x16xf32>, vector<16x4xf32>, vector<16x4xf32> -> vector<16x4xf32>
    %c3_90 = arith.constant 3 : index
    %c0_91 = arith.constant 0 : index
    %c0_92 = arith.constant 0 : index
    %173 = vector.load %arg7[%c3_90, %c0_91, %c0_92] : memref<4x16x4xf32, #tpu.memory_space<vmem>>, vector<1x16x4xf32>
    %174 = vector.shape_cast %173 : vector<1x16x4xf32> to vector<16x4xf32>
    %cst_93 = arith.constant dense<0.000000e+00> : vector<16x16xf32>
    %175 = tpu.matmul %172, %174, %cst_93 {dimension_numbers = #tpu.dot_dimension_numbers<[1], [1], [0], [0], [0, 0, 1, 0], [], []>} : vector<16x4xf32>, vector<16x4xf32>, vector<16x16xf32> -> vector<16x16xf32>
    %176 = arith.addf %157, %175 : vector<16x16xf32>
    %177 = vector.broadcast %3 : vector<1x16xf32> to vector<16x16xf32>
    %178 = arith.addf %176, %177 : vector<16x16xf32>
    %c1_94 = arith.constant 1 : index
    %c0_95 = arith.constant 0 : index
    %c0_96 = arith.constant 0 : index
    %179 = vector.load %arg9[%c1_94, %c0_95, %c0_96] : memref<2x16x16xf32, #tpu.memory_space<vmem>>, vector<1x16x16xf32>
    %180 = vector.shape_cast %179 : vector<1x16x16xf32> to vector<16x16xf32>
    %181 = vector.shape_cast %178 : vector<16x16xf32> to vector<1x16x16xf32>
    tpu.vector_store %arg9[%c1_94, %c0_95, %c0_96], %181 {strides = array<i32>} : memref<2x16x16xf32, #tpu.memory_space<vmem>>, vector<1x16x16xf32>,
    return
  }
  func.func @transform_0(%arg0: i32) -> (i32, i32, i32) {
    %c0_i32 = arith.constant 0 : i32
    %c0_i32_0 = arith.constant 0 : i32
    %c0_i32_1 = arith.constant 0 : i32
    return %arg0, %c0_i32, %c0_i32_0 : i32, i32, i32
  }
  func.func @transform_1(%arg0: i32) -> (i32, i32, i32) {
    %c0_i32 = arith.constant 0 : i32
    %c0_i32_0 = arith.constant 0 : i32
    %c0_i32_1 = arith.constant 0 : i32
    return %arg0, %c0_i32, %c0_i32_0 : i32, i32, i32
  }
  func.func @transform_2(%arg0: i32) -> (i32, i32, i32) {
    %c0_i32 = arith.constant 0 : i32
    %c0_i32_0 = arith.constant 0 : i32
    %c0_i32_1 = arith.constant 0 : i32
    return %arg0, %c0_i32, %c0_i32_0 : i32, i32, i32
  }
  func.func @transform_3(%arg0: i32) -> (i32, i32) {
    %c0_i32 = arith.constant 0 : i32
    %c0_i32_0 = arith.constant 0 : i32
    %c0_i32_1 = arith.constant 0 : i32
    return %c0_i32, %c0_i32_0 : i32, i32
  }
  func.func @transform_4(%arg0: i32) -> (i32, i32) {
    %c0_i32 = arith.constant 0 : i32
    %c0_i32_0 = arith.constant 0 : i32
    %c0_i32_1 = arith.constant 0 : i32
    return %c0_i32, %c0_i32_0 : i32, i32
  }
  func.func @transform_5(%arg0: i32) -> (i32, i32) {
    %c0_i32 = arith.constant 0 : i32
    %c0_i32_0 = arith.constant 0 : i32
    %c0_i32_1 = arith.constant 0 : i32
    return %c0_i32, %c0_i32_0 : i32, i32
  }
  func.func @transform_6(%arg0: i32) -> (i32, i32, i32) {
    %c0_i32 = arith.constant 0 : i32
    %c0_i32_0 = arith.constant 0 : i32
    %c0_i32_1 = arith.constant 0 : i32
    %c0_i32_2 = arith.constant 0 : i32
    return %c0_i32, %c0_i32_0, %c0_i32_1 : i32, i32, i32
  }
  func.func @transform_7(%arg0: i32) -> (i32, i32) {
    %c0_i32 = arith.constant 0 : i32
    %c0_i32_0 = arith.constant 0 : i32
    %c0_i32_1 = arith.constant 0 : i32
    return %c0_i32, %c0_i32_0 : i32, i32
  }
  func.func @transform_8(%arg0: i32) -> (i32, i32, i32) {
    %c0_i32 = arith.constant 0 : i32
    %c0_i32_0 = arith.constant 0 : i32
    %c0_i32_1 = arith.constant 0 : i32
    return %arg0, %c0_i32, %c0_i32_0 : i32, i32, i32
  }
}

</mosaic_0001>

<llo_original>
// kernel: multi_head_attn_forward.1
$region0: #{multi_head_attn_forward.1}
  #allocation0 [shape = 'u32[]', space=smem, size = 0x4, offset = 0x4, fixed_abs, tag = 'smem constant byte address 0x4 - core index']
  #allocation1 [shape = 'u32[144,128]{1,0:T(1,128)}', space=vmem, size = 0x12000, scoped, tag = 'internal scratch']
  %s0 = inlined_call_operand.vmem [shape: f32[2,16,145], index: 0, kind: input, shape index: {}]
  %s1 = inlined_call_operand.vmem [shape: f32[2,16,145], index: 1, kind: input, shape index: {}]
  %s2 = inlined_call_operand.vmem [shape: f32[2,16,145], index: 2, kind: input, shape index: {}]
  %s3 = inlined_call_operand.vmem [shape: f32[16,145], index: 3, kind: input, shape index: {}]
  %s4 = inlined_call_operand.vmem [shape: f32[16,145], index: 4, kind: input, shape index: {}]
  %s5 = inlined_call_operand.vmem [shape: f32[16,145], index: 5, kind: input, shape index: {}]
  %s6 = inlined_call_operand.vmem [shape: f32[4,16,4], index: 6, kind: input, shape index: {}]
  %s7 = inlined_call_operand.vmem [shape: f32[1,16], index: 7, kind: input, shape index: {}]
  %s8 = inlined_call_operand.hbm [shape: f32[2,16,16], index: 8, kind: output, shape index: {}]
  %s9 = sld [smem:[#allocation0]]
  $region42: #{multi_head_attn_forward.1} parent=0
    _
  %s11 = ssub.s32 1, %s9
  %s12 = scalar_select 0, %s11, %s9
  $region1: #{multi_head_attn_forward.1} parent=0
    #allocation2 [shape = 'u8[16384]{0}', space=vmem, size = 0x4000, scoped, tag = 'output window, operand 0, single buffered']
    #allocation3 [shape = 's32[1]{0}', space=sflag, size = 0x4, scoped, tag = 'scoped memory for multi_head_attn_forward.1']
    %13 = vsyncpa [#allocation3], 0
    // Predicated region
    $region2: #{multi_head_attn_forward.1} parent=1 // pred_check
      _
    $region3: #{multi_head_attn_forward.1} parent=1 // pred_check_branch
      %15 = sbr.rel (0) target = $region5
    $region4: #{multi_head_attn_forward.1} parent=1 // pred_region
      _
    $region5: #{multi_head_attn_forward.1} parent=1 // pred_fallthru
      _
    // Predicated region
    $region6: #{multi_head_attn_forward.1} parent=1 // pred_check
      _
    $region7: #{multi_head_attn_forward.1} parent=1 // pred_check_branch
      %17 = sbr.rel (0) target = $region9
    $region8: #{multi_head_attn_forward.1} parent=1 // pred_region
      _
    $region9: #{multi_head_attn_forward.1} parent=1 // pred_fallthru
      _
    // Predicated region
    $region10: #{multi_head_attn_forward.1} parent=1 // pred_check
      _
    $region11: #{multi_head_attn_forward.1} parent=1 // pred_check_branch
      %19 = sbr.rel (0) target = $region13
    $region12: #{multi_head_attn_forward.1} parent=1 // pred_region
      _
    $region13: #{multi_head_attn_forward.1} parent=1 // pred_fallthru
      _
    // Predicated region
    $region14: #{multi_head_attn_forward.1} parent=1 // pred_check
      _
    $region15: #{multi_head_attn_forward.1} parent=1 // pred_check_branch
      %21 = sbr.rel (0) target = $region17
    $region16: #{multi_head_attn_forward.1} parent=1 // pred_region
      _
    $region17: #{multi_head_attn_forward.1} parent=1 // pred_fallthru
      _
    // Predicated region
    $region18: #{multi_head_attn_forward.1} parent=1 // pred_check
      _
    $region19: #{multi_head_attn_forward.1} parent=1 // pred_check_branch
      %23 = sbr.rel (0) target = $region21
    $region20: #{multi_head_attn_forward.1} parent=1 // pred_region
      _
    $region21: #{multi_head_attn_forward.1} parent=1 // pred_fallthru
      _
    // Predicated region
    $region22: #{multi_head_attn_forward.1} parent=1 // pred_check
      _
    $region23: #{multi_head_attn_forward.1} parent=1 // pred_check_branch
      %25 = sbr.rel (0) target = $region25
    $region24: #{multi_head_attn_forward.1} parent=1 // pred_region
      _
    $region25: #{multi_head_attn_forward.1} parent=1 // pred_fallthru
      _
    // Predicated region
    $region26: #{multi_head_attn_forward.1} parent=1 // pred_check
      _
    $region27: #{multi_head_attn_forward.1} parent=1 // pred_check_branch
      %27 = sbr.rel (0) target = $region29
    $region28: #{multi_head_attn_forward.1} parent=1 // pred_region
      _
    $region29: #{multi_head_attn_forward.1} parent=1 // pred_fallthru
      _
    // Predicated region
    $region30: #{multi_head_attn_forward.1} parent=1 // pred_check
      _
    $region31: #{multi_head_attn_forward.1} parent=1 // pred_check_branch
      %29 = sbr.rel (0) target = $region33
    $region32: #{multi_head_attn_forward.1} parent=1 // pred_region
      _
    $region33: #{multi_head_attn_forward.1} parent=1 // pred_fallthru
      _
    %v30 = vld [vmem:[%s3] sm:$0xff]
    %v31 = vld [vmem:[%s3 + $0x8] sm:$0xff]
    %v32 = vld [vmem:[%s3 + $0x10] sm:$0xff]
    %v33 = vld [vmem:[%s3 + $0x18] sm:$0xff]
    %v34 = vld [vmem:[%s4] sm:$0xff]
    %v35 = vld [vmem:[%s4 + $0x8] sm:$0xff]
    %v36 = vld [vmem:[%s4 + $0x10] sm:$0xff]
    %v37 = vld [vmem:[%s4 + $0x18] sm:$0xff]
    %v38 = vld [vmem:[%s5] sm:$0xff]
    %v39 = vld [vmem:[%s5 + $0x8] sm:$0xff]
    %v40 = vld [vmem:[%s5 + $0x10] sm:$0xff]
    %v41 = vld [vmem:[%s5 + $0x18] sm:$0xff]
    %v42 = vld [vmem:[%s7] sm:$0x1]
    %v43 = vld [vmem:[%s0] sm:$0xff]
    %v44 = vld [vmem:[%s0 + $0x8] sm:$0xff]
    %v45 = vld [vmem:[%s0 + $0x10] sm:$0xff]
    %v46 = vld [vmem:[%s0 + $0x18] sm:$0xff]
    %vm47 = vcmask 138240
    %v49 = vsel %vm47, %v31, 0
    %v52 = vsel %vm47, %v33, 0
    %v55 = vsel %vm47, %v44, 0
    %v58 = vsel %vm47, %v46, 0
    %60 = vmatprep.subr.mxu0 %v55
    %61 = vmatpush1.xpose.msra.mxu0 %v43
    %62 = vmatprep.subr.mxu0 %v58
    %63 = vmatpush1.xpose.msra.mxu0 %v45
    %64 = vmatprep.subr.mxu0 0.0
    %65 = vmatpush1.xpose.msra.mxu0 0.0
    %66 = vmatprep.subr.mxu0 0.0
    %67 = vmatpush1.xpose.msra.mxu0 0.0
    %68 = vmatprep.subr.mxu0 0.0
    %69 = vmatpush1.xpose.msra.mxu0 0.0
    %70 = vmatprep.subr.mxu0 0.0
    %71 = vmatpush1.xpose.msra.mxu0 0.0
    %72 = vmatprep.subr.mxu0 0.0
    %73 = vmatpush1.xpose.msra.mxu0 0.0
    %74 = vmatprep.subr.mxu0 0.0
    %75 = vmatpush1.xpose.msra.mxu0 0.0
    %76 = vmatprep.subr.mxu0 0.0
    %77 = vmatpush1.xpose.msra.mxu0 0.0
    %78 = vmatprep.subr.mxu0 0.0
    %79 = vmatpush1.xpose.msra.mxu0 0.0
    %80 = vmatprep.subr.mxu0 0.0
    %81 = vmatpush1.xpose.msra.mxu0 0.0
    %82 = vmatprep.subr.mxu0 0.0
    %83 = vmatpush1.xpose.msra.mxu0 0.0
    %84 = vmatprep.subr.mxu0 0.0
    %85 = vmatpush1.xpose.msra.mxu0 0.0
    %86 = vmatprep.subr.mxu0 0.0
    %87 = vmatpush1.xpose.msra.mxu0 0.0
    %88 = vmatprep.subr.mxu0 0.0
    %89 = vmatpush1.xpose.msra.mxu0 0.0
    %90 = vmatprep.subr.mxu0 0.0
    %91 = vmatpush1.xpose.msra.mxu0 0.0
    %92 = vmatprep.subr.mxu0 0.0
    %93 = vmatpush1.xpose.msra.mxu0 0.0
    %94 = vmatprep.subr.mxu0 0.0
    %95 = vmatpush1.xpose.msra.mxu0 0.0
    %96 = vmatprep.subr.mxu0 0.0
    %97 = vmatpush1.xpose.msra.mxu0 0.0
    %98 = vmatprep.subr.mxu0 0.0
    %99 = vmatpush1.xpose.msra.mxu0 0.0
    %100 = vmatprep.subr.mxu0 0.0
    %101 = vmatpush1.xpose.msra.mxu0 0.0
    %102 = vmatprep.subr.mxu0 0.0
    %103 = vmatpush1.xpose.msra.mxu0 0.0
    %104 = vmatprep.subr.mxu0 0.0
    %105 = vmatpush1.xpose.msra.mxu0 0.0
    %106 = vmatprep.subr.mxu0 0.0
    %107 = vmatpush1.xpose.msra.mxu0 0.0
    %108 = vmatprep.subr.mxu0 0.0
    %109 = vmatpush1.xpose.msra.mxu0 0.0
    %110 = vmatprep.subr.mxu0 0.0
    %111 = vmatpush1.xpose.msra.mxu0 0.0
    %112 = vmatprep.subr.mxu0 0.0
    %113 = vmatpush1.xpose.msra.mxu0 0.0
    %114 = vmatprep.subr.mxu0 0.0
    %115 = vmatpush1.xpose.msra.mxu0 0.0
    %116 = vmatprep.subr.mxu0 0.0
    %117 = vmatpush1.xpose.msra.mxu0 0.0
    %118 = vmatprep.subr.mxu0 0.0
    %119 = vmatpush1.xpose.msra.mxu0 0.0
    %120 = vmatprep.subr.mxu0 0.0
    %121 = vmatpush1.xpose.msra.mxu0 0.0
    %122 = vmatprep.subr.mxu0 0.0
    %123 = vmatpush1.xpose.msra.mxu0 0.0
    %124 = vmatprep.mubr.f32.mxu0 %v49
    %125 = vmatmul.mubr.f32.gmra.mrb[0].mxu0 %v30
    %v126 = vpop.f32.mrb[0].mxu0
    %v127 = vadd.f32 0.0, %v126
    %v128 = vpop.f32.mrb[0].mxu0
    %129 = vmatprep.mubr.f32.mxu0 %v52
    %130 = vmatmul.mubr.f32.gmra.mrb[0].mxu0 %v32
    %v131 = vpop.f32.mrb[0].mxu0
    %v132 = vadd.f32 0.0, %v131
    %v133 = vpop.f32.mrb[0].mxu0
    %134 = vdwg.mxu0
    %v135 = vld [vmem:[%s1] sm:$0xff]
    %v136 = vld [vmem:[%s1 + $0x8] sm:$0xff]
    %v137 = vld [vmem:[%s1 + $0x10] sm:$0xff]
    %v138 = vld [vmem:[%s1 + $0x18] sm:$0xff]
    %v140 = vsel %vm47, %v35, 0
    %v143 = vsel %vm47, %v37, 0
    %v146 = vsel %vm47, %v136, 0
    %v149 = vsel %vm47, %v138, 0
    %151 = vmatprep.subr.mxu0 %v146
    %152 = vmatpush1.xpose.msra.mxu0 %v135
    %153 = vmatprep.subr.mxu0 %v149
    %154 = vmatpush1.xpose.msra.mxu0 %v137
    %155 = vmatprep.subr.mxu0 0.0
    %156 = vmatpush1.xpose.msra.mxu0 0.0
    %157 = vmatprep.subr.mxu0 0.0
    %158 = vmatpush1.xpose.msra.mxu0 0.0
    %159 = vmatprep.subr.mxu0 0.0
    %160 = vmatpush1.xpose.msra.mxu0 0.0
    %161 = vmatprep.subr.mxu0 0.0
    %162 = vmatpush1.xpose.msra.mxu0 0.0
    %163 = vmatprep.subr.mxu0 0.0
    %164 = vmatpush1.xpose.msra.mxu0 0.0
    %165 = vmatprep.subr.mxu0 0.0
    %166 = vmatpush1.xpose.msra.mxu0 0.0
    %167 = vmatprep.subr.mxu0 0.0
    %168 = vmatpush1.xpose.msra.mxu0 0.0
    %169 = vmatprep.subr.mxu0 0.0
    %170 = vmatpush1.xpose.msra.mxu0 0.0
    %171 = vmatprep.subr.mxu0 0.0
    %172 = vmatpush1.xpose.msra.mxu0 0.0
    %173 = vmatprep.subr.mxu0 0.0
    %174 = vmatpush1.xpose.msra.mxu0 0.0
    %175 = vmatprep.subr.mxu0 0.0
    %176 = vmatpush1.xpose.msra.mxu0 0.0
    %177 = vmatprep.subr.mxu0 0.0
    %178 = vmatpush1.xpose.msra.mxu0 0.0
    %179 = vmatprep.subr.mxu0 0.0
    %180 = vmatpush1.xpose.msra.mxu0 0.0
    %181 = vmatprep.subr.mxu0 0.0
    %182 = vmatpush1.xpose.msra.mxu0 0.0
    %183 = vmatprep.subr.mxu0 0.0
    %184 = vmatpush1.xpose.msra.mxu0 0.0
    %185 = vmatprep.subr.mxu0 0.0
    %186 = vmatpush1.xpose.msra.mxu0 0.0
    %187 = vmatprep.subr.mxu0 0.0
    %188 = vmatpush1.xpose.msra.mxu0 0.0
    %189 = vmatprep.subr.mxu0 0.0
    %190 = vmatpush1.xpose.msra.mxu0 0.0
    %191 = vmatprep.subr.mxu0 0.0
    %192 = vmatpush1.xpose.msra.mxu0 0.0
    %193 = vmatprep.subr.mxu0 0.0
    %194 = vmatpush1.xpose.msra.mxu0 0.0
    %195 = vmatprep.subr.mxu0 0.0
    %196 = vmatpush1.xpose.msra.mxu0 0.0
    %197 = vmatprep.subr.mxu0 0.0
    %198 = vmatpush1.xpose.msra.mxu0 0.0
    %199 = vmatprep.subr.mxu0 0.0
    %200 = vmatpush1.xpose.msra.mxu0 0.0
    %201 = vmatprep.subr.mxu0 0.0
    %202 = vmatpush1.xpose.msra.mxu0 0.0
    %203 = vmatprep.subr.mxu0 0.0
    %204 = vmatpush1.xpose.msra.mxu0 0.0
    %205 = vmatprep.subr.mxu0 0.0
    %206 = vmatpush1.xpose.msra.mxu0 0.0
    %207 = vmatprep.subr.mxu0 0.0
    %208 = vmatpush1.xpose.msra.mxu0 0.0
    %209 = vmatprep.subr.mxu0 0.0
    %210 = vmatpush1.xpose.msra.mxu0 0.0
    %211 = vmatprep.subr.mxu0 0.0
    %212 = vmatpush1.xpose.msra.mxu0 0.0
    %213 = vmatprep.subr.mxu0 0.0
    %214 = vmatpush1.xpose.msra.mxu0 0.0
    %215 = vmatprep.mubr.f32.mxu0 %v140
    %216 = vmatmul.mubr.f32.gmra.mrb[0].mxu0 %v34
    %v217 = vpop.f32.mrb[0].mxu0
    %v218 = vadd.f32 0.0, %v217
    %v219 = vpop.f32.mrb[0].mxu0
    %220 = vmatprep.mubr.f32.mxu0 %v143
    %221 = vmatmul.mubr.f32.gmra.mrb[0].mxu0 %v36
    %v222 = vpop.f32.mrb[0].mxu0
    %v223 = vadd.f32 0.0, %v222
    %v224 = vpop.f32.mrb[0].mxu0
    %225 = vdwg.mxu0
    %v226 = vld [vmem:[%s2] sm:$0xff]
    %v227 = vld [vmem:[%s2 + $0x8] sm:$0xff]
    %v228 = vld [vmem:[%s2 + $0x10] sm:$0xff]
    %v229 = vld [vmem:[%s2 + $0x18] sm:$0xff]
    %v231 = vsel %vm47, %v39, 0
    %v234 = vsel %vm47, %v41, 0
    %v237 = vsel %vm47, %v227, 0
    %v240 = vsel %vm47, %v229, 0
    %242 = vmatprep.subr.mxu0 %v237
    %243 = vmatpush1.xpose.msra.mxu0 %v226
    %244 = vmatprep.subr.mxu0 %v240
    %245 = vmatpush1.xpose.msra.mxu0 %v228
    %246 = vmatprep.subr.mxu0 0.0
    %247 = vmatpush1.xpose.msra.mxu0 0.0
    %248 = vmatprep.subr.mxu0 0.0
    %249 = vmatpush1.xpose.msra.mxu0 0.0
    %250 = vmatprep.subr.mxu0 0.0
    %251 = vmatpush1.xpose.msra.mxu0 0.0
    %252 = vmatprep.subr.mxu0 0.0
    %253 = vmatpush1.xpose.msra.mxu0 0.0
    %254 = vmatprep.subr.mxu0 0.0
    %255 = vmatpush1.xpose.msra.mxu0 0.0
    %256 = vmatprep.subr.mxu0 0.0
    %257 = vmatpush1.xpose.msra.mxu0 0.0
    %258 = vmatprep.subr.mxu0 0.0
    %259 = vmatpush1.xpose.msra.mxu0 0.0
    %260 = vmatprep.subr.mxu0 0.0
    %261 = vmatpush1.xpose.msra.mxu0 0.0
    %262 = vmatprep.subr.mxu0 0.0
    %263 = vmatpush1.xpose.msra.mxu0 0.0
    %264 = vmatprep.subr.mxu0 0.0
    %265 = vmatpush1.xpose.msra.mxu0 0.0
    %266 = vmatprep.subr.mxu0 0.0
    %267 = vmatpush1.xpose.msra.mxu0 0.0
    %268 = vmatprep.subr.mxu0 0.0
    %269 = vmatpush1.xpose.msra.mxu0 0.0
    %270 = vmatprep.subr.mxu0 0.0
    %271 = vmatpush1.xpose.msra.mxu0 0.0
    %272 = vmatprep.subr.mxu0 0.0
    %273 = vmatpush1.xpose.msra.mxu0 0.0
    %274 = vmatprep.subr.mxu0 0.0
    %275 = vmatpush1.xpose.msra.mxu0 0.0
    %276 = vmatprep.subr.mxu0 0.0
    %277 = vmatpush1.xpose.msra.mxu0 0.0
    %278 = vmatprep.subr.mxu0 0.0
    %279 = vmatpush1.xpose.msra.mxu0 0.0
    %280 = vmatprep.subr.mxu0 0.0
    %281 = vmatpush1.xpose.msra.mxu0 0.0
    %282 = vmatprep.subr.mxu0 0.0
    %283 = vmatpush1.xpose.msra.mxu0 0.0
    %284 = vmatprep.subr.mxu0 0.0
    %285 = vmatpush1.xpose.msra.mxu0 0.0
    %286 = vmatprep.subr.mxu0 0.0
    %287 = vmatpush1.xpose.msra.mxu0 0.0
    %288 = vmatprep.subr.mxu0 0.0
    %289 = vmatpush1.xpose.msra.mxu0 0.0
    %290 = vmatprep.subr.mxu0 0.0
    %291 = vmatpush1.xpose.msra.mxu0 0.0
    %292 = vmatprep.subr.mxu0 0.0
    %293 = vmatpush1.xpose.msra.mxu0 0.0
    %294 = vmatprep.subr.mxu0 0.0
    %295 = vmatpush1.xpose.msra.mxu0 0.0
    %296 = vmatprep.subr.mxu0 0.0
    %297 = vmatpush1.xpose.msra.mxu0 0.0
    %298 = vmatprep.subr.mxu0 0.0
    %299 = vmatpush1.xpose.msra.mxu0 0.0
    %300 = vmatprep.subr.mxu0 0.0
    %301 = vmatpush1.xpose.msra.mxu0 0.0
    %302 = vmatprep.subr.mxu0 0.0
    %303 = vmatpush1.xpose.msra.mxu0 0.0
    %304 = vmatprep.subr.mxu0 0.0
    %305 = vmatpush1.xpose.msra.mxu0 0.0
    %306 = vmatprep.mubr.f32.mxu0 %v231
    %307 = vmatmul.mubr.f32.gmra.mrb[0].mxu0 %v38
    %v308 = vpop.f32.mrb[0].mxu0
    %v309 = vadd.f32 0.0, %v308
    %v310 = vpop.f32.mrb[0].mxu0
    %311 = vmatprep.mubr.f32.mxu0 %v234
    %312 = vmatmul.mubr.f32.gmra.mrb[0].mxu0 %v40
    %v313 = vpop.f32.mrb[0].mxu0
    %v314 = vadd.f32 0.0, %v313
    %v315 = vpop.f32.mrb[0].mxu0
    %316 = vdwg.mxu0
    %vm317 = vcmask 31744
    %v319 = vsel %vm317, %v127, 0
    %v322 = vsel %vm317, %v132, 0
    %v325 = vsel %vm317, %v218, 0
    %v328 = vsel %vm317, %v223, 0
    %330 = vmatprep.subr.mxu0 0.0
    %331 = vmatpush1.xpose.msra.mxu0 %v325
    %332 = vmatprep.subr.mxu0 0.0
    %333 = vmatpush1.xpose.msra.mxu0 %v328
    %334 = vmatprep.subr.mxu0 0.0
    %335 = vmatpush1.xpose.msra.mxu0 0.0
    %336 = vmatprep.subr.mxu0 0.0
    %337 = vmatpush1.xpose.msra.mxu0 0.0
    %338 = vmatprep.subr.mxu0 0.0
    %339 = vmatpush1.xpose.msra.mxu0 0.0
    %340 = vmatprep.subr.mxu0 0.0
    %341 = vmatpush1.xpose.msra.mxu0 0.0
    %342 = vmatprep.subr.mxu0 0.0
    %343 = vmatpush1.xpose.msra.mxu0 0.0
    %344 = vmatprep.subr.mxu0 0.0
    %345 = vmatpush1.xpose.msra.mxu0 0.0
    %346 = vmatprep.subr.mxu0 0.0
    %347 = vmatpush1.xpose.msra.mxu0 0.0
    %348 = vmatprep.subr.mxu0 0.0
    %349 = vmatpush1.xpose.msra.mxu0 0.0
    %350 = vmatprep.subr.mxu0 0.0
    %351 = vmatpush1.xpose.msra.mxu0 0.0
    %352 = vmatprep.subr.mxu0 0.0
    %353 = vmatpush1.xpose.msra.mxu0 0.0
    %354 = vmatprep.subr.mxu0 0.0
    %355 = vmatpush1.xpose.msra.mxu0 0.0
    %356 = vmatprep.subr.mxu0 0.0
    %357 = vmatpush1.xpose.msra.mxu0 0.0
    %358 = vmatprep.subr.mxu0 0.0
    %359 = vmatpush1.xpose.msra.mxu0 0.0
    %360 = vmatprep.subr.mxu0 0.0
    %361 = vmatpush1.xpose.msra.mxu0 0.0
    %362 = vmatprep.subr.mxu0 0.0
    %363 = vmatpush1.xpose.msra.mxu0 0.0
    %364 = vmatprep.subr.mxu0 0.0
    %365 = vmatpush1.xpose.msra.mxu0 0.0
    %366 = vmatprep.subr.mxu0 0.0
    %367 = vmatpush1.xpose.msra.mxu0 0.0
    %368 = vmatprep.subr.mxu0 0.0
    %369 = vmatpush1.xpose.msra.mxu0 0.0
    %370 = vmatprep.subr.mxu0 0.0
    %371 = vmatpush1.xpose.msra.mxu0 0.0
    %372 = vmatprep.subr.mxu0 0.0
    %373 = vmatpush1.xpose.msra.mxu0 0.0
    %374 = vmatprep.subr.mxu0 0.0
    %375 = vmatpush1.xpose.msra.mxu0 0.0
    %376 = vmatprep.subr.mxu0 0.0
    %377 = vmatpush1.xpose.msra.mxu0 0.0
    %378 = vmatprep.subr.mxu0 0.0
    %379 = vmatpush1.xpose.msra.mxu0 0.0
    %380 = vmatprep.subr.mxu0 0.0
    %381 = vmatpush1.xpose.msra.mxu0 0.0
    %382 = vmatprep.subr.mxu0 0.0
    %383 = vmatpush1.xpose.msra.mxu0 0.0
    %384 = vmatprep.subr.mxu0 0.0
    %385 = vmatpush1.xpose.msra.mxu0 0.0
    %386 = vmatprep.subr.mxu0 0.0
    %387 = vmatpush1.xpose.msra.mxu0 0.0
    %388 = vmatprep.subr.mxu0 0.0
    %389 = vmatpush1.xpose.msra.mxu0 0.0
    %390 = vmatprep.subr.mxu0 0.0
    %391 = vmatpush1.xpose.msra.mxu0 0.0
    %392 = vmatprep.subr.mxu0 0.0
    %393 = vmatpush1.xpose.msra.mxu0 0.0
    %394 = vmatprep.mubr.f32.mxu0 0.0
    %395 = vmatmul.mubr.f32.gmra.mrb[0].mxu0 %v319
    %v396 = vpop.f32.mrb[0].mxu0
    %v397 = vadd.f32 0.0, %v396
    %v398 = vpop.f32.mrb[0].mxu0
    %399 = vmatprep.mubr.f32.mxu0 0.0
    %400 = vmatmul.mubr.f32.gmra.mrb[0].mxu0 %v322
    %v401 = vpop.f32.mrb[0].mxu0
    %v402 = vadd.f32 0.0, %v401
    %v403 = vpop.f32.mrb[0].mxu0
    %404 = vdwg.mxu0
    %vm405 = vcmask 130048
    %v406 = vsel %vm405, %v397, -inf
    %407 = vmax.xlane.f32.xlu0 %v406
    %v408 = vpop.xlane.xlu0 %407
    %v409 = vsel %vm405, %v402, -inf
    %410 = vmax.xlane.f32.xlu0 %v409
    %v411 = vpop.xlane.xlu0 %410
    %v412 = vsub.f32 %v397, %v408
    %v413 = vsub.f32 %v402, %v411
    %v414 = vmul.f32 %v412, 1.442695
    %v415 = vpow.pop %v414
    %v416 = vmul.f32 %v413, 1.442695
    %v417 = vpow.pop %v416
    %v418 = vsel %vm405, %v415, 0.0
    %419 = vadd.xlane.f32.xlu0 %v418
    %v420 = vpop.xlane.xlu0 %419
    %v421 = vsel %vm405, %v417, 0.0
    %422 = vadd.xlane.f32.xlu0 %v421
    %v423 = vpop.xlane.xlu0 %422
    %v424 = vrcp.pop %v420
    %v425 = vrcp.pop %v423
    %v426 = vmul.f32 %v415, %v424
    %v427 = vmul.f32 %v417, %v425
    %v429 = vsel %vm405, %v426, 0
    %v432 = vsel %vm405, %v427, 0
    %434 = vmatprep.subr.mxu0 0.0
    %435 = vmatpush1.msra.mxu0 %v309
    %436 = vmatprep.subr.mxu0 0.0
    %437 = vmatpush1.msra.mxu0 %v314
    %438 = vmatprep.subr.mxu0 0.0
    %439 = vmatpush1.msra.mxu0 0.0
    %440 = vmatprep.subr.mxu0 0.0
    %441 = vmatpush1.msra.mxu0 0.0
    %442 = vmatprep.subr.mxu0 0.0
    %443 = vmatpush1.msra.mxu0 0.0
    %444 = vmatprep.subr.mxu0 0.0
    %445 = vmatpush1.msra.mxu0 0.0
    %446 = vmatprep.subr.mxu0 0.0
    %447 = vmatpush1.msra.mxu0 0.0
    %448 = vmatprep.subr.mxu0 0.0
    %449 = vmatpush1.msra.mxu0 0.0
    %450 = vmatprep.subr.mxu0 0.0
    %451 = vmatpush1.msra.mxu0 0.0
    %452 = vmatprep.subr.mxu0 0.0
    %453 = vmatpush1.msra.mxu0 0.0
    %454 = vmatprep.subr.mxu0 0.0
    %455 = vmatpush1.msra.mxu0 0.0
    %456 = vmatprep.subr.mxu0 0.0
    %457 = vmatpush1.msra.mxu0 0.0
    %458 = vmatprep.subr.mxu0 0.0
    %459 = vmatpush1.msra.mxu0 0.0
    %460 = vmatprep.subr.mxu0 0.0
    %461 = vmatpush1.msra.mxu0 0.0
    %462 = vmatprep.subr.mxu0 0.0
    %463 = vmatpush1.msra.mxu0 0.0
    %464 = vmatprep.subr.mxu0 0.0
    %465 = vmatpush1.msra.mxu0 0.0
    %466 = vmatprep.subr.mxu0 0.0
    %467 = vmatpush1.msra.mxu0 0.0
    %468 = vmatprep.subr.mxu0 0.0
    %469 = vmatpush1.msra.mxu0 0.0
    %470 = vmatprep.subr.mxu0 0.0
    %471 = vmatpush1.msra.mxu0 0.0
    %472 = vmatprep.subr.mxu0 0.0
    %473 = vmatpush1.msra.mxu0 0.0
    %474 = vmatprep.subr.mxu0 0.0
    %475 = vmatpush1.msra.mxu0 0.0
    %476 = vmatprep.subr.mxu0 0.0
    %477 = vmatpush1.msra.mxu0 0.0
    %478 = vmatprep.subr.mxu0 0.0
    %479 = vmatpush1.msra.mxu0 0.0
    %480 = vmatprep.subr.mxu0 0.0
    %481 = vmatpush1.msra.mxu0 0.0
    %482 = vmatprep.subr.mxu0 0.0
    %483 = vmatpush1.msra.mxu0 0.0
    %484 = vmatprep.subr.mxu0 0.0
    %485 = vmatpush1.msra.mxu0 0.0
    %486 = vmatprep.subr.mxu0 0.0
    %487 = vmatpush1.msra.mxu0 0.0
    %488 = vmatprep.subr.mxu0 0.0
    %489 = vmatpush1.msra.mxu0 0.0
    %490 = vmatprep.subr.mxu0 0.0
    %491 = vmatpush1.msra.mxu0 0.0
    %492 = vmatprep.subr.mxu0 0.0
    %493 = vmatpush1.msra.mxu0 0.0
    %494 = vmatprep.subr.mxu0 0.0
    %495 = vmatpush1.msra.mxu0 0.0
    %496 = vmatprep.subr.mxu0 0.0
    %497 = vmatpush1.msra.mxu0 0.0
    %498 = vmatprep.mubr.f32.mxu0 0.0
    %499 = vmatmul.mubr.f32.gmra.mrb[0].mxu0 %v429
    %v500 = vpop.f32.mrb[0].mxu0
    %v501 = vadd.f32 0.0, %v500
    %v502 = vpop.f32.mrb[0].mxu0
    %503 = vmatprep.mubr.f32.mxu0 0.0
    %504 = vmatmul.mubr.f32.gmra.mrb[0].mxu0 %v432
    %v505 = vpop.f32.mrb[0].mxu0
    %v506 = vadd.f32 0.0, %v505
    %v507 = vpop.f32.mrb[0].mxu0
    %508 = vdwg.mxu0
    %v509 = vld [vmem:[%s6] sm:$0xff]
    %v510 = vld [vmem:[%s6 + $0x8] sm:$0xff]
    %511 = vrot.lane.b32.xlu0 %v127, 124
    %v512 = vpop.permute.xlu0 %511
    %513 = vrot.lane.b32.xlu0 %v132, 124
    %v514 = vpop.permute.xlu0 %513
    %515 = vrot.lane.b32.xlu0 %v218, 124
    %v516 = vpop.permute.xlu0 %515
    %517 = vrot.lane.b32.xlu0 %v223, 124
    %v518 = vpop.permute.xlu0 %517
    %v519 = vsel %vm317, %v512, 0
    %v521 = vsel %vm317, %v514, 0
    %v523 = vsel %vm317, %v516, 0
    %v525 = vsel %vm317, %v518, 0
    %527 = vmatprep.subr.mxu0 0.0
    %528 = vmatpush1.xpose.msra.mxu0 %v523
    %529 = vmatprep.subr.mxu0 0.0
    %530 = vmatpush1.xpose.msra.mxu0 %v525
    %531 = vmatprep.subr.mxu0 0.0
    %532 = vmatpush1.xpose.msra.mxu0 0.0
    %533 = vmatprep.subr.mxu0 0.0
    %534 = vmatpush1.xpose.msra.mxu0 0.0
    %535 = vmatprep.subr.mxu0 0.0
    %536 = vmatpush1.xpose.msra.mxu0 0.0
    %537 = vmatprep.subr.mxu0 0.0
    %538 = vmatpush1.xpose.msra.mxu0 0.0
    %539 = vmatprep.subr.mxu0 0.0
    %540 = vmatpush1.xpose.msra.mxu0 0.0
    %541 = vmatprep.subr.mxu0 0.0
    %542 = vmatpush1.xpose.msra.mxu0 0.0
    %543 = vmatprep.subr.mxu0 0.0
    %544 = vmatpush1.xpose.msra.mxu0 0.0
    %545 = vmatprep.subr.mxu0 0.0
    %546 = vmatpush1.xpose.msra.mxu0 0.0
    %547 = vmatprep.subr.mxu0 0.0
    %548 = vmatpush1.xpose.msra.mxu0 0.0
    %549 = vmatprep.subr.mxu0 0.0
    %550 = vmatpush1.xpose.msra.mxu0 0.0
    %551 = vmatprep.subr.mxu0 0.0
    %552 = vmatpush1.xpose.msra.mxu0 0.0
    %553 = vmatprep.subr.mxu0 0.0
    %554 = vmatpush1.xpose.msra.mxu0 0.0
    %555 = vmatprep.subr.mxu0 0.0
    %556 = vmatpush1.xpose.msra.mxu0 0.0
    %557 = vmatprep.subr.mxu0 0.0
    %558 = vmatpush1.xpose.msra.mxu0 0.0
    %559 = vmatprep.subr.mxu0 0.0
    %560 = vmatpush1.xpose.msra.mxu0 0.0
    %561 = vmatprep.subr.mxu0 0.0
    %562 = vmatpush1.xpose.msra.mxu0 0.0
    %563 = vmatprep.subr.mxu0 0.0
    %564 = vmatpush1.xpose.msra.mxu0 0.0
    %565 = vmatprep.subr.mxu0 0.0
    %566 = vmatpush1.xpose.msra.mxu0 0.0
    %567 = vmatprep.subr.mxu0 0.0
    %568 = vmatpush1.xpose.msra.mxu0 0.0
    %569 = vmatprep.subr.mxu0 0.0
    %570 = vmatpush1.xpose.msra.mxu0 0.0
    %571 = vmatprep.subr.mxu0 0.0
    %572 = vmatpush1.xpose.msra.mxu0 0.0
    %573 = vmatprep.subr.mxu0 0.0
    %574 = vmatpush1.xpose.msra.mxu0 0.0
    %575 = vmatprep.subr.mxu0 0.0
    %576 = vmatpush1.xpose.msra.mxu0 0.0
    %577 = vmatprep.subr.mxu0 0.0
    %578 = vmatpush1.xpose.msra.mxu0 0.0
    %579 = vmatprep.subr.mxu0 0.0
    %580 = vmatpush1.xpose.msra.mxu0 0.0
    %581 = vmatprep.subr.mxu0 0.0
    %582 = vmatpush1.xpose.msra.mxu0 0.0
    %583 = vmatprep.subr.mxu0 0.0
    %584 = vmatpush1.xpose.msra.mxu0 0.0
    %585 = vmatprep.subr.mxu0 0.0
    %586 = vmatpush1.xpose.msra.mxu0 0.0
    %587 = vmatprep.subr.mxu0 0.0
    %588 = vmatpush1.xpose.msra.mxu0 0.0
    %589 = vmatprep.subr.mxu0 0.0
    %590 = vmatpush1.xpose.msra.mxu0 0.0
    %591 = vmatprep.mubr.f32.mxu0 0.0
    %592 = vmatmul.mubr.f32.gmra.mrb[0].mxu0 %v519
    %v593 = vpop.f32.mrb[0].mxu0
    %v594 = vadd.f32 0.0, %v593
    %v595 = vpop.f32.mrb[0].mxu0
    %596 = vmatprep.mubr.f32.mxu0 0.0
    %597 = vmatmul.mubr.f32.gmra.mrb[0].mxu0 %v521
    %v598 = vpop.f32.mrb[0].mxu0
    %v599 = vadd.f32 0.0, %v598
    %v600 = vpop.f32.mrb[0].mxu0
    %601 = vdwg.mxu0
    %v602 = vsel %vm405, %v594, -inf
    %603 = vmax.xlane.f32.xlu0 %v602
    %v604 = vpop.xlane.xlu0 %603
    %v605 = vsel %vm405, %v599, -inf
    %606 = vmax.xlane.f32.xlu0 %v605
    %v607 = vpop.xlane.xlu0 %606
    %v608 = vsub.f32 %v594, %v604
    %v609 = vsub.f32 %v599, %v607
    %v610 = vmul.f32 %v608, 1.442695
    %v611 = vpow.pop %v610
    %v612 = vmul.f32 %v609, 1.442695
    %v613 = vpow.pop %v612
    %v614 = vsel %vm405, %v611, 0.0
    %615 = vadd.xlane.f32.xlu0 %v614
    %v616 = vpop.xlane.xlu0 %615
    %v617 = vsel %vm405, %v613, 0.0
    %618 = vadd.xlane.f32.xlu0 %v617
    %v619 = vpop.xlane.xlu0 %618
    %v620 = vrcp.pop %v616
    %v621 = vrcp.pop %v619
    %v622 = vmul.f32 %v611, %v620
    %v623 = vmul.f32 %v613, %v621
    %626 = vrot.lane.b32.xlu0 %v309, 124
    %v627 = vpop.permute.xlu0 %626
    %628 = vrot.lane.b32.xlu0 %v314, 124
    %v629 = vpop.permute.xlu0 %628
    %v633 = vsel %vm405, %v622, 0
    %v636 = vsel %vm405, %v623, 0
    %638 = vmatprep.subr.mxu0 0.0
    %639 = vmatpush1.msra.mxu0 %v627
    %640 = vmatprep.subr.mxu0 0.0
    %641 = vmatpush1.msra.mxu0 %v629
    %642 = vmatprep.subr.mxu0 0.0
    %643 = vmatpush1.msra.mxu0 0.0
    %644 = vmatprep.subr.mxu0 0.0
    %645 = vmatpush1.msra.mxu0 0.0
    %646 = vmatprep.subr.mxu0 0.0
    %647 = vmatpush1.msra.mxu0 0.0
    %648 = vmatprep.subr.mxu0 0.0
    %649 = vmatpush1.msra.mxu0 0.0
    %650 = vmatprep.subr.mxu0 0.0
    %651 = vmatpush1.msra.mxu0 0.0
    %652 = vmatprep.subr.mxu0 0.0
    %653 = vmatpush1.msra.mxu0 0.0
    %654 = vmatprep.subr.mxu0 0.0
    %655 = vmatpush1.msra.mxu0 0.0
    %656 = vmatprep.subr.mxu0 0.0
    %657 = vmatpush1.msra.mxu0 0.0
    %658 = vmatprep.subr.mxu0 0.0
    %659 = vmatpush1.msra.mxu0 0.0
    %660 = vmatprep.subr.mxu0 0.0
    %661 = vmatpush1.msra.mxu0 0.0
    %662 = vmatprep.subr.mxu0 0.0
    %663 = vmatpush1.msra.mxu0 0.0
    %664 = vmatprep.subr.mxu0 0.0
    %665 = vmatpush1.msra.mxu0 0.0
    %666 = vmatprep.subr.mxu0 0.0
    %667 = vmatpush1.msra.mxu0 0.0
    %668 = vmatprep.subr.mxu0 0.0
    %669 = vmatpush1.msra.mxu0 0.0
    %670 = vmatprep.subr.mxu0 0.0
    %671 = vmatpush1.msra.mxu0 0.0
    %672 = vmatprep.subr.mxu0 0.0
    %673 = vmatpush1.msra.mxu0 0.0
    %674 = vmatprep.subr.mxu0 0.0
    %675 = vmatpush1.msra.mxu0 0.0
    %676 = vmatprep.subr.mxu0 0.0
    %677 = vmatpush1.msra.mxu0 0.0
    %678 = vmatprep.subr.mxu0 0.0
    %679 = vmatpush1.msra.mxu0 0.0
    %680 = vmatprep.subr.mxu0 0.0
    %681 = vmatpush1.msra.mxu0 0.0
    %682 = vmatprep.subr.mxu0 0.0
    %683 = vmatpush1.msra.mxu0 0.0
    %684 = vmatprep.subr.mxu0 0.0
    %685 = vmatpush1.msra.mxu0 0.0
    %686 = vmatprep.subr.mxu0 0.0
    %687 = vmatpush1.msra.mxu0 0.0
    %688 = vmatprep.subr.mxu0 0.0
    %689 = vmatpush1.msra.mxu0 0.0
    %690 = vmatprep.subr.mxu0 0.0
    %691 = vmatpush1.msra.mxu0 0.0
    %692 = vmatprep.subr.mxu0 0.0
    %693 = vmatpush1.msra.mxu0 0.0
    %694 = vmatprep.subr.mxu0 0.0
    %695 = vmatpush1.msra.mxu0 0.0
    %696 = vmatprep.subr.mxu0 0.0
    %697 = vmatpush1.msra.mxu0 0.0
    %698 = vmatprep.subr.mxu0 0.0
    %699 = vmatpush1.msra.mxu0 0.0
    %700 = vmatprep.subr.mxu0 0.0
    %701 = vmatpush1.msra.mxu0 0.0
    %702 = vmatprep.mubr.f32.mxu0 0.0
    %703 = vmatmul.mubr.f32.gmra.mrb[0].mxu0 %v633
    %v704 = vpop.f32.mrb[0].mxu0
    %v705 = vadd.f32 0.0, %v704
    %v706 = vpop.f32.mrb[0].mxu0
    %707 = vmatprep.mubr.f32.mxu0 0.0
    %708 = vmatmul.mubr.f32.gmra.mrb[0].mxu0 %v636
    %v709 = vpop.f32.mrb[0].mxu0
    %v710 = vadd.f32 0.0, %v709
    %v711 = vpop.f32.mrb[0].mxu0
    %712 = vdwg.mxu0
    %s713 = scalar_lea.vmem %s6, 16
    %v714 = vld [vmem:[%s713] sm:$0xff]
    %v715 = vld [vmem:[%s713 + $0x8] sm:$0xff]
    %v717 = vsel %vm317, %v705, 0
    %v720 = vsel %vm317, %v710, 0
    %v723 = vsel %vm317, %v714, 0
    %v726 = vsel %vm317, %v715, 0
    %728 = vmatprep.subr.mxu0 0.0
    %729 = vmatpush1.xpose.msra.mxu0 %v723
    %730 = vmatprep.subr.mxu0 0.0
    %731 = vmatpush1.xpose.msra.mxu0 %v726
    %732 = vmatprep.subr.mxu0 0.0
    %733 = vmatpush1.xpose.msra.mxu0 0.0
    %734 = vmatprep.subr.mxu0 0.0
    %735 = vmatpush1.xpose.msra.mxu0 0.0
    %736 = vmatprep.subr.mxu0 0.0
    %737 = vmatpush1.xpose.msra.mxu0 0.0
    %738 = vmatprep.subr.mxu0 0.0
    %739 = vmatpush1.xpose.msra.mxu0 0.0
    %740 = vmatprep.subr.mxu0 0.0
    %741 = vmatpush1.xpose.msra.mxu0 0.0
    %742 = vmatprep.subr.mxu0 0.0
    %743 = vmatpush1.xpose.msra.mxu0 0.0
    %744 = vmatprep.subr.mxu0 0.0
    %745 = vmatpush1.xpose.msra.mxu0 0.0
    %746 = vmatprep.subr.mxu0 0.0
    %747 = vmatpush1.xpose.msra.mxu0 0.0
    %748 = vmatprep.subr.mxu0 0.0
    %749 = vmatpush1.xpose.msra.mxu0 0.0
    %750 = vmatprep.subr.mxu0 0.0
    %751 = vmatpush1.xpose.msra.mxu0 0.0
    %752 = vmatprep.subr.mxu0 0.0
    %753 = vmatpush1.xpose.msra.mxu0 0.0
    %754 = vmatprep.subr.mxu0 0.0
    %755 = vmatpush1.xpose.msra.mxu0 0.0
    %756 = vmatprep.subr.mxu0 0.0
    %757 = vmatpush1.xpose.msra.mxu0 0.0
    %758 = vmatprep.subr.mxu0 0.0
    %759 = vmatpush1.xpose.msra.mxu0 0.0
    %760 = vmatprep.subr.mxu0 0.0
    %761 = vmatpush1.xpose.msra.mxu0 0.0
    %762 = vmatprep.subr.mxu0 0.0
    %763 = vmatpush1.xpose.msra.mxu0 0.0
    %764 = vmatprep.subr.mxu0 0.0
    %765 = vmatpush1.xpose.msra.mxu0 0.0
    %766 = vmatprep.subr.mxu0 0.0
    %767 = vmatpush1.xpose.msra.mxu0 0.0
    %768 = vmatprep.subr.mxu0 0.0
    %769 = vmatpush1.xpose.msra.mxu0 0.0
    %770 = vmatprep.subr.mxu0 0.0
    %771 = vmatpush1.xpose.msra.mxu0 0.0
    %772 = vmatprep.subr.mxu0 0.0
    %773 = vmatpush1.xpose.msra.mxu0 0.0
    %774 = vmatprep.subr.mxu0 0.0
    %775 = vmatpush1.xpose.msra.mxu0 0.0
    %776 = vmatprep.subr.mxu0 0.0
    %777 = vmatpush1.xpose.msra.mxu0 0.0
    %778 = vmatprep.subr.mxu0 0.0
    %779 = vmatpush1.xpose.msra.mxu0 0.0
    %780 = vmatprep.subr.mxu0 0.0
    %781 = vmatpush1.xpose.msra.mxu0 0.0
    %782 = vmatprep.subr.mxu0 0.0
    %783 = vmatpush1.xpose.msra.mxu0 0.0
    %784 = vmatprep.subr.mxu0 0.0
    %785 = vmatpush1.xpose.msra.mxu0 0.0
    %786 = vmatprep.subr.mxu0 0.0
    %787 = vmatpush1.xpose.msra.mxu0 0.0
    %788 = vmatprep.subr.mxu0 0.0
    %789 = vmatpush1.xpose.msra.mxu0 0.0
    %790 = vmatprep.subr.mxu0 0.0
    %791 = vmatpush1.xpose.msra.mxu0 0.0
    %792 = vmatprep.mubr.f32.mxu0 0.0
    %793 = vmatmul.mubr.f32.gmra.mrb[0].mxu0 %v717
    %v794 = vpop.f32.mrb[0].mxu0
    %v795 = vadd.f32 0.0, %v794
    %v796 = vpop.f32.mrb[0].mxu0
    %797 = vmatprep.mubr.f32.mxu0 0.0
    %798 = vmatmul.mubr.f32.gmra.mrb[0].mxu0 %v720
    %v799 = vpop.f32.mrb[0].mxu0
    %v800 = vadd.f32 0.0, %v799
    %v801 = vpop.f32.mrb[0].mxu0
    %802 = vdwg.mxu0
    %v804 = vsel %vm317, %v501, 0
    %v807 = vsel %vm317, %v506, 0
    %v810 = vsel %vm317, %v509, 0
    %v813 = vsel %vm317, %v510, 0
    %815 = vmatprep.subr.mxu0 0.0
    %816 = vmatpush1.xpose.msra.mxu0 %v810
    %817 = vmatprep.subr.mxu0 0.0
    %818 = vmatpush1.xpose.msra.mxu0 %v813
    %819 = vmatprep.subr.mxu0 0.0
    %820 = vmatpush1.xpose.msra.mxu0 0.0
    %821 = vmatprep.subr.mxu0 0.0
    %822 = vmatpush1.xpose.msra.mxu0 0.0
    %823 = vmatprep.subr.mxu0 0.0
    %824 = vmatpush1.xpose.msra.mxu0 0.0
    %825 = vmatprep.subr.mxu0 0.0
    %826 = vmatpush1.xpose.msra.mxu0 0.0
    %827 = vmatprep.subr.mxu0 0.0
    %828 = vmatpush1.xpose.msra.mxu0 0.0
    %829 = vmatprep.subr.mxu0 0.0
    %830 = vmatpush1.xpose.msra.mxu0 0.0
    %831 = vmatprep.subr.mxu0 0.0
    %832 = vmatpush1.xpose.msra.mxu0 0.0
    %833 = vmatprep.subr.mxu0 0.0
    %834 = vmatpush1.xpose.msra.mxu0 0.0
    %835 = vmatprep.subr.mxu0 0.0
    %836 = vmatpush1.xpose.msra.mxu0 0.0
    %837 = vmatprep.subr.mxu0 0.0
    %838 = vmatpush1.xpose.msra.mxu0 0.0
    %839 = vmatprep.subr.mxu0 0.0
    %840 = vmatpush1.xpose.msra.mxu0 0.0
    %841 = vmatprep.subr.mxu0 0.0
    %842 = vmatpush1.xpose.msra.mxu0 0.0
    %843 = vmatprep.subr.mxu0 0.0
    %844 = vmatpush1.xpose.msra.mxu0 0.0
    %845 = vmatprep.subr.mxu0 0.0
    %846 = vmatpush1.xpose.msra.mxu0 0.0
    %847 = vmatprep.subr.mxu0 0.0
    %848 = vmatpush1.xpose.msra.mxu0 0.0
    %849 = vmatprep.subr.mxu0 0.0
    %850 = vmatpush1.xpose.msra.mxu0 0.0
    %851 = vmatprep.subr.mxu0 0.0
    %852 = vmatpush1.xpose.msra.mxu0 0.0
    %853 = vmatprep.subr.mxu0 0.0
    %854 = vmatpush1.xpose.msra.mxu0 0.0
    %855 = vmatprep.subr.mxu0 0.0
    %856 = vmatpush1.xpose.msra.mxu0 0.0
    %857 = vmatprep.subr.mxu0 0.0
    %858 = vmatpush1.xpose.msra.mxu0 0.0
    %859 = vmatprep.subr.mxu0 0.0
    %860 = vmatpush1.xpose.msra.mxu0 0.0
    %861 = vmatprep.subr.mxu0 0.0
    %862 = vmatpush1.xpose.msra.mxu0 0.0
    %863 = vmatprep.subr.mxu0 0.0
    %864 = vmatpush1.xpose.msra.mxu0 0.0
    %865 = vmatprep.subr.mxu0 0.0
    %866 = vmatpush1.xpose.msra.mxu0 0.0
    %867 = vmatprep.subr.mxu0 0.0
    %868 = vmatpush1.xpose.msra.mxu0 0.0
    %869 = vmatprep.subr.mxu0 0.0
    %870 = vmatpush1.xpose.msra.mxu0 0.0
    %871 = vmatprep.subr.mxu0 0.0
    %872 = vmatpush1.xpose.msra.mxu0 0.0
    %873 = vmatprep.subr.mxu0 0.0
    %874 = vmatpush1.xpose.msra.mxu0 0.0
    %875 = vmatprep.subr.mxu0 0.0
    %876 = vmatpush1.xpose.msra.mxu0 0.0
    %877 = vmatprep.subr.mxu0 0.0
    %878 = vmatpush1.xpose.msra.mxu0 0.0
    %879 = vmatprep.mubr.f32.mxu0 0.0
    %880 = vmatmul.mubr.f32.gmra.mrb[0].mxu0 %v804
    %v881 = vpop.f32.mrb[0].mxu0
    %v882 = vadd.f32 %v795, %v881
    %v883 = vpop.f32.mrb[0].mxu0
    %884 = vmatprep.mubr.f32.mxu0 0.0
    %885 = vmatmul.mubr.f32.gmra.mrb[0].mxu0 %v807
    %v886 = vpop.f32.mrb[0].mxu0
    %v887 = vadd.f32 %v800, %v886
    %v888 = vpop.f32.mrb[0].mxu0
    %889 = vdwg.mxu0
    %890 = vrot.lane.b32.xlu0 %v127, 120
    %v891 = vpop.permute.xlu0 %890
    %892 = vrot.lane.b32.xlu0 %v132, 120
    %v893 = vpop.permute.xlu0 %892
    %894 = vrot.lane.b32.xlu0 %v218, 120
    %v895 = vpop.permute.xlu0 %894
    %896 = vrot.lane.b32.xlu0 %v223, 120
    %v897 = vpop.permute.xlu0 %896
    %v898 = vsel %vm317, %v891, 0
    %v900 = vsel %vm317, %v893, 0
    %v902 = vsel %vm317, %v895, 0
    %v904 = vsel %vm317, %v897, 0
    %906 = vmatprep.subr.mxu0 0.0
    %907 = vmatpush1.xpose.msra.mxu0 %v902
    %908 = vmatprep.subr.mxu0 0.0
    %909 = vmatpush1.xpose.msra.mxu0 %v904
    %910 = vmatprep.subr.mxu0 0.0
    %911 = vmatpush1.xpose.msra.mxu0 0.0
    %912 = vmatprep.subr.mxu0 0.0
    %913 = vmatpush1.xpose.msra.mxu0 0.0
    %914 = vmatprep.subr.mxu0 0.0
    %915 = vmatpush1.xpose.msra.mxu0 0.0
    %916 = vmatprep.subr.mxu0 0.0
    %917 = vmatpush1.xpose.msra.mxu0 0.0
    %918 = vmatprep.subr.mxu0 0.0
    %919 = vmatpush1.xpose.msra.mxu0 0.0
    %920 = vmatprep.subr.mxu0 0.0
    %921 = vmatpush1.xpose.msra.mxu0 0.0
    %922 = vmatprep.subr.mxu0 0.0
    %923 = vmatpush1.xpose.msra.mxu0 0.0
    %924 = vmatprep.subr.mxu0 0.0
    %925 = vmatpush1.xpose.msra.mxu0 0.0
    %926 = vmatprep.subr.mxu0 0.0
    %927 = vmatpush1.xpose.msra.mxu0 0.0
    %928 = vmatprep.subr.mxu0 0.0
    %929 = vmatpush1.xpose.msra.mxu0 0.0
    %930 = vmatprep.subr.mxu0 0.0
    %931 = vmatpush1.xpose.msra.mxu0 0.0
    %932 = vmatprep.subr.mxu0 0.0
    %933 = vmatpush1.xpose.msra.mxu0 0.0
    %934 = vmatprep.subr.mxu0 0.0
    %935 = vmatpush1.xpose.msra.mxu0 0.0
    %936 = vmatprep.subr.mxu0 0.0
    %937 = vmatpush1.xpose.msra.mxu0 0.0
    %938 = vmatprep.subr.mxu0 0.0
    %939 = vmatpush1.xpose.msra.mxu0 0.0
    %940 = vmatprep.subr.mxu0 0.0
    %941 = vmatpush1.xpose.msra.mxu0 0.0
    %942 = vmatprep.subr.mxu0 0.0
    %943 = vmatpush1.xpose.msra.mxu0 0.0
    %944 = vmatprep.subr.mxu0 0.0
    %945 = vmatpush1.xpose.msra.mxu0 0.0
    %946 = vmatprep.subr.mxu0 0.0
    %947 = vmatpush1.xpose.msra.mxu0 0.0
    %948 = vmatprep.subr.mxu0 0.0
    %949 = vmatpush1.xpose.msra.mxu0 0.0
    %950 = vmatprep.subr.mxu0 0.0
    %951 = vmatpush1.xpose.msra.mxu0 0.0
    %952 = vmatprep.subr.mxu0 0.0
    %953 = vmatpush1.xpose.msra.mxu0 0.0
    %954 = vmatprep.subr.mxu0 0.0
    %955 = vmatpush1.xpose.msra.mxu0 0.0
    %956 = vmatprep.subr.mxu0 0.0
    %957 = vmatpush1.xpose.msra.mxu0 0.0
    %958 = vmatprep.subr.mxu0 0.0
    %959 = vmatpush1.xpose.msra.mxu0 0.0
    %960 = vmatprep.subr.mxu0 0.0
    %961 = vmatpush1.xpose.msra.mxu0 0.0
    %962 = vmatprep.subr.mxu0 0.0
    %963 = vmatpush1.xpose.msra.mxu0 0.0
    %964 = vmatprep.subr.mxu0 0.0
    %965 = vmatpush1.xpose.msra.mxu0 0.0
    %966 = vmatprep.subr.mxu0 0.0
    %967 = vmatpush1.xpose.msra.mxu0 0.0
    %968 = vmatprep.subr.mxu0 0.0
    %969 = vmatpush1.xpose.msra.mxu0 0.0
    %970 = vmatprep.mubr.f32.mxu0 0.0
    %971 = vmatmul.mubr.f32.gmra.mrb[0].mxu0 %v898
    %v972 = vpop.f32.mrb[0].mxu0
    %v973 = vadd.f32 0.0, %v972
    %v974 = vpop.f32.mrb[0].mxu0
    %975 = vmatprep.mubr.f32.mxu0 0.0
    %976 = vmatmul.mubr.f32.gmra.mrb[0].mxu0 %v900
    %v977 = vpop.f32.mrb[0].mxu0
    %v978 = vadd.f32 0.0, %v977
    %v979 = vpop.f32.mrb[0].mxu0
    %980 = vdwg.mxu0
    %v981 = vsel %vm405, %v973, -inf
    %982 = vmax.xlane.f32.xlu0 %v981
    %v983 = vpop.xlane.xlu0 %982
    %v984 = vsel %vm405, %v978, -inf
    %985 = vmax.xlane.f32.xlu0 %v984
    %v986 = vpop.xlane.xlu0 %985
    %v987 = vsub.f32 %v973, %v983
    %v988 = vsub.f32 %v978, %v986
    %v989 = vmul.f32 %v987, 1.442695
    %v990 = vpow.pop %v989
    %v991 = vmul.f32 %v988, 1.442695
    %v992 = vpow.pop %v991
    %v993 = vsel %vm405, %v990, 0.0
    %994 = vadd.xlane.f32.xlu0 %v993
    %v995 = vpop.xlane.xlu0 %994
    %v996 = vsel %vm405, %v992, 0.0
    %997 = vadd.xlane.f32.xlu0 %v996
    %v998 = vpop.xlane.xlu0 %997
    %v999 = vrcp.pop %v995
    %v1000 = vrcp.pop %v998
    %v1001 = vmul.f32 %v990, %v999
    %v1002 = vmul.f32 %v992, %v1000
    %1003 = vrot.lane.b32.xlu0 %v309, 120
    %v1004 = vpop.permute.xlu0 %1003
    %1005 = vrot.lane.b32.xlu0 %v314, 120
    %v1006 = vpop.permute.xlu0 %1005
    %v1010 = vsel %vm405, %v1001, 0
    %v1013 = vsel %vm405, %v1002, 0
    %1015 = vmatprep.subr.mxu0 0.0
    %1016 = vmatpush1.msra.mxu0 %v1004
    %1017 = vmatprep.subr.mxu0 0.0
    %1018 = vmatpush1.msra.mxu0 %v1006
    %1019 = vmatprep.subr.mxu0 0.0
    %1020 = vmatpush1.msra.mxu0 0.0
    %1021 = vmatprep.subr.mxu0 0.0
    %1022 = vmatpush1.msra.mxu0 0.0
    %1023 = vmatprep.subr.mxu0 0.0
    %1024 = vmatpush1.msra.mxu0 0.0
    %1025 = vmatprep.subr.mxu0 0.0
    %1026 = vmatpush1.msra.mxu0 0.0
    %1027 = vmatprep.subr.mxu0 0.0
    %1028 = vmatpush1.msra.mxu0 0.0
    %1029 = vmatprep.subr.mxu0 0.0
    %1030 = vmatpush1.msra.mxu0 0.0
    %1031 = vmatprep.subr.mxu0 0.0
    %1032 = vmatpush1.msra.mxu0 0.0
    %1033 = vmatprep.subr.mxu0 0.0
    %1034 = vmatpush1.msra.mxu0 0.0
    %1035 = vmatprep.subr.mxu0 0.0
    %1036 = vmatpush1.msra.mxu0 0.0
    %1037 = vmatprep.subr.mxu0 0.0
    %1038 = vmatpush1.msra.mxu0 0.0
    %1039 = vmatprep.subr.mxu0 0.0
    %1040 = vmatpush1.msra.mxu0 0.0
    %1041 = vmatprep.subr.mxu0 0.0
    %1042 = vmatpush1.msra.mxu0 0.0
    %1043 = vmatprep.subr.mxu0 0.0
    %1044 = vmatpush1.msra.mxu0 0.0
    %1045 = vmatprep.subr.mxu0 0.0
    %1046 = vmatpush1.msra.mxu0 0.0
    %1047 = vmatprep.subr.mxu0 0.0
    %1048 = vmatpush1.msra.mxu0 0.0
    %1049 = vmatprep.subr.mxu0 0.0
    %1050 = vmatpush1.msra.mxu0 0.0
    %1051 = vmatprep.subr.mxu0 0.0
    %1052 = vmatpush1.msra.mxu0 0.0
    %1053 = vmatprep.subr.mxu0 0.0
    %1054 = vmatpush1.msra.mxu0 0.0
    %1055 = vmatprep.subr.mxu0 0.0
    %1056 = vmatpush1.msra.mxu0 0.0
    %1057 = vmatprep.subr.mxu0 0.0
    %1058 = vmatpush1.msra.mxu0 0.0
    %1059 = vmatprep.subr.mxu0 0.0
    %1060 = vmatpush1.msra.mxu0 0.0
    %1061 = vmatprep.subr.mxu0 0.0
    %1062 = vmatpush1.msra.mxu0 0.0
    %1063 = vmatprep.subr.mxu0 0.0
    %1064 = vmatpush1.msra.mxu0 0.0
    %1065 = vmatprep.subr.mxu0 0.0
    %1066 = vmatpush1.msra.mxu0 0.0
    %1067 = vmatprep.subr.mxu0 0.0
    %1068 = vmatpush1.msra.mxu0 0.0
    %1069 = vmatprep.subr.mxu0 0.0
    %1070 = vmatpush1.msra.mxu0 0.0
    %1071 = vmatprep.subr.mxu0 0.0
    %1072 = vmatpush1.msra.mxu0 0.0
    %1073 = vmatprep.subr.mxu0 0.0
    %1074 = vmatpush1.msra.mxu0 0.0
    %1075 = vmatprep.subr.mxu0 0.0
    %1076 = vmatpush1.msra.mxu0 0.0
    %1077 = vmatprep.subr.mxu0 0.0
    %1078 = vmatpush1.msra.mxu0 0.0
    %1079 = vmatprep.mubr.f32.mxu0 0.0
    %1080 = vmatmul.mubr.f32.gmra.mrb[0].mxu0 %v1010
    %v1081 = vpop.f32.mrb[0].mxu0
    %v1082 = vadd.f32 0.0, %v1081
    %v1083 = vpop.f32.mrb[0].mxu0
    %1084 = vmatprep.mubr.f32.mxu0 0.0
    %1085 = vmatmul.mubr.f32.gmra.mrb[0].mxu0 %v1013
    %v1086 = vpop.f32.mrb[0].mxu0
    %v1087 = vadd.f32 0.0, %v1086
    %v1088 = vpop.f32.mrb[0].mxu0
    %1089 = vdwg.mxu0
    %s1090 = scalar_lea.vmem %s6, 32
    %v1091 = vld [vmem:[%s1090] sm:$0xff]
    %v1092 = vld [vmem:[%s1090 + $0x8] sm:$0xff]
    %v1094 = vsel %vm317, %v1082, 0
    %v1097 = vsel %vm317, %v1087, 0
    %v1100 = vsel %vm317, %v1091, 0
    %v1103 = vsel %vm317, %v1092, 0
    %1105 = vmatprep.subr.mxu0 0.0
    %1106 = vmatpush1.xpose.msra.mxu0 %v1100
    %1107 = vmatprep.subr.mxu0 0.0
    %1108 = vmatpush1.xpose.msra.mxu0 %v1103
    %1109 = vmatprep.subr.mxu0 0.0
    %1110 = vmatpush1.xpose.msra.mxu0 0.0
    %1111 = vmatprep.subr.mxu0 0.0
    %1112 = vmatpush1.xpose.msra.mxu0 0.0
    %1113 = vmatprep.subr.mxu0 0.0
    %1114 = vmatpush1.xpose.msra.mxu0 0.0
    %1115 = vmatprep.subr.mxu0 0.0
    %1116 = vmatpush1.xpose.msra.mxu0 0.0
    %1117 = vmatprep.subr.mxu0 0.0
    %1118 = vmatpush1.xpose.msra.mxu0 0.0
    %1119 = vmatprep.subr.mxu0 0.0
    %1120 = vmatpush1.xpose.msra.mxu0 0.0
    %1121 = vmatprep.subr.mxu0 0.0
    %1122 = vmatpush1.xpose.msra.mxu0 0.0
    %1123 = vmatprep.subr.mxu0 0.0
    %1124 = vmatpush1.xpose.msra.mxu0 0.0
    %1125 = vmatprep.subr.mxu0 0.0
    %1126 = vmatpush1.xpose.msra.mxu0 0.0
    %1127 = vmatprep.subr.mxu0 0.0
    %1128 = vmatpush1.xpose.msra.mxu0 0.0
    %1129 = vmatprep.subr.mxu0 0.0
    %1130 = vmatpush1.xpose.msra.mxu0 0.0
    %1131 = vmatprep.subr.mxu0 0.0
    %1132 = vmatpush1.xpose.msra.mxu0 0.0
    %1133 = vmatprep.subr.mxu0 0.0
    %1134 = vmatpush1.xpose.msra.mxu0 0.0
    %1135 = vmatprep.subr.mxu0 0.0
    %1136 = vmatpush1.xpose.msra.mxu0 0.0
    %1137 = vmatprep.subr.mxu0 0.0
    %1138 = vmatpush1.xpose.msra.mxu0 0.0
    %1139 = vmatprep.subr.mxu0 0.0
    %1140 = vmatpush1.xpose.msra.mxu0 0.0
    %1141 = vmatprep.subr.mxu0 0.0
    %1142 = vmatpush1.xpose.msra.mxu0 0.0
    %1143 = vmatprep.subr.mxu0 0.0
    %1144 = vmatpush1.xpose.msra.mxu0 0.0
    %1145 = vmatprep.subr.mxu0 0.0
    %1146 = vmatpush1.xpose.msra.mxu0 0.0
    %1147 = vmatprep.subr.mxu0 0.0
    %1148 = vmatpush1.xpose.msra.mxu0 0.0
    %1149 = vmatprep.subr.mxu0 0.0
    %1150 = vmatpush1.xpose.msra.mxu0 0.0
    %1151 = vmatprep.subr.mxu0 0.0
    %1152 = vmatpush1.xpose.msra.mxu0 0.0
    %1153 = vmatprep.subr.mxu0 0.0
    %1154 = vmatpush1.xpose.msra.mxu0 0.0
    %1155 = vmatprep.subr.mxu0 0.0
    %1156 = vmatpush1.xpose.msra.mxu0 0.0
    %1157 = vmatprep.subr.mxu0 0.0
    %1158 = vmatpush1.xpose.msra.mxu0 0.0
    %1159 = vmatprep.subr.mxu0 0.0
    %1160 = vmatpush1.xpose.msra.mxu0 0.0
    %1161 = vmatprep.subr.mxu0 0.0
    %1162 = vmatpush1.xpose.msra.mxu0 0.0
    %1163 = vmatprep.subr.mxu0 0.0
    %1164 = vmatpush1.xpose.msra.mxu0 0.0
    %1165 = vmatprep.subr.mxu0 0.0
    %1166 = vmatpush1.xpose.msra.mxu0 0.0
    %1167 = vmatprep.subr.mxu0 0.0
    %1168 = vmatpush1.xpose.msra.mxu0 0.0
    %1169 = vmatprep.mubr.f32.mxu0 0.0
    %1170 = vmatmul.mubr.f32.gmra.mrb[0].mxu0 %v1094
    %v1171 = vpop.f32.mrb[0].mxu0
    %v1172 = vadd.f32 0.0, %v1171
    %v1173 = vpop.f32.mrb[0].mxu0
    %1174 = vmatprep.mubr.f32.mxu0 0.0
    %1175 = vmatmul.mubr.f32.gmra.mrb[0].mxu0 %v1097
    %v1176 = vpop.f32.mrb[0].mxu0
    %v1177 = vadd.f32 0.0, %v1176
    %v1178 = vpop.f32.mrb[0].mxu0
    %1179 = vdwg.mxu0
    %v1180 = vadd.f32 %v882, %v1172
    %v1181 = vadd.f32 %v887, %v1177
    %1182 = vrot.lane.b32.xlu0 %v127, 116
    %v1183 = vpop.permute.xlu0 %1182
    %1184 = vrot.lane.b32.xlu0 %v132, 116
    %v1185 = vpop.permute.xlu0 %1184
    %1186 = vrot.lane.b32.xlu0 %v218, 116
    %v1187 = vpop.permute.xlu0 %1186
    %1188 = vrot.lane.b32.xlu0 %v223, 116
    %v1189 = vpop.permute.xlu0 %1188
    %v1190 = vsel %vm317, %v1183, 0
    %v1192 = vsel %vm317, %v1185, 0
    %v1194 = vsel %vm317, %v1187, 0
    %v1196 = vsel %vm317, %v1189, 0
    %1198 = vmatprep.subr.mxu0 0.0
    %1199 = vmatpush1.xpose.msra.mxu0 %v1194
    %1200 = vmatprep.subr.mxu0 0.0
    %1201 = vmatpush1.xpose.msra.mxu0 %v1196
    %1202 = vmatprep.subr.mxu0 0.0
    %1203 = vmatpush1.xpose.msra.mxu0 0.0
    %1204 = vmatprep.subr.mxu0 0.0
    %1205 = vmatpush1.xpose.msra.mxu0 0.0
    %1206 = vmatprep.subr.mxu0 0.0
    %1207 = vmatpush1.xpose.msra.mxu0 0.0
    %1208 = vmatprep.subr.mxu0 0.0
    %1209 = vmatpush1.xpose.msra.mxu0 0.0
    %1210 = vmatprep.subr.mxu0 0.0
    %1211 = vmatpush1.xpose.msra.mxu0 0.0
    %1212 = vmatprep.subr.mxu0 0.0
    %1213 = vmatpush1.xpose.msra.mxu0 0.0
    %1214 = vmatprep.subr.mxu0 0.0
    %1215 = vmatpush1.xpose.msra.mxu0 0.0
    %1216 = vmatprep.subr.mxu0 0.0
    %1217 = vmatpush1.xpose.msra.mxu0 0.0
    %1218 = vmatprep.subr.mxu0 0.0
    %1219 = vmatpush1.xpose.msra.mxu0 0.0
    %1220 = vmatprep.subr.mxu0 0.0
    %1221 = vmatpush1.xpose.msra.mxu0 0.0
    %1222 = vmatprep.subr.mxu0 0.0
    %1223 = vmatpush1.xpose.msra.mxu0 0.0
    %1224 = vmatprep.subr.mxu0 0.0
    %1225 = vmatpush1.xpose.msra.mxu0 0.0
    %1226 = vmatprep.subr.mxu0 0.0
    %1227 = vmatpush1.xpose.msra.mxu0 0.0
    %1228 = vmatprep.subr.mxu0 0.0
    %1229 = vmatpush1.xpose.msra.mxu0 0.0
    %1230 = vmatprep.subr.mxu0 0.0
    %1231 = vmatpush1.xpose.msra.mxu0 0.0
    %1232 = vmatprep.subr.mxu0 0.0
    %1233 = vmatpush1.xpose.msra.mxu0 0.0
    %1234 = vmatprep.subr.mxu0 0.0
    %1235 = vmatpush1.xpose.msra.mxu0 0.0
    %1236 = vmatprep.subr.mxu0 0.0
    %1237 = vmatpush1.xpose.msra.mxu0 0.0
    %1238 = vmatprep.subr.mxu0 0.0
    %1239 = vmatpush1.xpose.msra.mxu0 0.0
    %1240 = vmatprep.subr.mxu0 0.0
    %1241 = vmatpush1.xpose.msra.mxu0 0.0
    %1242 = vmatprep.subr.mxu0 0.0
    %1243 = vmatpush1.xpose.msra.mxu0 0.0
    %1244 = vmatprep.subr.mxu0 0.0
    %1245 = vmatpush1.xpose.msra.mxu0 0.0
    %1246 = vmatprep.subr.mxu0 0.0
    %1247 = vmatpush1.xpose.msra.mxu0 0.0
    %1248 = vmatprep.subr.mxu0 0.0
    %1249 = vmatpush1.xpose.msra.mxu0 0.0
    %1250 = vmatprep.subr.mxu0 0.0
    %1251 = vmatpush1.xpose.msra.mxu0 0.0
    %1252 = vmatprep.subr.mxu0 0.0
    %1253 = vmatpush1.xpose.msra.mxu0 0.0
    %1254 = vmatprep.subr.mxu0 0.0
    %1255 = vmatpush1.xpose.msra.mxu0 0.0
    %1256 = vmatprep.subr.mxu0 0.0
    %1257 = vmatpush1.xpose.msra.mxu0 0.0
    %1258 = vmatprep.subr.mxu0 0.0
    %1259 = vmatpush1.xpose.msra.mxu0 0.0
    %1260 = vmatprep.subr.mxu0 0.0
    %1261 = vmatpush1.xpose.msra.mxu0 0.0
    %1262 = vmatprep.mubr.f32.mxu0 0.0
    %1263 = vmatmul.mubr.f32.gmra.mrb[0].mxu0 %v1190
    %v1264 = vpop.f32.mrb[0].mxu0
    %v1265 = vadd.f32 0.0, %v1264
    %v1266 = vpop.f32.mrb[0].mxu0
    %1267 = vmatprep.mubr.f32.mxu0 0.0
    %1268 = vmatmul.mubr.f32.gmra.mrb[0].mxu0 %v1192
    %v1269 = vpop.f32.mrb[0].mxu0
    %v1270 = vadd.f32 0.0, %v1269
    %v1271 = vpop.f32.mrb[0].mxu0
    %1272 = vdwg.mxu0
    %v1273 = vsel %vm405, %v1265, -inf
    %1274 = vmax.xlane.f32.xlu0 %v1273
    %v1275 = vpop.xlane.xlu0 %1274
    %v1276 = vsel %vm405, %v1270, -inf
    %1277 = vmax.xlane.f32.xlu0 %v1276
    %v1278 = vpop.xlane.xlu0 %1277
    %v1279 = vsub.f32 %v1265, %v1275
    %v1280 = vsub.f32 %v1270, %v1278
    %v1281 = vmul.f32 %v1279, 1.442695
    %v1282 = vpow.pop %v1281
    %v1283 = vmul.f32 %v1280, 1.442695
    %v1284 = vpow.pop %v1283
    %v1285 = vsel %vm405, %v1282, 0.0
    %1286 = vadd.xlane.f32.xlu0 %v1285
    %v1287 = vpop.xlane.xlu0 %1286
    %v1288 = vsel %vm405, %v1284, 0.0
    %1289 = vadd.xlane.f32.xlu0 %v1288
    %v1290 = vpop.xlane.xlu0 %1289
    %v1291 = vrcp.pop %v1287
    %v1292 = vrcp.pop %v1290
    %v1293 = vmul.f32 %v1282, %v1291
    %v1294 = vmul.f32 %v1284, %v1292
    %1295 = vrot.lane.b32.xlu0 %v309, 116
    %v1296 = vpop.permute.xlu0 %1295
    %1297 = vrot.lane.b32.xlu0 %v314, 116
    %v1298 = vpop.permute.xlu0 %1297
    %v1302 = vsel %vm405, %v1293, 0
    %v1305 = vsel %vm405, %v1294, 0
    %1307 = vmatprep.subr.mxu0 0.0
    %1308 = vmatpush1.msra.mxu0 %v1296
    %1309 = vmatprep.subr.mxu0 0.0
    %1310 = vmatpush1.msra.mxu0 %v1298
    %1311 = vmatprep.subr.mxu0 0.0
    %1312 = vmatpush1.msra.mxu0 0.0
    %1313 = vmatprep.subr.mxu0 0.0
    %1314 = vmatpush1.msra.mxu0 0.0
    %1315 = vmatprep.subr.mxu0 0.0
    %1316 = vmatpush1.msra.mxu0 0.0
    %1317 = vmatprep.subr.mxu0 0.0
    %1318 = vmatpush1.msra.mxu0 0.0
    %1319 = vmatprep.subr.mxu0 0.0
    %1320 = vmatpush1.msra.mxu0 0.0
    %1321 = vmatprep.subr.mxu0 0.0
    %1322 = vmatpush1.msra.mxu0 0.0
    %1323 = vmatprep.subr.mxu0 0.0
    %1324 = vmatpush1.msra.mxu0 0.0
    %1325 = vmatprep.subr.mxu0 0.0
    %1326 = vmatpush1.msra.mxu0 0.0
    %1327 = vmatprep.subr.mxu0 0.0
    %1328 = vmatpush1.msra.mxu0 0.0
    %1329 = vmatprep.subr.mxu0 0.0
    %1330 = vmatpush1.msra.mxu0 0.0
    %1331 = vmatprep.subr.mxu0 0.0
    %1332 = vmatpush1.msra.mxu0 0.0
    %1333 = vmatprep.subr.mxu0 0.0
    %1334 = vmatpush1.msra.mxu0 0.0
    %1335 = vmatprep.subr.mxu0 0.0
    %1336 = vmatpush1.msra.mxu0 0.0
    %1337 = vmatprep.subr.mxu0 0.0
    %1338 = vmatpush1.msra.mxu0 0.0
    %1339 = vmatprep.subr.mxu0 0.0
    %1340 = vmatpush1.msra.mxu0 0.0
    %1341 = vmatprep.subr.mxu0 0.0
    %1342 = vmatpush1.msra.mxu0 0.0
    %1343 = vmatprep.subr.mxu0 0.0
    %1344 = vmatpush1.msra.mxu0 0.0
    %1345 = vmatprep.subr.mxu0 0.0
    %1346 = vmatpush1.msra.mxu0 0.0
    %1347 = vmatprep.subr.mxu0 0.0
    %1348 = vmatpush1.msra.mxu0 0.0
    %1349 = vmatprep.subr.mxu0 0.0
    %1350 = vmatpush1.msra.mxu0 0.0
    %1351 = vmatprep.subr.mxu0 0.0
    %1352 = vmatpush1.msra.mxu0 0.0
    %1353 = vmatprep.subr.mxu0 0.0
    %1354 = vmatpush1.msra.mxu0 0.0
    %1355 = vmatprep.subr.mxu0 0.0
    %1356 = vmatpush1.msra.mxu0 0.0
    %1357 = vmatprep.subr.mxu0 0.0
    %1358 = vmatpush1.msra.mxu0 0.0
    %1359 = vmatprep.subr.mxu0 0.0
    %1360 = vmatpush1.msra.mxu0 0.0
    %1361 = vmatprep.subr.mxu0 0.0
    %1362 = vmatpush1.msra.mxu0 0.0
    %1363 = vmatprep.subr.mxu0 0.0
    %1364 = vmatpush1.msra.mxu0 0.0
    %1365 = vmatprep.subr.mxu0 0.0
    %1366 = vmatpush1.msra.mxu0 0.0
    %1367 = vmatprep.subr.mxu0 0.0
    %1368 = vmatpush1.msra.mxu0 0.0
    %1369 = vmatprep.subr.mxu0 0.0
    %1370 = vmatpush1.msra.mxu0 0.0
    %1371 = vmatprep.mubr.f32.mxu0 0.0
    %1372 = vmatmul.mubr.f32.gmra.mrb[0].mxu0 %v1302
    %v1373 = vpop.f32.mrb[0].mxu0
    %v1374 = vadd.f32 0.0, %v1373
    %v1375 = vpop.f32.mrb[0].mxu0
    %1376 = vmatprep.mubr.f32.mxu0 0.0
    %1377 = vmatmul.mubr.f32.gmra.mrb[0].mxu0 %v1305
    %v1378 = vpop.f32.mrb[0].mxu0
    %v1379 = vadd.f32 0.0, %v1378
    %v1380 = vpop.f32.mrb[0].mxu0
    %1381 = vdwg.mxu0
    %s1382 = scalar_lea.vmem %s6, 48
    %v1383 = vld [vmem:[%s1382] sm:$0xff]
    %v1384 = vld [vmem:[%s1382 + $0x8] sm:$0xff]
    %v1386 = vsel %vm317, %v1374, 0
    %v1389 = vsel %vm317, %v1379, 0
    %v1392 = vsel %vm317, %v1383, 0
    %v1395 = vsel %vm317, %v1384, 0
    %1397 = vmatprep.subr.mxu0 0.0
    %1398 = vmatpush1.xpose.msra.mxu0 %v1392
    %1399 = vmatprep.subr.mxu0 0.0
    %1400 = vmatpush1.xpose.msra.mxu0 %v1395
    %1401 = vmatprep.subr.mxu0 0.0
    %1402 = vmatpush1.xpose.msra.mxu0 0.0
    %1403 = vmatprep.subr.mxu0 0.0
    %1404 = vmatpush1.xpose.msra.mxu0 0.0
    %1405 = vmatprep.subr.mxu0 0.0
    %1406 = vmatpush1.xpose.msra.mxu0 0.0
    %1407 = vmatprep.subr.mxu0 0.0
    %1408 = vmatpush1.xpose.msra.mxu0 0.0
    %1409 = vmatprep.subr.mxu0 0.0
    %1410 = vmatpush1.xpose.msra.mxu0 0.0
    %1411 = vmatprep.subr.mxu0 0.0
    %1412 = vmatpush1.xpose.msra.mxu0 0.0
    %1413 = vmatprep.subr.mxu0 0.0
    %1414 = vmatpush1.xpose.msra.mxu0 0.0
    %1415 = vmatprep.subr.mxu0 0.0
    %1416 = vmatpush1.xpose.msra.mxu0 0.0
    %1417 = vmatprep.subr.mxu0 0.0
    %1418 = vmatpush1.xpose.msra.mxu0 0.0
    %1419 = vmatprep.subr.mxu0 0.0
    %1420 = vmatpush1.xpose.msra.mxu0 0.0
    %1421 = vmatprep.subr.mxu0 0.0
    %1422 = vmatpush1.xpose.msra.mxu0 0.0
    %1423 = vmatprep.subr.mxu0 0.0
    %1424 = vmatpush1.xpose.msra.mxu0 0.0
    %1425 = vmatprep.subr.mxu0 0.0
    %1426 = vmatpush1.xpose.msra.mxu0 0.0
    %1427 = vmatprep.subr.mxu0 0.0
    %1428 = vmatpush1.xpose.msra.mxu0 0.0
    %1429 = vmatprep.subr.mxu0 0.0
    %1430 = vmatpush1.xpose.msra.mxu0 0.0
    %1431 = vmatprep.subr.mxu0 0.0
    %1432 = vmatpush1.xpose.msra.mxu0 0.0
    %1433 = vmatprep.subr.mxu0 0.0
    %1434 = vmatpush1.xpose.msra.mxu0 0.0
    %1435 = vmatprep.subr.mxu0 0.0
    %1436 = vmatpush1.xpose.msra.mxu0 0.0
    %1437 = vmatprep.subr.mxu0 0.0
    %1438 = vmatpush1.xpose.msra.mxu0 0.0
    %1439 = vmatprep.subr.mxu0 0.0
    %1440 = vmatpush1.xpose.msra.mxu0 0.0
    %1441 = vmatprep.subr.mxu0 0.0
    %1442 = vmatpush1.xpose.msra.mxu0 0.0
    %1443 = vmatprep.subr.mxu0 0.0
    %1444 = vmatpush1.xpose.msra.mxu0 0.0
    %1445 = vmatprep.subr.mxu0 0.0
    %1446 = vmatpush1.xpose.msra.mxu0 0.0
    %1447 = vmatprep.subr.mxu0 0.0
    %1448 = vmatpush1.xpose.msra.mxu0 0.0
    %1449 = vmatprep.subr.mxu0 0.0
    %1450 = vmatpush1.xpose.msra.mxu0 0.0
    %1451 = vmatprep.subr.mxu0 0.0
    %1452 = vmatpush1.xpose.msra.mxu0 0.0
    %1453 = vmatprep.subr.mxu0 0.0
    %1454 = vmatpush1.xpose.msra.mxu0 0.0
    %1455 = vmatprep.subr.mxu0 0.0
    %1456 = vmatpush1.xpose.msra.mxu0 0.0
    %1457 = vmatprep.subr.mxu0 0.0
    %1458 = vmatpush1.xpose.msra.mxu0 0.0
    %1459 = vmatprep.subr.mxu0 0.0
    %1460 = vmatpush1.xpose.msra.mxu0 0.0
    %1461 = vmatprep.mubr.f32.mxu0 0.0
    %1462 = vmatmul.mubr.f32.gmra.mrb[0].mxu0 %v1386
    %v1463 = vpop.f32.mrb[0].mxu0
    %v1464 = vadd.f32 0.0, %v1463
    %v1465 = vpop.f32.mrb[0].mxu0
    %1466 = vmatprep.mubr.f32.mxu0 0.0
    %1467 = vmatmul.mubr.f32.gmra.mrb[0].mxu0 %v1389
    %v1468 = vpop.f32.mrb[0].mxu0
    %v1469 = vadd.f32 0.0, %v1468
    %v1470 = vpop.f32.mrb[0].mxu0
    %1471 = vdwg.mxu0
    %v1472 = vadd.f32 %v1180, %v1464
    %v1473 = vadd.f32 %v1181, %v1469
    %v1475 = vlaneseq
    %v1476 = vshrl.u32 %v1475, 7
    %v1477 = vsub.s32 0, %v1476
    %v1478 = vrot.slane %v42, %v1477
    %v1480 = vadd.f32 %v1472, %v1478
    %v1481 = vadd.f32 %v1473, %v1478
    %1482 = vst.msk [vmem:[#allocation2] sm:$0xff] %vm405, %v1480
    %1483 = vst.msk [vmem:[#allocation2 + $0x8] sm:$0xff] %vm405, %v1481
    %s1484 = scalar_lea.vmem %s0, 32
    %v1485 = vld [vmem:[%s1484] sm:$0xff]
    %v1486 = vld [vmem:[%s1484 + $0x8] sm:$0xff]
    %v1487 = vld [vmem:[%s1484 + $0x10] sm:$0xff]
    %v1488 = vld [vmem:[%s1484 + $0x18] sm:$0xff]
    %v1490 = vsel %vm47, %v1486, 0
    %v1493 = vsel %vm47, %v1488, 0
    %1495 = vmatprep.subr.mxu0 %v1490
    %1496 = vmatpush1.xpose.msra.mxu0 %v1485
    %1497 = vmatprep.subr.mxu0 %v1493
    %1498 = vmatpush1.xpose.msra.mxu0 %v1487
    %1499 = vmatprep.subr.mxu0 0.0
    %1500 = vmatpush1.xpose.msra.mxu0 0.0
    %1501 = vmatprep.subr.mxu0 0.0
    %1502 = vmatpush1.xpose.msra.mxu0 0.0
    %1503 = vmatprep.subr.mxu0 0.0
    %1504 = vmatpush1.xpose.msra.mxu0 0.0
    %1505 = vmatprep.subr.mxu0 0.0
    %1506 = vmatpush1.xpose.msra.mxu0 0.0
    %1507 = vmatprep.subr.mxu0 0.0
    %1508 = vmatpush1.xpose.msra.mxu0 0.0
    %1509 = vmatprep.subr.mxu0 0.0
    %1510 = vmatpush1.xpose.msra.mxu0 0.0
    %1511 = vmatprep.subr.mxu0 0.0
    %1512 = vmatpush1.xpose.msra.mxu0 0.0
    %1513 = vmatprep.subr.mxu0 0.0
    %1514 = vmatpush1.xpose.msra.mxu0 0.0
    %1515 = vmatprep.subr.mxu0 0.0
    %1516 = vmatpush1.xpose.msra.mxu0 0.0
    %1517 = vmatprep.subr.mxu0 0.0
    %1518 = vmatpush1.xpose.msra.mxu0 0.0
    %1519 = vmatprep.subr.mxu0 0.0
    %1520 = vmatpush1.xpose.msra.mxu0 0.0
    %1521 = vmatprep.subr.mxu0 0.0
    %1522 = vmatpush1.xpose.msra.mxu0 0.0
    %1523 = vmatprep.subr.mxu0 0.0
    %1524 = vmatpush1.xpose.msra.mxu0 0.0
    %1525 = vmatprep.subr.mxu0 0.0
    %1526 = vmatpush1.xpose.msra.mxu0 0.0
    %1527 = vmatprep.subr.mxu0 0.0
    %1528 = vmatpush1.xpose.msra.mxu0 0.0
    %1529 = vmatprep.subr.mxu0 0.0
    %1530 = vmatpush1.xpose.msra.mxu0 0.0
    %1531 = vmatprep.subr.mxu0 0.0
    %1532 = vmatpush1.xpose.msra.mxu0 0.0
    %1533 = vmatprep.subr.mxu0 0.0
    %1534 = vmatpush1.xpose.msra.mxu0 0.0
    %1535 = vmatprep.subr.mxu0 0.0
    %1536 = vmatpush1.xpose.msra.mxu0 0.0
    %1537 = vmatprep.subr.mxu0 0.0
    %1538 = vmatpush1.xpose.msra.mxu0 0.0
    %1539 = vmatprep.subr.mxu0 0.0
    %1540 = vmatpush1.xpose.msra.mxu0 0.0
    %1541 = vmatprep.subr.mxu0 0.0
    %1542 = vmatpush1.xpose.msra.mxu0 0.0
    %1543 = vmatprep.subr.mxu0 0.0
    %1544 = vmatpush1.xpose.msra.mxu0 0.0
    %1545 = vmatprep.subr.mxu0 0.0
    %1546 = vmatpush1.xpose.msra.mxu0 0.0
    %1547 = vmatprep.subr.mxu0 0.0
    %1548 = vmatpush1.xpose.msra.mxu0 0.0
    %1549 = vmatprep.subr.mxu0 0.0
    %1550 = vmatpush1.xpose.msra.mxu0 0.0
    %1551 = vmatprep.subr.mxu0 0.0
    %1552 = vmatpush1.xpose.msra.mxu0 0.0
    %1553 = vmatprep.subr.mxu0 0.0
    %1554 = vmatpush1.xpose.msra.mxu0 0.0
    %1555 = vmatprep.subr.mxu0 0.0
    %1556 = vmatpush1.xpose.msra.mxu0 0.0
    %1557 = vmatprep.subr.mxu0 0.0
    %1558 = vmatpush1.xpose.msra.mxu0 0.0
    %1559 = vmatprep.mubr.f32.mxu0 %v49
    %1560 = vmatmul.mubr.f32.gmra.mrb[0].mxu0 %v30
    %v1561 = vpop.f32.mrb[0].mxu0
    %v1562 = vadd.f32 0.0, %v1561
    %v1563 = vpop.f32.mrb[0].mxu0
    %1564 = vmatprep.mubr.f32.mxu0 %v52
    %1565 = vmatmul.mubr.f32.gmra.mrb[0].mxu0 %v32
    %v1566 = vpop.f32.mrb[0].mxu0
    %v1567 = vadd.f32 0.0, %v1566
    %v1568 = vpop.f32.mrb[0].mxu0
    %1569 = vdwg.mxu0
    %s1570 = scalar_lea.vmem %s1, 32
    %v1571 = vld [vmem:[%s1570] sm:$0xff]
    %v1572 = vld [vmem:[%s1570 + $0x8] sm:$0xff]
    %v1573 = vld [vmem:[%s1570 + $0x10] sm:$0xff]
    %v1574 = vld [vmem:[%s1570 + $0x18] sm:$0xff]
    %v1576 = vsel %vm47, %v1572, 0
    %v1579 = vsel %vm47, %v1574, 0
    %1581 = vmatprep.subr.mxu0 %v1576
    %1582 = vmatpush1.xpose.msra.mxu0 %v1571
    %1583 = vmatprep.subr.mxu0 %v1579
    %1584 = vmatpush1.xpose.msra.mxu0 %v1573
    %1585 = vmatprep.subr.mxu0 0.0
    %1586 = vmatpush1.xpose.msra.mxu0 0.0
    %1587 = vmatprep.subr.mxu0 0.0
    %1588 = vmatpush1.xpose.msra.mxu0 0.0
    %1589 = vmatprep.subr.mxu0 0.0
    %1590 = vmatpush1.xpose.msra.mxu0 0.0
    %1591 = vmatprep.subr.mxu0 0.0
    %1592 = vmatpush1.xpose.msra.mxu0 0.0
    %1593 = vmatprep.subr.mxu0 0.0
    %1594 = vmatpush1.xpose.msra.mxu0 0.0
    %1595 = vmatprep.subr.mxu0 0.0
    %1596 = vmatpush1.xpose.msra.mxu0 0.0
    %1597 = vmatprep.subr.mxu0 0.0
    %1598 = vmatpush1.xpose.msra.mxu0 0.0
    %1599 = vmatprep.subr.mxu0 0.0
    %1600 = vmatpush1.xpose.msra.mxu0 0.0
    %1601 = vmatprep.subr.mxu0 0.0
    %1602 = vmatpush1.xpose.msra.mxu0 0.0
    %1603 = vmatprep.subr.mxu0 0.0
    %1604 = vmatpush1.xpose.msra.mxu0 0.0
    %1605 = vmatprep.subr.mxu0 0.0
    %1606 = vmatpush1.xpose.msra.mxu0 0.0
    %1607 = vmatprep.subr.mxu0 0.0
    %1608 = vmatpush1.xpose.msra.mxu0 0.0
    %1609 = vmatprep.subr.mxu0 0.0
    %1610 = vmatpush1.xpose.msra.mxu0 0.0
    %1611 = vmatprep.subr.mxu0 0.0
    %1612 = vmatpush1.xpose.msra.mxu0 0.0
    %1613 = vmatprep.subr.mxu0 0.0
    %1614 = vmatpush1.xpose.msra.mxu0 0.0
    %1615 = vmatprep.subr.mxu0 0.0
    %1616 = vmatpush1.xpose.msra.mxu0 0.0
    %1617 = vmatprep.subr.mxu0 0.0
    %1618 = vmatpush1.xpose.msra.mxu0 0.0
    %1619 = vmatprep.subr.mxu0 0.0
    %1620 = vmatpush1.xpose.msra.mxu0 0.0
    %1621 = vmatprep.subr.mxu0 0.0
    %1622 = vmatpush1.xpose.msra.mxu0 0.0
    %1623 = vmatprep.subr.mxu0 0.0
    %1624 = vmatpush1.xpose.msra.mxu0 0.0
    %1625 = vmatprep.subr.mxu0 0.0
    %1626 = vmatpush1.xpose.msra.mxu0 0.0
    %1627 = vmatprep.subr.mxu0 0.0
    %1628 = vmatpush1.xpose.msra.mxu0 0.0
    %1629 = vmatprep.subr.mxu0 0.0
    %1630 = vmatpush1.xpose.msra.mxu0 0.0
    %1631 = vmatprep.subr.mxu0 0.0
    %1632 = vmatpush1.xpose.msra.mxu0 0.0
    %1633 = vmatprep.subr.mxu0 0.0
    %1634 = vmatpush1.xpose.msra.mxu0 0.0
    %1635 = vmatprep.subr.mxu0 0.0
    %1636 = vmatpush1.xpose.msra.mxu0 0.0
    %1637 = vmatprep.subr.mxu0 0.0
    %1638 = vmatpush1.xpose.msra.mxu0 0.0
    %1639 = vmatprep.subr.mxu0 0.0
    %1640 = vmatpush1.xpose.msra.mxu0 0.0
    %1641 = vmatprep.subr.mxu0 0.0
    %1642 = vmatpush1.xpose.msra.mxu0 0.0
    %1643 = vmatprep.subr.mxu0 0.0
    %1644 = vmatpush1.xpose.msra.mxu0 0.0
    %1645 = vmatprep.mubr.f32.mxu0 %v140
    %1646 = vmatmul.mubr.f32.gmra.mrb[0].mxu0 %v34
    %v1647 = vpop.f32.mrb[0].mxu0
    %v1648 = vadd.f32 0.0, %v1647
    %v1649 = vpop.f32.mrb[0].mxu0
    %1650 = vmatprep.mubr.f32.mxu0 %v143
    %1651 = vmatmul.mubr.f32.gmra.mrb[0].mxu0 %v36
    %v1652 = vpop.f32.mrb[0].mxu0
    %v1653 = vadd.f32 0.0, %v1652
    %v1654 = vpop.f32.mrb[0].mxu0
    %1655 = vdwg.mxu0
    %s1656 = scalar_lea.vmem %s2, 32
    %v1657 = vld [vmem:[%s1656] sm:$0xff]
    %v1658 = vld [vmem:[%s1656 + $0x8] sm:$0xff]
    %v1659 = vld [vmem:[%s1656 + $0x10] sm:$0xff]
    %v1660 = vld [vmem:[%s1656 + $0x18] sm:$0xff]
    %v1662 = vsel %vm47, %v1658, 0
    %v1665 = vsel %vm47, %v1660, 0
    %1667 = vmatprep.subr.mxu0 %v1662
    %1668 = vmatpush1.xpose.msra.mxu0 %v1657
    %1669 = vmatprep.subr.mxu0 %v1665
    %1670 = vmatpush1.xpose.msra.mxu0 %v1659
    %1671 = vmatprep.subr.mxu0 0.0
    %1672 = vmatpush1.xpose.msra.mxu0 0.0
    %1673 = vmatprep.subr.mxu0 0.0
    %1674 = vmatpush1.xpose.msra.mxu0 0.0
    %1675 = vmatprep.subr.mxu0 0.0
    %1676 = vmatpush1.xpose.msra.mxu0 0.0
    %1677 = vmatprep.subr.mxu0 0.0
    %1678 = vmatpush1.xpose.msra.mxu0 0.0
    %1679 = vmatprep.subr.mxu0 0.0
    %1680 = vmatpush1.xpose.msra.mxu0 0.0
    %1681 = vmatprep.subr.mxu0 0.0
    %1682 = vmatpush1.xpose.msra.mxu0 0.0
    %1683 = vmatprep.subr.mxu0 0.0
    %1684 = vmatpush1.xpose.msra.mxu0 0.0
    %1685 = vmatprep.subr.mxu0 0.0
    %1686 = vmatpush1.xpose.msra.mxu0 0.0
    %1687 = vmatprep.subr.mxu0 0.0
    %1688 = vmatpush1.xpose.msra.mxu0 0.0
    %1689 = vmatprep.subr.mxu0 0.0
    %1690 = vmatpush1.xpose.msra.mxu0 0.0
    %1691 = vmatprep.subr.mxu0 0.0
    %1692 = vmatpush1.xpose.msra.mxu0 0.0
    %1693 = vmatprep.subr.mxu0 0.0
    %1694 = vmatpush1.xpose.msra.mxu0 0.0
    %1695 = vmatprep.subr.mxu0 0.0
    %1696 = vmatpush1.xpose.msra.mxu0 0.0
    %1697 = vmatprep.subr.mxu0 0.0
    %1698 = vmatpush1.xpose.msra.mxu0 0.0
    %1699 = vmatprep.subr.mxu0 0.0
    %1700 = vmatpush1.xpose.msra.mxu0 0.0
    %1701 = vmatprep.subr.mxu0 0.0
    %1702 = vmatpush1.xpose.msra.mxu0 0.0
    %1703 = vmatprep.subr.mxu0 0.0
    %1704 = vmatpush1.xpose.msra.mxu0 0.0
    %1705 = vmatprep.subr.mxu0 0.0
    %1706 = vmatpush1.xpose.msra.mxu0 0.0
    %1707 = vmatprep.subr.mxu0 0.0
    %1708 = vmatpush1.xpose.msra.mxu0 0.0
    %1709 = vmatprep.subr.mxu0 0.0
    %1710 = vmatpush1.xpose.msra.mxu0 0.0
    %1711 = vmatprep.subr.mxu0 0.0
    %1712 = vmatpush1.xpose.msra.mxu0 0.0
    %1713 = vmatprep.subr.mxu0 0.0
    %1714 = vmatpush1.xpose.msra.mxu0 0.0
    %1715 = vmatprep.subr.mxu0 0.0
    %1716 = vmatpush1.xpose.msra.mxu0 0.0
    %1717 = vmatprep.subr.mxu0 0.0
    %1718 = vmatpush1.xpose.msra.mxu0 0.0
    %1719 = vmatprep.subr.mxu0 0.0
    %1720 = vmatpush1.xpose.msra.mxu0 0.0
    %1721 = vmatprep.subr.mxu0 0.0
    %1722 = vmatpush1.xpose.msra.mxu0 0.0
    %1723 = vmatprep.subr.mxu0 0.0
    %1724 = vmatpush1.xpose.msra.mxu0 0.0
    %1725 = vmatprep.subr.mxu0 0.0
    %1726 = vmatpush1.xpose.msra.mxu0 0.0
    %1727 = vmatprep.subr.mxu0 0.0
    %1728 = vmatpush1.xpose.msra.mxu0 0.0
    %1729 = vmatprep.subr.mxu0 0.0
    %1730 = vmatpush1.xpose.msra.mxu0 0.0
    %1731 = vmatprep.mubr.f32.mxu0 %v231
    %1732 = vmatmul.mubr.f32.gmra.mrb[0].mxu0 %v38
    %v1733 = vpop.f32.mrb[0].mxu0
    %v1734 = vadd.f32 0.0, %v1733
    %v1735 = vpop.f32.mrb[0].mxu0
    %1736 = vmatprep.mubr.f32.mxu0 %v234
    %1737 = vmatmul.mubr.f32.gmra.mrb[0].mxu0 %v40
    %v1738 = vpop.f32.mrb[0].mxu0
    %v1739 = vadd.f32 0.0, %v1738
    %v1740 = vpop.f32.mrb[0].mxu0
    %1741 = vdwg.mxu0
    %v1743 = vsel %vm317, %v1562, 0
    %v1746 = vsel %vm317, %v1567, 0
    %v1749 = vsel %vm317, %v1648, 0
    %v1752 = vsel %vm317, %v1653, 0
    %1754 = vmatprep.subr.mxu0 0.0
    %1755 = vmatpush1.xpose.msra.mxu0 %v1749
    %1756 = vmatprep.subr.mxu0 0.0
    %1757 = vmatpush1.xpose.msra.mxu0 %v1752
    %1758 = vmatprep.subr.mxu0 0.0
    %1759 = vmatpush1.xpose.msra.mxu0 0.0
    %1760 = vmatprep.subr.mxu0 0.0
    %1761 = vmatpush1.xpose.msra.mxu0 0.0
    %1762 = vmatprep.subr.mxu0 0.0
    %1763 = vmatpush1.xpose.msra.mxu0 0.0
    %1764 = vmatprep.subr.mxu0 0.0
    %1765 = vmatpush1.xpose.msra.mxu0 0.0
    %1766 = vmatprep.subr.mxu0 0.0
    %1767 = vmatpush1.xpose.msra.mxu0 0.0
    %1768 = vmatprep.subr.mxu0 0.0
    %1769 = vmatpush1.xpose.msra.mxu0 0.0
    %1770 = vmatprep.subr.mxu0 0.0
    %1771 = vmatpush1.xpose.msra.mxu0 0.0
    %1772 = vmatprep.subr.mxu0 0.0
    %1773 = vmatpush1.xpose.msra.mxu0 0.0
    %1774 = vmatprep.subr.mxu0 0.0
    %1775 = vmatpush1.xpose.msra.mxu0 0.0
    %1776 = vmatprep.subr.mxu0 0.0
    %1777 = vmatpush1.xpose.msra.mxu0 0.0
    %1778 = vmatprep.subr.mxu0 0.0
    %1779 = vmatpush1.xpose.msra.mxu0 0.0
    %1780 = vmatprep.subr.mxu0 0.0
    %1781 = vmatpush1.xpose.msra.mxu0 0.0
    %1782 = vmatprep.subr.mxu0 0.0
    %1783 = vmatpush1.xpose.msra.mxu0 0.0
    %1784 = vmatprep.subr.mxu0 0.0
    %1785 = vmatpush1.xpose.msra.mxu0 0.0
    %1786 = vmatprep.subr.mxu0 0.0
    %1787 = vmatpush1.xpose.msra.mxu0 0.0
    %1788 = vmatprep.subr.mxu0 0.0
    %1789 = vmatpush1.xpose.msra.mxu0 0.0
    %1790 = vmatprep.subr.mxu0 0.0
    %1791 = vmatpush1.xpose.msra.mxu0 0.0
    %1792 = vmatprep.subr.mxu0 0.0
    %1793 = vmatpush1.xpose.msra.mxu0 0.0
    %1794 = vmatprep.subr.mxu0 0.0
    %1795 = vmatpush1.xpose.msra.mxu0 0.0
    %1796 = vmatprep.subr.mxu0 0.0
    %1797 = vmatpush1.xpose.msra.mxu0 0.0
    %1798 = vmatprep.subr.mxu0 0.0
    %1799 = vmatpush1.xpose.msra.mxu0 0.0
    %1800 = vmatprep.subr.mxu0 0.0
    %1801 = vmatpush1.xpose.msra.mxu0 0.0
    %1802 = vmatprep.subr.mxu0 0.0
    %1803 = vmatpush1.xpose.msra.mxu0 0.0
    %1804 = vmatprep.subr.mxu0 0.0
    %1805 = vmatpush1.xpose.msra.mxu0 0.0
    %1806 = vmatprep.subr.mxu0 0.0
    %1807 = vmatpush1.xpose.msra.mxu0 0.0
    %1808 = vmatprep.subr.mxu0 0.0
    %1809 = vmatpush1.xpose.msra.mxu0 0.0
    %1810 = vmatprep.subr.mxu0 0.0
    %1811 = vmatpush1.xpose.msra.mxu0 0.0
    %1812 = vmatprep.subr.mxu0 0.0
    %1813 = vmatpush1.xpose.msra.mxu0 0.0
    %1814 = vmatprep.subr.mxu0 0.0
    %1815 = vmatpush1.xpose.msra.mxu0 0.0
    %1816 = vmatprep.subr.mxu0 0.0
    %1817 = vmatpush1.xpose.msra.mxu0 0.0
    %1818 = vmatprep.mubr.f32.mxu0 0.0
    %1819 = vmatmul.mubr.f32.gmra.mrb[0].mxu0 %v1743
    %v1820 = vpop.f32.mrb[0].mxu0
    %v1821 = vadd.f32 0.0, %v1820
    %v1822 = vpop.f32.mrb[0].mxu0
    %1823 = vmatprep.mubr.f32.mxu0 0.0
    %1824 = vmatmul.mubr.f32.gmra.mrb[0].mxu0 %v1746
    %v1825 = vpop.f32.mrb[0].mxu0
    %v1826 = vadd.f32 0.0, %v1825
    %v1827 = vpop.f32.mrb[0].mxu0
    %1828 = vdwg.mxu0
    %v1829 = vsel %vm405, %v1821, -inf
    %1830 = vmax.xlane.f32.xlu0 %v1829
    %v1831 = vpop.xlane.xlu0 %1830
    %v1832 = vsel %vm405, %v1826, -inf
    %1833 = vmax.xlane.f32.xlu0 %v1832
    %v1834 = vpop.xlane.xlu0 %1833
    %v1835 = vsub.f32 %v1821, %v1831
    %v1836 = vsub.f32 %v1826, %v1834
    %v1837 = vmul.f32 %v1835, 1.442695
    %v1838 = vpow.pop %v1837
    %v1839 = vmul.f32 %v1836, 1.442695
    %v1840 = vpow.pop %v1839
    %v1841 = vsel %vm405, %v1838, 0.0
    %1842 = vadd.xlane.f32.xlu0 %v1841
    %v1843 = vpop.xlane.xlu0 %1842
    %v1844 = vsel %vm405, %v1840, 0.0
    %1845 = vadd.xlane.f32.xlu0 %v1844
    %v1846 = vpop.xlane.xlu0 %1845
    %v1847 = vrcp.pop %v1843
    %v1848 = vrcp.pop %v1846
    %v1849 = vmul.f32 %v1838, %v1847
    %v1850 = vmul.f32 %v1840, %v1848
    %v1852 = vsel %vm405, %v1849, 0
    %v1855 = vsel %vm405, %v1850, 0
    %1857 = vmatprep.subr.mxu0 0.0
    %1858 = vmatpush1.msra.mxu0 %v1734
    %1859 = vmatprep.subr.mxu0 0.0
    %1860 = vmatpush1.msra.mxu0 %v1739
    %1861 = vmatprep.subr.mxu0 0.0
    %1862 = vmatpush1.msra.mxu0 0.0
    %1863 = vmatprep.subr.mxu0 0.0
    %1864 = vmatpush1.msra.mxu0 0.0
    %1865 = vmatprep.subr.mxu0 0.0
    %1866 = vmatpush1.msra.mxu0 0.0
    %1867 = vmatprep.subr.mxu0 0.0
    %1868 = vmatpush1.msra.mxu0 0.0
    %1869 = vmatprep.subr.mxu0 0.0
    %1870 = vmatpush1.msra.mxu0 0.0
    %1871 = vmatprep.subr.mxu0 0.0
    %1872 = vmatpush1.msra.mxu0 0.0
    %1873 = vmatprep.subr.mxu0 0.0
    %1874 = vmatpush1.msra.mxu0 0.0
    %1875 = vmatprep.subr.mxu0 0.0
    %1876 = vmatpush1.msra.mxu0 0.0
    %1877 = vmatprep.subr.mxu0 0.0
    %1878 = vmatpush1.msra.mxu0 0.0
    %1879 = vmatprep.subr.mxu0 0.0
    %1880 = vmatpush1.msra.mxu0 0.0
    %1881 = vmatprep.subr.mxu0 0.0
    %1882 = vmatpush1.msra.mxu0 0.0
    %1883 = vmatprep.subr.mxu0 0.0
    %1884 = vmatpush1.msra.mxu0 0.0
    %1885 = vmatprep.subr.mxu0 0.0
    %1886 = vmatpush1.msra.mxu0 0.0
    %1887 = vmatprep.subr.mxu0 0.0
    %1888 = vmatpush1.msra.mxu0 0.0
    %1889 = vmatprep.subr.mxu0 0.0
    %1890 = vmatpush1.msra.mxu0 0.0
    %1891 = vmatprep.subr.mxu0 0.0
    %1892 = vmatpush1.msra.mxu0 0.0
    %1893 = vmatprep.subr.mxu0 0.0
    %1894 = vmatpush1.msra.mxu0 0.0
    %1895 = vmatprep.subr.mxu0 0.0
    %1896 = vmatpush1.msra.mxu0 0.0
    %1897 = vmatprep.subr.mxu0 0.0
    %1898 = vmatpush1.msra.mxu0 0.0
    %1899 = vmatprep.subr.mxu0 0.0
    %1900 = vmatpush1.msra.mxu0 0.0
    %1901 = vmatprep.subr.mxu0 0.0
    %1902 = vmatpush1.msra.mxu0 0.0
    %1903 = vmatprep.subr.mxu0 0.0
    %1904 = vmatpush1.msra.mxu0 0.0
    %1905 = vmatprep.subr.mxu0 0.0
    %1906 = vmatpush1.msra.mxu0 0.0
    %1907 = vmatprep.subr.mxu0 0.0
    %1908 = vmatpush1.msra.mxu0 0.0
    %1909 = vmatprep.subr.mxu0 0.0
    %1910 = vmatpush1.msra.mxu0 0.0
    %1911 = vmatprep.subr.mxu0 0.0
    %1912 = vmatpush1.msra.mxu0 0.0
    %1913 = vmatprep.subr.mxu0 0.0
    %1914 = vmatpush1.msra.mxu0 0.0
    %1915 = vmatprep.subr.mxu0 0.0
    %1916 = vmatpush1.msra.mxu0 0.0
    %1917 = vmatprep.subr.mxu0 0.0
    %1918 = vmatpush1.msra.mxu0 0.0
    %1919 = vmatprep.subr.mxu0 0.0
    %1920 = vmatpush1.msra.mxu0 0.0
    %1921 = vmatprep.mubr.f32.mxu0 0.0
    %1922 = vmatmul.mubr.f32.gmra.mrb[0].mxu0 %v1852
    %v1923 = vpop.f32.mrb[0].mxu0
    %v1924 = vadd.f32 0.0, %v1923
    %v1925 = vpop.f32.mrb[0].mxu0
    %1926 = vmatprep.mubr.f32.mxu0 0.0
    %1927 = vmatmul.mubr.f32.gmra.mrb[0].mxu0 %v1855
    %v1928 = vpop.f32.mrb[0].mxu0
    %v1929 = vadd.f32 0.0, %v1928
    %v1930 = vpop.f32.mrb[0].mxu0
    %1931 = vdwg.mxu0
    %v1932 = vld [vmem:[%s6] sm:$0xff]
    %v1933 = vld [vmem:[%s6 + $0x8] sm:$0xff]
    %1934 = vrot.lane.b32.xlu0 %v1562, 124
    %v1935 = vpop.permute.xlu0 %1934
    %1936 = vrot.lane.b32.xlu0 %v1567, 124
    %v1937 = vpop.permute.xlu0 %1936
    %1938 = vrot.lane.b32.xlu0 %v1648, 124
    %v1939 = vpop.permute.xlu0 %1938
    %1940 = vrot.lane.b32.xlu0 %v1653, 124
    %v1941 = vpop.permute.xlu0 %1940
    %v1942 = vsel %vm317, %v1935, 0
    %v1944 = vsel %vm317, %v1937, 0
    %v1946 = vsel %vm317, %v1939, 0
    %v1948 = vsel %vm317, %v1941, 0
    %1950 = vmatprep.subr.mxu0 0.0
    %1951 = vmatpush1.xpose.msra.mxu0 %v1946
    %1952 = vmatprep.subr.mxu0 0.0
    %1953 = vmatpush1.xpose.msra.mxu0 %v1948
    %1954 = vmatprep.subr.mxu0 0.0
    %1955 = vmatpush1.xpose.msra.mxu0 0.0
    %1956 = vmatprep.subr.mxu0 0.0
    %1957 = vmatpush1.xpose.msra.mxu0 0.0
    %1958 = vmatprep.subr.mxu0 0.0
    %1959 = vmatpush1.xpose.msra.mxu0 0.0
    %1960 = vmatprep.subr.mxu0 0.0
    %1961 = vmatpush1.xpose.msra.mxu0 0.0
    %1962 = vmatprep.subr.mxu0 0.0
    %1963 = vmatpush1.xpose.msra.mxu0 0.0
    %1964 = vmatprep.subr.mxu0 0.0
    %1965 = vmatpush1.xpose.msra.mxu0 0.0
    %1966 = vmatprep.subr.mxu0 0.0
    %1967 = vmatpush1.xpose.msra.mxu0 0.0
    %1968 = vmatprep.subr.mxu0 0.0
    %1969 = vmatpush1.xpose.msra.mxu0 0.0
    %1970 = vmatprep.subr.mxu0 0.0
    %1971 = vmatpush1.xpose.msra.mxu0 0.0
    %1972 = vmatprep.subr.mxu0 0.0
    %1973 = vmatpush1.xpose.msra.mxu0 0.0
    %1974 = vmatprep.subr.mxu0 0.0
    %1975 = vmatpush1.xpose.msra.mxu0 0.0
    %1976 = vmatprep.subr.mxu0 0.0
    %1977 = vmatpush1.xpose.msra.mxu0 0.0
    %1978 = vmatprep.subr.mxu0 0.0
    %1979 = vmatpush1.xpose.msra.mxu0 0.0
    %1980 = vmatprep.subr.mxu0 0.0
    %1981 = vmatpush1.xpose.msra.mxu0 0.0
    %1982 = vmatprep.subr.mxu0 0.0
    %1983 = vmatpush1.xpose.msra.mxu0 0.0
    %1984 = vmatprep.subr.mxu0 0.0
    %1985 = vmatpush1.xpose.msra.mxu0 0.0
    %1986 = vmatprep.subr.mxu0 0.0
    %1987 = vmatpush1.xpose.msra.mxu0 0.0
    %1988 = vmatprep.subr.mxu0 0.0
    %1989 = vmatpush1.xpose.msra.mxu0 0.0
    %1990 = vmatprep.subr.mxu0 0.0
    %1991 = vmatpush1.xpose.msra.mxu0 0.0
    %1992 = vmatprep.subr.mxu0 0.0
    %1993 = vmatpush1.xpose.msra.mxu0 0.0
    %1994 = vmatprep.subr.mxu0 0.0
    %1995 = vmatpush1.xpose.msra.mxu0 0.0
    %1996 = vmatprep.subr.mxu0 0.0
    %1997 = vmatpush1.xpose.msra.mxu0 0.0
    %1998 = vmatprep.subr.mxu0 0.0
    %1999 = vmatpush1.xpose.msra.mxu0 0.0
    %2000 = vmatprep.subr.mxu0 0.0
    %2001 = vmatpush1.xpose.msra.mxu0 0.0
    %2002 = vmatprep.subr.mxu0 0.0
    %2003 = vmatpush1.xpose.msra.mxu0 0.0
    %2004 = vmatprep.subr.mxu0 0.0
    %2005 = vmatpush1.xpose.msra.mxu0 0.0
    %2006 = vmatprep.subr.mxu0 0.0
    %2007 = vmatpush1.xpose.msra.mxu0 0.0
    %2008 = vmatprep.subr.mxu0 0.0
    %2009 = vmatpush1.xpose.msra.mxu0 0.0
    %2010 = vmatprep.subr.mxu0 0.0
    %2011 = vmatpush1.xpose.msra.mxu0 0.0
    %2012 = vmatprep.subr.mxu0 0.0
    %2013 = vmatpush1.xpose.msra.mxu0 0.0
    %2014 = vmatprep.mubr.f32.mxu0 0.0
    %2015 = vmatmul.mubr.f32.gmra.mrb[0].mxu0 %v1942
    %v2016 = vpop.f32.mrb[0].mxu0
    %v2017 = vadd.f32 0.0, %v2016
    %v2018 = vpop.f32.mrb[0].mxu0
    %2019 = vmatprep.mubr.f32.mxu0 0.0
    %2020 = vmatmul.mubr.f32.gmra.mrb[0].mxu0 %v1944
    %v2021 = vpop.f32.mrb[0].mxu0
    %v2022 = vadd.f32 0.0, %v2021
    %v2023 = vpop.f32.mrb[0].mxu0
    %2024 = vdwg.mxu0
    %v2025 = vsel %vm405, %v2017, -inf
    %2026 = vmax.xlane.f32.xlu0 %v2025
    %v2027 = vpop.xlane.xlu0 %2026
    %v2028 = vsel %vm405, %v2022, -inf
    %2029 = vmax.xlane.f32.xlu0 %v2028
    %v2030 = vpop.xlane.xlu0 %2029
    %v2031 = vsub.f32 %v2017, %v2027
    %v2032 = vsub.f32 %v2022, %v2030
    %v2033 = vmul.f32 %v2031, 1.442695
    %v2034 = vpow.pop %v2033
    %v2035 = vmul.f32 %v2032, 1.442695
    %v2036 = vpow.pop %v2035
    %v2037 = vsel %vm405, %v2034, 0.0
    %2038 = vadd.xlane.f32.xlu0 %v2037
    %v2039 = vpop.xlane.xlu0 %2038
    %v2040 = vsel %vm405, %v2036, 0.0
    %2041 = vadd.xlane.f32.xlu0 %v2040
    %v2042 = vpop.xlane.xlu0 %2041
    %v2043 = vrcp.pop %v2039
    %v2044 = vrcp.pop %v2042
    %v2045 = vmul.f32 %v2034, %v2043
    %v2046 = vmul.f32 %v2036, %v2044
    %2049 = vrot.lane.b32.xlu0 %v1734, 124
    %v2050 = vpop.permute.xlu0 %2049
    %2051 = vrot.lane.b32.xlu0 %v1739, 124
    %v2052 = vpop.permute.xlu0 %2051
    %v2056 = vsel %vm405, %v2045, 0
    %v2059 = vsel %vm405, %v2046, 0
    %2061 = vmatprep.subr.mxu0 0.0
    %2062 = vmatpush1.msra.mxu0 %v2050
    %2063 = vmatprep.subr.mxu0 0.0
    %2064 = vmatpush1.msra.mxu0 %v2052
    %2065 = vmatprep.subr.mxu0 0.0
    %2066 = vmatpush1.msra.mxu0 0.0
    %2067 = vmatprep.subr.mxu0 0.0
    %2068 = vmatpush1.msra.mxu0 0.0
    %2069 = vmatprep.subr.mxu0 0.0
    %2070 = vmatpush1.msra.mxu0 0.0
    %2071 = vmatprep.subr.mxu0 0.0
    %2072 = vmatpush1.msra.mxu0 0.0
    %2073 = vmatprep.subr.mxu0 0.0
    %2074 = vmatpush1.msra.mxu0 0.0
    %2075 = vmatprep.subr.mxu0 0.0
    %2076 = vmatpush1.msra.mxu0 0.0
    %2077 = vmatprep.subr.mxu0 0.0
    %2078 = vmatpush1.msra.mxu0 0.0
    %2079 = vmatprep.subr.mxu0 0.0
    %2080 = vmatpush1.msra.mxu0 0.0
    %2081 = vmatprep.subr.mxu0 0.0
    %2082 = vmatpush1.msra.mxu0 0.0
    %2083 = vmatprep.subr.mxu0 0.0
    %2084 = vmatpush1.msra.mxu0 0.0
    %2085 = vmatprep.subr.mxu0 0.0
    %2086 = vmatpush1.msra.mxu0 0.0
    %2087 = vmatprep.subr.mxu0 0.0
    %2088 = vmatpush1.msra.mxu0 0.0
    %2089 = vmatprep.subr.mxu0 0.0
    %2090 = vmatpush1.msra.mxu0 0.0
    %2091 = vmatprep.subr.mxu0 0.0
    %2092 = vmatpush1.msra.mxu0 0.0
    %2093 = vmatprep.subr.mxu0 0.0
    %2094 = vmatpush1.msra.mxu0 0.0
    %2095 = vmatprep.subr.mxu0 0.0
    %2096 = vmatpush1.msra.mxu0 0.0
    %2097 = vmatprep.subr.mxu0 0.0
    %2098 = vmatpush1.msra.mxu0 0.0
    %2099 = vmatprep.subr.mxu0 0.0
    %2100 = vmatpush1.msra.mxu0 0.0
    %2101 = vmatprep.subr.mxu0 0.0
    %2102 = vmatpush1.msra.mxu0 0.0
    %2103 = vmatprep.subr.mxu0 0.0
    %2104 = vmatpush1.msra.mxu0 0.0
    %2105 = vmatprep.subr.mxu0 0.0
    %2106 = vmatpush1.msra.mxu0 0.0
    %2107 = vmatprep.subr.mxu0 0.0
    %2108 = vmatpush1.msra.mxu0 0.0
    %2109 = vmatprep.subr.mxu0 0.0
    %2110 = vmatpush1.msra.mxu0 0.0
    %2111 = vmatprep.subr.mxu0 0.0
    %2112 = vmatpush1.msra.mxu0 0.0
    %2113 = vmatprep.subr.mxu0 0.0
    %2114 = vmatpush1.msra.mxu0 0.0
    %2115 = vmatprep.subr.mxu0 0.0
    %2116 = vmatpush1.msra.mxu0 0.0
    %2117 = vmatprep.subr.mxu0 0.0
    %2118 = vmatpush1.msra.mxu0 0.0
    %2119 = vmatprep.subr.mxu0 0.0
    %2120 = vmatpush1.msra.mxu0 0.0
    %2121 = vmatprep.subr.mxu0 0.0
    %2122 = vmatpush1.msra.mxu0 0.0
    %2123 = vmatprep.subr.mxu0 0.0
    %2124 = vmatpush1.msra.mxu0 0.0
    %2125 = vmatprep.mubr.f32.mxu0 0.0
    %2126 = vmatmul.mubr.f32.gmra.mrb[0].mxu0 %v2056
    %v2127 = vpop.f32.mrb[0].mxu0
    %v2128 = vadd.f32 0.0, %v2127
    %v2129 = vpop.f32.mrb[0].mxu0
    %2130 = vmatprep.mubr.f32.mxu0 0.0
    %2131 = vmatmul.mubr.f32.gmra.mrb[0].mxu0 %v2059
    %v2132 = vpop.f32.mrb[0].mxu0
    %v2133 = vadd.f32 0.0, %v2132
    %v2134 = vpop.f32.mrb[0].mxu0
    %2135 = vdwg.mxu0
    %v2136 = vld [vmem:[%s713] sm:$0xff]
    %v2137 = vld [vmem:[%s713 + $0x8] sm:$0xff]
    %v2139 = vsel %vm317, %v2128, 0
    %v2142 = vsel %vm317, %v2133, 0
    %v2145 = vsel %vm317, %v2136, 0
    %v2148 = vsel %vm317, %v2137, 0
    %2150 = vmatprep.subr.mxu0 0.0
    %2151 = vmatpush1.xpose.msra.mxu0 %v2145
    %2152 = vmatprep.subr.mxu0 0.0
    %2153 = vmatpush1.xpose.msra.mxu0 %v2148
    %2154 = vmatprep.subr.mxu0 0.0
    %2155 = vmatpush1.xpose.msra.mxu0 0.0
    %2156 = vmatprep.subr.mxu0 0.0
    %2157 = vmatpush1.xpose.msra.mxu0 0.0
    %2158 = vmatprep.subr.mxu0 0.0
    %2159 = vmatpush1.xpose.msra.mxu0 0.0
    %2160 = vmatprep.subr.mxu0 0.0
    %2161 = vmatpush1.xpose.msra.mxu0 0.0
    %2162 = vmatprep.subr.mxu0 0.0
    %2163 = vmatpush1.xpose.msra.mxu0 0.0
    %2164 = vmatprep.subr.mxu0 0.0
    %2165 = vmatpush1.xpose.msra.mxu0 0.0
    %2166 = vmatprep.subr.mxu0 0.0
    %2167 = vmatpush1.xpose.msra.mxu0 0.0
    %2168 = vmatprep.subr.mxu0 0.0
    %2169 = vmatpush1.xpose.msra.mxu0 0.0
    %2170 = vmatprep.subr.mxu0 0.0
    %2171 = vmatpush1.xpose.msra.mxu0 0.0
    %2172 = vmatprep.subr.mxu0 0.0
    %2173 = vmatpush1.xpose.msra.mxu0 0.0
    %2174 = vmatprep.subr.mxu0 0.0
    %2175 = vmatpush1.xpose.msra.mxu0 0.0
    %2176 = vmatprep.subr.mxu0 0.0
    %2177 = vmatpush1.xpose.msra.mxu0 0.0
    %2178 = vmatprep.subr.mxu0 0.0
    %2179 = vmatpush1.xpose.msra.mxu0 0.0
    %2180 = vmatprep.subr.mxu0 0.0
    %2181 = vmatpush1.xpose.msra.mxu0 0.0
    %2182 = vmatprep.subr.mxu0 0.0
    %2183 = vmatpush1.xpose.msra.mxu0 0.0
    %2184 = vmatprep.subr.mxu0 0.0
    %2185 = vmatpush1.xpose.msra.mxu0 0.0
    %2186 = vmatprep.subr.mxu0 0.0
    %2187 = vmatpush1.xpose.msra.mxu0 0.0
    %2188 = vmatprep.subr.mxu0 0.0
    %2189 = vmatpush1.xpose.msra.mxu0 0.0
    %2190 = vmatprep.subr.mxu0 0.0
    %2191 = vmatpush1.xpose.msra.mxu0 0.0
    %2192 = vmatprep.subr.mxu0 0.0
    %2193 = vmatpush1.xpose.msra.mxu0 0.0
    %2194 = vmatprep.subr.mxu0 0.0
    %2195 = vmatpush1.xpose.msra.mxu0 0.0
    %2196 = vmatprep.subr.mxu0 0.0
    %2197 = vmatpush1.xpose.msra.mxu0 0.0
    %2198 = vmatprep.subr.mxu0 0.0
    %2199 = vmatpush1.xpose.msra.mxu0 0.0
    %2200 = vmatprep.subr.mxu0 0.0
    %2201 = vmatpush1.xpose.msra.mxu0 0.0
    %2202 = vmatprep.subr.mxu0 0.0
    %2203 = vmatpush1.xpose.msra.mxu0 0.0
    %2204 = vmatprep.subr.mxu0 0.0
    %2205 = vmatpush1.xpose.msra.mxu0 0.0
    %2206 = vmatprep.subr.mxu0 0.0
    %2207 = vmatpush1.xpose.msra.mxu0 0.0
    %2208 = vmatprep.subr.mxu0 0.0
    %2209 = vmatpush1.xpose.msra.mxu0 0.0
    %2210 = vmatprep.subr.mxu0 0.0
    %2211 = vmatpush1.xpose.msra.mxu0 0.0
    %2212 = vmatprep.subr.mxu0 0.0
    %2213 = vmatpush1.xpose.msra.mxu0 0.0
    %2214 = vmatprep.mubr.f32.mxu0 0.0
    %2215 = vmatmul.mubr.f32.gmra.mrb[0].mxu0 %v2139
    %v2216 = vpop.f32.mrb[0].mxu0
    %v2217 = vadd.f32 0.0, %v2216
    %v2218 = vpop.f32.mrb[0].mxu0
    %2219 = vmatprep.mubr.f32.mxu0 0.0
    %2220 = vmatmul.mubr.f32.gmra.mrb[0].mxu0 %v2142
    %v2221 = vpop.f32.mrb[0].mxu0
    %v2222 = vadd.f32 0.0, %v2221
    %v2223 = vpop.f32.mrb[0].mxu0
    %2224 = vdwg.mxu0
    %v2226 = vsel %vm317, %v1924, 0
    %v2229 = vsel %vm317, %v1929, 0
    %v2232 = vsel %vm317, %v1932, 0
    %v2235 = vsel %vm317, %v1933, 0
    %2237 = vmatprep.subr.mxu0 0.0
    %2238 = vmatpush1.xpose.msra.mxu0 %v2232
    %2239 = vmatprep.subr.mxu0 0.0
    %2240 = vmatpush1.xpose.msra.mxu0 %v2235
    %2241 = vmatprep.subr.mxu0 0.0
    %2242 = vmatpush1.xpose.msra.mxu0 0.0
    %2243 = vmatprep.subr.mxu0 0.0
    %2244 = vmatpush1.xpose.msra.mxu0 0.0
    %2245 = vmatprep.subr.mxu0 0.0
    %2246 = vmatpush1.xpose.msra.mxu0 0.0
    %2247 = vmatprep.subr.mxu0 0.0
    %2248 = vmatpush1.xpose.msra.mxu0 0.0
    %2249 = vmatprep.subr.mxu0 0.0
    %2250 = vmatpush1.xpose.msra.mxu0 0.0
    %2251 = vmatprep.subr.mxu0 0.0
    %2252 = vmatpush1.xpose.msra.mxu0 0.0
    %2253 = vmatprep.subr.mxu0 0.0
    %2254 = vmatpush1.xpose.msra.mxu0 0.0
    %2255 = vmatprep.subr.mxu0 0.0
    %2256 = vmatpush1.xpose.msra.mxu0 0.0
    %2257 = vmatprep.subr.mxu0 0.0
    %2258 = vmatpush1.xpose.msra.mxu0 0.0
    %2259 = vmatprep.subr.mxu0 0.0
    %2260 = vmatpush1.xpose.msra.mxu0 0.0
    %2261 = vmatprep.subr.mxu0 0.0
    %2262 = vmatpush1.xpose.msra.mxu0 0.0
    %2263 = vmatprep.subr.mxu0 0.0
    %2264 = vmatpush1.xpose.msra.mxu0 0.0
    %2265 = vmatprep.subr.mxu0 0.0
    %2266 = vmatpush1.xpose.msra.mxu0 0.0
    %2267 = vmatprep.subr.mxu0 0.0
    %2268 = vmatpush1.xpose.msra.mxu0 0.0
    %2269 = vmatprep.subr.mxu0 0.0
    %2270 = vmatpush1.xpose.msra.mxu0 0.0
    %2271 = vmatprep.subr.mxu0 0.0
    %2272 = vmatpush1.xpose.msra.mxu0 0.0
    %2273 = vmatprep.subr.mxu0 0.0
    %2274 = vmatpush1.xpose.msra.mxu0 0.0
    %2275 = vmatprep.subr.mxu0 0.0
    %2276 = vmatpush1.xpose.msra.mxu0 0.0
    %2277 = vmatprep.subr.mxu0 0.0
    %2278 = vmatpush1.xpose.msra.mxu0 0.0
    %2279 = vmatprep.subr.mxu0 0.0
    %2280 = vmatpush1.xpose.msra.mxu0 0.0
    %2281 = vmatprep.subr.mxu0 0.0
    %2282 = vmatpush1.xpose.msra.mxu0 0.0
    %2283 = vmatprep.subr.mxu0 0.0
    %2284 = vmatpush1.xpose.msra.mxu0 0.0
    %2285 = vmatprep.subr.mxu0 0.0
    %2286 = vmatpush1.xpose.msra.mxu0 0.0
    %2287 = vmatprep.subr.mxu0 0.0
    %2288 = vmatpush1.xpose.msra.mxu0 0.0
    %2289 = vmatprep.subr.mxu0 0.0
    %2290 = vmatpush1.xpose.msra.mxu0 0.0
    %2291 = vmatprep.subr.mxu0 0.0
    %2292 = vmatpush1.xpose.msra.mxu0 0.0
    %2293 = vmatprep.subr.mxu0 0.0
    %2294 = vmatpush1.xpose.msra.mxu0 0.0
    %2295 = vmatprep.subr.mxu0 0.0
    %2296 = vmatpush1.xpose.msra.mxu0 0.0
    %2297 = vmatprep.subr.mxu0 0.0
    %2298 = vmatpush1.xpose.msra.mxu0 0.0
    %2299 = vmatprep.subr.mxu0 0.0
    %2300 = vmatpush1.xpose.msra.mxu0 0.0
    %2301 = vmatprep.mubr.f32.mxu0 0.0
    %2302 = vmatmul.mubr.f32.gmra.mrb[0].mxu0 %v2226
    %v2303 = vpop.f32.mrb[0].mxu0
    %v2304 = vadd.f32 %v2217, %v2303
    %v2305 = vpop.f32.mrb[0].mxu0
    %2306 = vmatprep.mubr.f32.mxu0 0.0
    %2307 = vmatmul.mubr.f32.gmra.mrb[0].mxu0 %v2229
    %v2308 = vpop.f32.mrb[0].mxu0
    %v2309 = vadd.f32 %v2222, %v2308
    %v2310 = vpop.f32.mrb[0].mxu0
    %2311 = vdwg.mxu0
    %2312 = vrot.lane.b32.xlu0 %v1562, 120
    %v2313 = vpop.permute.xlu0 %2312
    %2314 = vrot.lane.b32.xlu0 %v1567, 120
    %v2315 = vpop.permute.xlu0 %2314
    %2316 = vrot.lane.b32.xlu0 %v1648, 120
    %v2317 = vpop.permute.xlu0 %2316
    %2318 = vrot.lane.b32.xlu0 %v1653, 120
    %v2319 = vpop.permute.xlu0 %2318
    %v2320 = vsel %vm317, %v2313, 0
    %v2322 = vsel %vm317, %v2315, 0
    %v2324 = vsel %vm317, %v2317, 0
    %v2326 = vsel %vm317, %v2319, 0
    %2328 = vmatprep.subr.mxu0 0.0
    %2329 = vmatpush1.xpose.msra.mxu0 %v2324
    %2330 = vmatprep.subr.mxu0 0.0
    %2331 = vmatpush1.xpose.msra.mxu0 %v2326
    %2332 = vmatprep.subr.mxu0 0.0
    %2333 = vmatpush1.xpose.msra.mxu0 0.0
    %2334 = vmatprep.subr.mxu0 0.0
    %2335 = vmatpush1.xpose.msra.mxu0 0.0
    %2336 = vmatprep.subr.mxu0 0.0
    %2337 = vmatpush1.xpose.msra.mxu0 0.0
    %2338 = vmatprep.subr.mxu0 0.0
    %2339 = vmatpush1.xpose.msra.mxu0 0.0
    %2340 = vmatprep.subr.mxu0 0.0
    %2341 = vmatpush1.xpose.msra.mxu0 0.0
    %2342 = vmatprep.subr.mxu0 0.0
    %2343 = vmatpush1.xpose.msra.mxu0 0.0
    %2344 = vmatprep.subr.mxu0 0.0
    %2345 = vmatpush1.xpose.msra.mxu0 0.0
    %2346 = vmatprep.subr.mxu0 0.0
    %2347 = vmatpush1.xpose.msra.mxu0 0.0
    %2348 = vmatprep.subr.mxu0 0.0
    %2349 = vmatpush1.xpose.msra.mxu0 0.0
    %2350 = vmatprep.subr.mxu0 0.0
    %2351 = vmatpush1.xpose.msra.mxu0 0.0
    %2352 = vmatprep.subr.mxu0 0.0
    %2353 = vmatpush1.xpose.msra.mxu0 0.0
    %2354 = vmatprep.subr.mxu0 0.0
    %2355 = vmatpush1.xpose.msra.mxu0 0.0
    %2356 = vmatprep.subr.mxu0 0.0
    %2357 = vmatpush1.xpose.msra.mxu0 0.0
    %2358 = vmatprep.subr.mxu0 0.0
    %2359 = vmatpush1.xpose.msra.mxu0 0.0
    %2360 = vmatprep.subr.mxu0 0.0
    %2361 = vmatpush1.xpose.msra.mxu0 0.0
    %2362 = vmatprep.subr.mxu0 0.0
    %2363 = vmatpush1.xpose.msra.mxu0 0.0
    %2364 = vmatprep.subr.mxu0 0.0
    %2365 = vmatpush1.xpose.msra.mxu0 0.0
    %2366 = vmatprep.subr.mxu0 0.0
    %2367 = vmatpush1.xpose.msra.mxu0 0.0
    %2368 = vmatprep.subr.mxu0 0.0
    %2369 = vmatpush1.xpose.msra.mxu0 0.0
    %2370 = vmatprep.subr.mxu0 0.0
    %2371 = vmatpush1.xpose.msra.mxu0 0.0
    %2372 = vmatprep.subr.mxu0 0.0
    %2373 = vmatpush1.xpose.msra.mxu0 0.0
    %2374 = vmatprep.subr.mxu0 0.0
    %2375 = vmatpush1.xpose.msra.mxu0 0.0
    %2376 = vmatprep.subr.mxu0 0.0
    %2377 = vmatpush1.xpose.msra.mxu0 0.0
    %2378 = vmatprep.subr.mxu0 0.0
    %2379 = vmatpush1.xpose.msra.mxu0 0.0
    %2380 = vmatprep.subr.mxu0 0.0
    %2381 = vmatpush1.xpose.msra.mxu0 0.0
    %2382 = vmatprep.subr.mxu0 0.0
    %2383 = vmatpush1.xpose.msra.mxu0 0.0
    %2384 = vmatprep.subr.mxu0 0.0
    %2385 = vmatpush1.xpose.msra.mxu0 0.0
    %2386 = vmatprep.subr.mxu0 0.0
    %2387 = vmatpush1.xpose.msra.mxu0 0.0
    %2388 = vmatprep.subr.mxu0 0.0
    %2389 = vmatpush1.xpose.msra.mxu0 0.0
    %2390 = vmatprep.subr.mxu0 0.0
    %2391 = vmatpush1.xpose.msra.mxu0 0.0
    %2392 = vmatprep.mubr.f32.mxu0 0.0
    %2393 = vmatmul.mubr.f32.gmra.mrb[0].mxu0 %v2320
    %v2394 = vpop.f32.mrb[0].mxu0
    %v2395 = vadd.f32 0.0, %v2394
    %v2396 = vpop.f32.mrb[0].mxu0
    %2397 = vmatprep.mubr.f32.mxu0 0.0
    %2398 = vmatmul.mubr.f32.gmra.mrb[0].mxu0 %v2322
    %v2399 = vpop.f32.mrb[0].mxu0
    %v2400 = vadd.f32 0.0, %v2399
    %v2401 = vpop.f32.mrb[0].mxu0
    %2402 = vdwg.mxu0
    %v2403 = vsel %vm405, %v2395, -inf
    %2404 = vmax.xlane.f32.xlu0 %v2403
    %v2405 = vpop.xlane.xlu0 %2404
    %v2406 = vsel %vm405, %v2400, -inf
    %2407 = vmax.xlane.f32.xlu0 %v2406
    %v2408 = vpop.xlane.xlu0 %2407
    %v2409 = vsub.f32 %v2395, %v2405
    %v2410 = vsub.f32 %v2400, %v2408
    %v2411 = vmul.f32 %v2409, 1.442695
    %v2412 = vpow.pop %v2411
    %v2413 = vmul.f32 %v2410, 1.442695
    %v2414 = vpow.pop %v2413
    %v2415 = vsel %vm405, %v2412, 0.0
    %2416 = vadd.xlane.f32.xlu0 %v2415
    %v2417 = vpop.xlane.xlu0 %2416
    %v2418 = vsel %vm405, %v2414, 0.0
    %2419 = vadd.xlane.f32.xlu0 %v2418
    %v2420 = vpop.xlane.xlu0 %2419
    %v2421 = vrcp.pop %v2417
    %v2422 = vrcp.pop %v2420
    %v2423 = vmul.f32 %v2412, %v2421
    %v2424 = vmul.f32 %v2414, %v2422
    %2425 = vrot.lane.b32.xlu0 %v1734, 120
    %v2426 = vpop.permute.xlu0 %2425
    %2427 = vrot.lane.b32.xlu0 %v1739, 120
    %v2428 = vpop.permute.xlu0 %2427
    %v2432 = vsel %vm405, %v2423, 0
    %v2435 = vsel %vm405, %v2424, 0
    %2437 = vmatprep.subr.mxu0 0.0
    %2438 = vmatpush1.msra.mxu0 %v2426
    %2439 = vmatprep.subr.mxu0 0.0
    %2440 = vmatpush1.msra.mxu0 %v2428
    %2441 = vmatprep.subr.mxu0 0.0
    %2442 = vmatpush1.msra.mxu0 0.0
    %2443 = vmatprep.subr.mxu0 0.0
    %2444 = vmatpush1.msra.mxu0 0.0
    %2445 = vmatprep.subr.mxu0 0.0
    %2446 = vmatpush1.msra.mxu0 0.0
    %2447 = vmatprep.subr.mxu0 0.0
    %2448 = vmatpush1.msra.mxu0 0.0
    %2449 = vmatprep.subr.mxu0 0.0
    %2450 = vmatpush1.msra.mxu0 0.0
    %2451 = vmatprep.subr.mxu0 0.0
    %2452 = vmatpush1.msra.mxu0 0.0
    %2453 = vmatprep.subr.mxu0 0.0
    %2454 = vmatpush1.msra.mxu0 0.0
    %2455 = vmatprep.subr.mxu0 0.0
    %2456 = vmatpush1.msra.mxu0 0.0
    %2457 = vmatprep.subr.mxu0 0.0
    %2458 = vmatpush1.msra.mxu0 0.0
    %2459 = vmatprep.subr.mxu0 0.0
    %2460 = vmatpush1.msra.mxu0 0.0
    %2461 = vmatprep.subr.mxu0 0.0
    %2462 = vmatpush1.msra.mxu0 0.0
    %2463 = vmatprep.subr.mxu0 0.0
    %2464 = vmatpush1.msra.mxu0 0.0
    %2465 = vmatprep.subr.mxu0 0.0
    %2466 = vmatpush1.msra.mxu0 0.0
    %2467 = vmatprep.subr.mxu0 0.0
    %2468 = vmatpush1.msra.mxu0 0.0
    %2469 = vmatprep.subr.mxu0 0.0
    %2470 = vmatpush1.msra.mxu0 0.0
    %2471 = vmatprep.subr.mxu0 0.0
    %2472 = vmatpush1.msra.mxu0 0.0
    %2473 = vmatprep.subr.mxu0 0.0
    %2474 = vmatpush1.msra.mxu0 0.0
    %2475 = vmatprep.subr.mxu0 0.0
    %2476 = vmatpush1.msra.mxu0 0.0
    %2477 = vmatprep.subr.mxu0 0.0
    %2478 = vmatpush1.msra.mxu0 0.0
    %2479 = vmatprep.subr.mxu0 0.0
    %2480 = vmatpush1.msra.mxu0 0.0
    %2481 = vmatprep.subr.mxu0 0.0
    %2482 = vmatpush1.msra.mxu0 0.0
    %2483 = vmatprep.subr.mxu0 0.0
    %2484 = vmatpush1.msra.mxu0 0.0
    %2485 = vmatprep.subr.mxu0 0.0
    %2486 = vmatpush1.msra.mxu0 0.0
    %2487 = vmatprep.subr.mxu0 0.0
    %2488 = vmatpush1.msra.mxu0 0.0
    %2489 = vmatprep.subr.mxu0 0.0
    %2490 = vmatpush1.msra.mxu0 0.0
    %2491 = vmatprep.subr.mxu0 0.0
    %2492 = vmatpush1.msra.mxu0 0.0
    %2493 = vmatprep.subr.mxu0 0.0
    %2494 = vmatpush1.msra.mxu0 0.0
    %2495 = vmatprep.subr.mxu0 0.0
    %2496 = vmatpush1.msra.mxu0 0.0
    %2497 = vmatprep.subr.mxu0 0.0
    %2498 = vmatpush1.msra.mxu0 0.0
    %2499 = vmatprep.subr.mxu0 0.0
    %2500 = vmatpush1.msra.mxu0 0.0
    %2501 = vmatprep.mubr.f32.mxu0 0.0
    %2502 = vmatmul.mubr.f32.gmra.mrb[0].mxu0 %v2432
    %v2503 = vpop.f32.mrb[0].mxu0
    %v2504 = vadd.f32 0.0, %v2503
    %v2505 = vpop.f32.mrb[0].mxu0
    %2506 = vmatprep.mubr.f32.mxu0 0.0
    %2507 = vmatmul.mubr.f32.gmra.mrb[0].mxu0 %v2435
    %v2508 = vpop.f32.mrb[0].mxu0
    %v2509 = vadd.f32 0.0, %v2508
    %v2510 = vpop.f32.mrb[0].mxu0
    %2511 = vdwg.mxu0
    %v2512 = vld [vmem:[%s1090] sm:$0xff]
    %v2513 = vld [vmem:[%s1090 + $0x8] sm:$0xff]
    %v2515 = vsel %vm317, %v2504, 0
    %v2518 = vsel %vm317, %v2509, 0
    %v2521 = vsel %vm317, %v2512, 0
    %v2524 = vsel %vm317, %v2513, 0
    %2526 = vmatprep.subr.mxu0 0.0
    %2527 = vmatpush1.xpose.msra.mxu0 %v2521
    %2528 = vmatprep.subr.mxu0 0.0
    %2529 = vmatpush1.xpose.msra.mxu0 %v2524
    %2530 = vmatprep.subr.mxu0 0.0
    %2531 = vmatpush1.xpose.msra.mxu0 0.0
    %2532 = vmatprep.subr.mxu0 0.0
    %2533 = vmatpush1.xpose.msra.mxu0 0.0
    %2534 = vmatprep.subr.mxu0 0.0
    %2535 = vmatpush1.xpose.msra.mxu0 0.0
    %2536 = vmatprep.subr.mxu0 0.0
    %2537 = vmatpush1.xpose.msra.mxu0 0.0
    %2538 = vmatprep.subr.mxu0 0.0
    %2539 = vmatpush1.xpose.msra.mxu0 0.0
    %2540 = vmatprep.subr.mxu0 0.0
    %2541 = vmatpush1.xpose.msra.mxu0 0.0
    %2542 = vmatprep.subr.mxu0 0.0
    %2543 = vmatpush1.xpose.msra.mxu0 0.0
    %2544 = vmatprep.subr.mxu0 0.0
    %2545 = vmatpush1.xpose.msra.mxu0 0.0
    %2546 = vmatprep.subr.mxu0 0.0
    %2547 = vmatpush1.xpose.msra.mxu0 0.0
    %2548 = vmatprep.subr.mxu0 0.0
    %2549 = vmatpush1.xpose.msra.mxu0 0.0
    %2550 = vmatprep.subr.mxu0 0.0
    %2551 = vmatpush1.xpose.msra.mxu0 0.0
    %2552 = vmatprep.subr.mxu0 0.0
    %2553 = vmatpush1.xpose.msra.mxu0 0.0
    %2554 = vmatprep.subr.mxu0 0.0
    %2555 = vmatpush1.xpose.msra.mxu0 0.0
    %2556 = vmatprep.subr.mxu0 0.0
    %2557 = vmatpush1.xpose.msra.mxu0 0.0
    %2558 = vmatprep.subr.mxu0 0.0
    %2559 = vmatpush1.xpose.msra.mxu0 0.0
    %2560 = vmatprep.subr.mxu0 0.0
    %2561 = vmatpush1.xpose.msra.mxu0 0.0
    %2562 = vmatprep.subr.mxu0 0.0
    %2563 = vmatpush1.xpose.msra.mxu0 0.0
    %2564 = vmatprep.subr.mxu0 0.0
    %2565 = vmatpush1.xpose.msra.mxu0 0.0
    %2566 = vmatprep.subr.mxu0 0.0
    %2567 = vmatpush1.xpose.msra.mxu0 0.0
    %2568 = vmatprep.subr.mxu0 0.0
    %2569 = vmatpush1.xpose.msra.mxu0 0.0
    %2570 = vmatprep.subr.mxu0 0.0
    %2571 = vmatpush1.xpose.msra.mxu0 0.0
    %2572 = vmatprep.subr.mxu0 0.0
    %2573 = vmatpush1.xpose.msra.mxu0 0.0
    %2574 = vmatprep.subr.mxu0 0.0
    %2575 = vmatpush1.xpose.msra.mxu0 0.0
    %2576 = vmatprep.subr.mxu0 0.0
    %2577 = vmatpush1.xpose.msra.mxu0 0.0
    %2578 = vmatprep.subr.mxu0 0.0
    %2579 = vmatpush1.xpose.msra.mxu0 0.0
    %2580 = vmatprep.subr.mxu0 0.0
    %2581 = vmatpush1.xpose.msra.mxu0 0.0
    %2582 = vmatprep.subr.mxu0 0.0
    %2583 = vmatpush1.xpose.msra.mxu0 0.0
    %2584 = vmatprep.subr.mxu0 0.0
    %2585 = vmatpush1.xpose.msra.mxu0 0.0
    %2586 = vmatprep.subr.mxu0 0.0
    %2587 = vmatpush1.xpose.msra.mxu0 0.0
    %2588 = vmatprep.subr.mxu0 0.0
    %2589 = vmatpush1.xpose.msra.mxu0 0.0
    %2590 = vmatprep.mubr.f32.mxu0 0.0
    %2591 = vmatmul.mubr.f32.gmra.mrb[0].mxu0 %v2515
    %v2592 = vpop.f32.mrb[0].mxu0
    %v2593 = vadd.f32 0.0, %v2592
    %v2594 = vpop.f32.mrb[0].mxu0
    %2595 = vmatprep.mubr.f32.mxu0 0.0
    %2596 = vmatmul.mubr.f32.gmra.mrb[0].mxu0 %v2518
    %v2597 = vpop.f32.mrb[0].mxu0
    %v2598 = vadd.f32 0.0, %v2597
    %v2599 = vpop.f32.mrb[0].mxu0
    %2600 = vdwg.mxu0
    %v2601 = vadd.f32 %v2304, %v2593
    %v2602 = vadd.f32 %v2309, %v2598
    %2603 = vrot.lane.b32.xlu0 %v1562, 116
    %v2604 = vpop.permute.xlu0 %2603
    %2605 = vrot.lane.b32.xlu0 %v1567, 116
    %v2606 = vpop.permute.xlu0 %2605
    %2607 = vrot.lane.b32.xlu0 %v1648, 116
    %v2608 = vpop.permute.xlu0 %2607
    %2609 = vrot.lane.b32.xlu0 %v1653, 116
    %v2610 = vpop.permute.xlu0 %2609
    %v2611 = vsel %vm317, %v2604, 0
    %v2613 = vsel %vm317, %v2606, 0
    %v2615 = vsel %vm317, %v2608, 0
    %v2617 = vsel %vm317, %v2610, 0
    %2619 = vmatprep.subr.mxu0 0.0
    %2620 = vmatpush1.xpose.msra.mxu0 %v2615
    %2621 = vmatprep.subr.mxu0 0.0
    %2622 = vmatpush1.xpose.msra.mxu0 %v2617
    %2623 = vmatprep.subr.mxu0 0.0
    %2624 = vmatpush1.xpose.msra.mxu0 0.0
    %2625 = vmatprep.subr.mxu0 0.0
    %2626 = vmatpush1.xpose.msra.mxu0 0.0
    %2627 = vmatprep.subr.mxu0 0.0
    %2628 = vmatpush1.xpose.msra.mxu0 0.0
    %2629 = vmatprep.subr.mxu0 0.0
    %2630 = vmatpush1.xpose.msra.mxu0 0.0
    %2631 = vmatprep.subr.mxu0 0.0
    %2632 = vmatpush1.xpose.msra.mxu0 0.0
    %2633 = vmatprep.subr.mxu0 0.0
    %2634 = vmatpush1.xpose.msra.mxu0 0.0
    %2635 = vmatprep.subr.mxu0 0.0
    %2636 = vmatpush1.xpose.msra.mxu0 0.0
    %2637 = vmatprep.subr.mxu0 0.0
    %2638 = vmatpush1.xpose.msra.mxu0 0.0
    %2639 = vmatprep.subr.mxu0 0.0
    %2640 = vmatpush1.xpose.msra.mxu0 0.0
    %2641 = vmatprep.subr.mxu0 0.0
    %2642 = vmatpush1.xpose.msra.mxu0 0.0
    %2643 = vmatprep.subr.mxu0 0.0
    %2644 = vmatpush1.xpose.msra.mxu0 0.0
    %2645 = vmatprep.subr.mxu0 0.0
    %2646 = vmatpush1.xpose.msra.mxu0 0.0
    %2647 = vmatprep.subr.mxu0 0.0
    %2648 = vmatpush1.xpose.msra.mxu0 0.0
    %2649 = vmatprep.subr.mxu0 0.0
    %2650 = vmatpush1.xpose.msra.mxu0 0.0
    %2651 = vmatprep.subr.mxu0 0.0
    %2652 = vmatpush1.xpose.msra.mxu0 0.0
    %2653 = vmatprep.subr.mxu0 0.0
    %2654 = vmatpush1.xpose.msra.mxu0 0.0
    %2655 = vmatprep.subr.mxu0 0.0
    %2656 = vmatpush1.xpose.msra.mxu0 0.0
    %2657 = vmatprep.subr.mxu0 0.0
    %2658 = vmatpush1.xpose.msra.mxu0 0.0
    %2659 = vmatprep.subr.mxu0 0.0
    %2660 = vmatpush1.xpose.msra.mxu0 0.0
    %2661 = vmatprep.subr.mxu0 0.0
    %2662 = vmatpush1.xpose.msra.mxu0 0.0
    %2663 = vmatprep.subr.mxu0 0.0
    %2664 = vmatpush1.xpose.msra.mxu0 0.0
    %2665 = vmatprep.subr.mxu0 0.0
    %2666 = vmatpush1.xpose.msra.mxu0 0.0
    %2667 = vmatprep.subr.mxu0 0.0
    %2668 = vmatpush1.xpose.msra.mxu0 0.0
    %2669 = vmatprep.subr.mxu0 0.0
    %2670 = vmatpush1.xpose.msra.mxu0 0.0
    %2671 = vmatprep.subr.mxu0 0.0
    %2672 = vmatpush1.xpose.msra.mxu0 0.0
    %2673 = vmatprep.subr.mxu0 0.0
    %2674 = vmatpush1.xpose.msra.mxu0 0.0
    %2675 = vmatprep.subr.mxu0 0.0
    %2676 = vmatpush1.xpose.msra.mxu0 0.0
    %2677 = vmatprep.subr.mxu0 0.0
    %2678 = vmatpush1.xpose.msra.mxu0 0.0
    %2679 = vmatprep.subr.mxu0 0.0
    %2680 = vmatpush1.xpose.msra.mxu0 0.0
    %2681 = vmatprep.subr.mxu0 0.0
    %2682 = vmatpush1.xpose.msra.mxu0 0.0
    %2683 = vmatprep.mubr.f32.mxu0 0.0
    %2684 = vmatmul.mubr.f32.gmra.mrb[0].mxu0 %v2611
    %v2685 = vpop.f32.mrb[0].mxu0
    %v2686 = vadd.f32 0.0, %v2685
    %v2687 = vpop.f32.mrb[0].mxu0
    %2688 = vmatprep.mubr.f32.mxu0 0.0
    %2689 = vmatmul.mubr.f32.gmra.mrb[0].mxu0 %v2613
    %v2690 = vpop.f32.mrb[0].mxu0
    %v2691 = vadd.f32 0.0, %v2690
    %v2692 = vpop.f32.mrb[0].mxu0
    %2693 = vdwg.mxu0
    %v2694 = vsel %vm405, %v2686, -inf
    %2695 = vmax.xlane.f32.xlu0 %v2694
    %v2696 = vpop.xlane.xlu0 %2695
    %v2697 = vsel %vm405, %v2691, -inf
    %2698 = vmax.xlane.f32.xlu0 %v2697
    %v2699 = vpop.xlane.xlu0 %2698
    %v2700 = vsub.f32 %v2686, %v2696
    %v2701 = vsub.f32 %v2691, %v2699
    %v2702 = vmul.f32 %v2700, 1.442695
    %v2703 = vpow.pop %v2702
    %v2704 = vmul.f32 %v2701, 1.442695
    %v2705 = vpow.pop %v2704
    %v2706 = vsel %vm405, %v2703, 0.0
    %2707 = vadd.xlane.f32.xlu0 %v2706
    %v2708 = vpop.xlane.xlu0 %2707
    %v2709 = vsel %vm405, %v2705, 0.0
    %2710 = vadd.xlane.f32.xlu0 %v2709
    %v2711 = vpop.xlane.xlu0 %2710
    %v2712 = vrcp.pop %v2708
    %v2713 = vrcp.pop %v2711
    %v2714 = vmul.f32 %v2703, %v2712
    %v2715 = vmul.f32 %v2705, %v2713
    %2716 = vrot.lane.b32.xlu0 %v1734, 116
    %v2717 = vpop.permute.xlu0 %2716
    %2718 = vrot.lane.b32.xlu0 %v1739, 116
    %v2719 = vpop.permute.xlu0 %2718
    %v2723 = vsel %vm405, %v2714, 0
    %v2726 = vsel %vm405, %v2715, 0
    %2728 = vmatprep.subr.mxu0 0.0
    %2729 = vmatpush1.msra.mxu0 %v2717
    %2730 = vmatprep.subr.mxu0 0.0
    %2731 = vmatpush1.msra.mxu0 %v2719
    %2732 = vmatprep.subr.mxu0 0.0
    %2733 = vmatpush1.msra.mxu0 0.0
    %2734 = vmatprep.subr.mxu0 0.0
    %2735 = vmatpush1.msra.mxu0 0.0
    %2736 = vmatprep.subr.mxu0 0.0
    %2737 = vmatpush1.msra.mxu0 0.0
    %2738 = vmatprep.subr.mxu0 0.0
    %2739 = vmatpush1.msra.mxu0 0.0
    %2740 = vmatprep.subr.mxu0 0.0
    %2741 = vmatpush1.msra.mxu0 0.0
    %2742 = vmatprep.subr.mxu0 0.0
    %2743 = vmatpush1.msra.mxu0 0.0
    %2744 = vmatprep.subr.mxu0 0.0
    %2745 = vmatpush1.msra.mxu0 0.0
    %2746 = vmatprep.subr.mxu0 0.0
    %2747 = vmatpush1.msra.mxu0 0.0
    %2748 = vmatprep.subr.mxu0 0.0
    %2749 = vmatpush1.msra.mxu0 0.0
    %2750 = vmatprep.subr.mxu0 0.0
    %2751 = vmatpush1.msra.mxu0 0.0
    %2752 = vmatprep.subr.mxu0 0.0
    %2753 = vmatpush1.msra.mxu0 0.0
    %2754 = vmatprep.subr.mxu0 0.0
    %2755 = vmatpush1.msra.mxu0 0.0
    %2756 = vmatprep.subr.mxu0 0.0
    %2757 = vmatpush1.msra.mxu0 0.0
    %2758 = vmatprep.subr.mxu0 0.0
    %2759 = vmatpush1.msra.mxu0 0.0
    %2760 = vmatprep.subr.mxu0 0.0
    %2761 = vmatpush1.msra.mxu0 0.0
    %2762 = vmatprep.subr.mxu0 0.0
    %2763 = vmatpush1.msra.mxu0 0.0
    %2764 = vmatprep.subr.mxu0 0.0
    %2765 = vmatpush1.msra.mxu0 0.0
    %2766 = vmatprep.subr.mxu0 0.0
    %2767 = vmatpush1.msra.mxu0 0.0
    %2768 = vmatprep.subr.mxu0 0.0
    %2769 = vmatpush1.msra.mxu0 0.0
    %2770 = vmatprep.subr.mxu0 0.0
    %2771 = vmatpush1.msra.mxu0 0.0
    %2772 = vmatprep.subr.mxu0 0.0
    %2773 = vmatpush1.msra.mxu0 0.0
    %2774 = vmatprep.subr.mxu0 0.0
    %2775 = vmatpush1.msra.mxu0 0.0
    %2776 = vmatprep.subr.mxu0 0.0
    %2777 = vmatpush1.msra.mxu0 0.0
    %2778 = vmatprep.subr.mxu0 0.0
    %2779 = vmatpush1.msra.mxu0 0.0
    %2780 = vmatprep.subr.mxu0 0.0
    %2781 = vmatpush1.msra.mxu0 0.0
    %2782 = vmatprep.subr.mxu0 0.0
    %2783 = vmatpush1.msra.mxu0 0.0
    %2784 = vmatprep.subr.mxu0 0.0
    %2785 = vmatpush1.msra.mxu0 0.0
    %2786 = vmatprep.subr.mxu0 0.0
    %2787 = vmatpush1.msra.mxu0 0.0
    %2788 = vmatprep.subr.mxu0 0.0
    %2789 = vmatpush1.msra.mxu0 0.0
    %2790 = vmatprep.subr.mxu0 0.0
    %2791 = vmatpush1.msra.mxu0 0.0
    %2792 = vmatprep.mubr.f32.mxu0 0.0
    %2793 = vmatmul.mubr.f32.gmra.mrb[0].mxu0 %v2723
    %v2794 = vpop.f32.mrb[0].mxu0
    %v2795 = vadd.f32 0.0, %v2794
    %v2796 = vpop.f32.mrb[0].mxu0
    %2797 = vmatprep.mubr.f32.mxu0 0.0
    %2798 = vmatmul.mubr.f32.gmra.mrb[0].mxu0 %v2726
    %v2799 = vpop.f32.mrb[0].mxu0
    %v2800 = vadd.f32 0.0, %v2799
    %v2801 = vpop.f32.mrb[0].mxu0
    %2802 = vdwg.mxu0
    %v2803 = vld [vmem:[%s1382] sm:$0xff]
    %v2804 = vld [vmem:[%s1382 + $0x8] sm:$0xff]
    %v2806 = vsel %vm317, %v2795, 0
    %v2809 = vsel %vm317, %v2800, 0
    %v2812 = vsel %vm317, %v2803, 0
    %v2815 = vsel %vm317, %v2804, 0
    %2817 = vmatprep.subr.mxu0 0.0
    %2818 = vmatpush1.xpose.msra.mxu0 %v2812
    %2819 = vmatprep.subr.mxu0 0.0
    %2820 = vmatpush1.xpose.msra.mxu0 %v2815
    %2821 = vmatprep.subr.mxu0 0.0
    %2822 = vmatpush1.xpose.msra.mxu0 0.0
    %2823 = vmatprep.subr.mxu0 0.0
    %2824 = vmatpush1.xpose.msra.mxu0 0.0
    %2825 = vmatprep.subr.mxu0 0.0
    %2826 = vmatpush1.xpose.msra.mxu0 0.0
    %2827 = vmatprep.subr.mxu0 0.0
    %2828 = vmatpush1.xpose.msra.mxu0 0.0
    %2829 = vmatprep.subr.mxu0 0.0
    %2830 = vmatpush1.xpose.msra.mxu0 0.0
    %2831 = vmatprep.subr.mxu0 0.0
    %2832 = vmatpush1.xpose.msra.mxu0 0.0
    %2833 = vmatprep.subr.mxu0 0.0
    %2834 = vmatpush1.xpose.msra.mxu0 0.0
    %2835 = vmatprep.subr.mxu0 0.0
    %2836 = vmatpush1.xpose.msra.mxu0 0.0
    %2837 = vmatprep.subr.mxu0 0.0
    %2838 = vmatpush1.xpose.msra.mxu0 0.0
    %2839 = vmatprep.subr.mxu0 0.0
    %2840 = vmatpush1.xpose.msra.mxu0 0.0
    %2841 = vmatprep.subr.mxu0 0.0
    %2842 = vmatpush1.xpose.msra.mxu0 0.0
    %2843 = vmatprep.subr.mxu0 0.0
    %2844 = vmatpush1.xpose.msra.mxu0 0.0
    %2845 = vmatprep.subr.mxu0 0.0
    %2846 = vmatpush1.xpose.msra.mxu0 0.0
    %2847 = vmatprep.subr.mxu0 0.0
    %2848 = vmatpush1.xpose.msra.mxu0 0.0
    %2849 = vmatprep.subr.mxu0 0.0
    %2850 = vmatpush1.xpose.msra.mxu0 0.0
    %2851 = vmatprep.subr.mxu0 0.0
    %2852 = vmatpush1.xpose.msra.mxu0 0.0
    %2853 = vmatprep.subr.mxu0 0.0
    %2854 = vmatpush1.xpose.msra.mxu0 0.0
    %2855 = vmatprep.subr.mxu0 0.0
    %2856 = vmatpush1.xpose.msra.mxu0 0.0
    %2857 = vmatprep.subr.mxu0 0.0
    %2858 = vmatpush1.xpose.msra.mxu0 0.0
    %2859 = vmatprep.subr.mxu0 0.0
    %2860 = vmatpush1.xpose.msra.mxu0 0.0
    %2861 = vmatprep.subr.mxu0 0.0
    %2862 = vmatpush1.xpose.msra.mxu0 0.0
    %2863 = vmatprep.subr.mxu0 0.0
    %2864 = vmatpush1.xpose.msra.mxu0 0.0
    %2865 = vmatprep.subr.mxu0 0.0
    %2866 = vmatpush1.xpose.msra.mxu0 0.0
    %2867 = vmatprep.subr.mxu0 0.0
    %2868 = vmatpush1.xpose.msra.mxu0 0.0
    %2869 = vmatprep.subr.mxu0 0.0
    %2870 = vmatpush1.xpose.msra.mxu0 0.0
    %2871 = vmatprep.subr.mxu0 0.0
    %2872 = vmatpush1.xpose.msra.mxu0 0.0
    %2873 = vmatprep.subr.mxu0 0.0
    %2874 = vmatpush1.xpose.msra.mxu0 0.0
    %2875 = vmatprep.subr.mxu0 0.0
    %2876 = vmatpush1.xpose.msra.mxu0 0.0
    %2877 = vmatprep.subr.mxu0 0.0
    %2878 = vmatpush1.xpose.msra.mxu0 0.0
    %2879 = vmatprep.subr.mxu0 0.0
    %2880 = vmatpush1.xpose.msra.mxu0 0.0
    %2881 = vmatprep.mubr.f32.mxu0 0.0
    %2882 = vmatmul.mubr.f32.gmra.mrb[0].mxu0 %v2806
    %v2883 = vpop.f32.mrb[0].mxu0
    %v2884 = vadd.f32 0.0, %v2883
    %v2885 = vpop.f32.mrb[0].mxu0
    %2886 = vmatprep.mubr.f32.mxu0 0.0
    %2887 = vmatmul.mubr.f32.gmra.mrb[0].mxu0 %v2809
    %v2888 = vpop.f32.mrb[0].mxu0
    %v2889 = vadd.f32 0.0, %v2888
    %v2890 = vpop.f32.mrb[0].mxu0
    %2891 = vdwg.mxu0
    %v2892 = vadd.f32 %v2601, %v2884
    %v2893 = vadd.f32 %v2602, %v2889
    %v2894 = vadd.f32 %v2892, %v1478
    %v2895 = vadd.f32 %v2893, %v1478
    %s2896 = scalar_lea.vmem [#allocation2], 16
    %2897 = vst.msk [vmem:[%s2896] sm:$0xff] %vm405, %v2894
    %2898 = vst.msk [vmem:[%s2896 + $0x8] sm:$0xff] %vm405, %v2895
    // Predicated region
    $region34: #{multi_head_attn_forward.1} parent=1 // pred_check
      _
    $region35: #{multi_head_attn_forward.1} parent=1 // pred_check_branch
      %2900 = sbr.rel (0) target = $region37
    $region36: #{multi_head_attn_forward.1} parent=1 // pred_region
      %s2902 = ssub.s32 512, 512
      %2903 = vsyncadd [#allocation3], %s2902
      %s2904 = sshll.u32 [#allocation2], 4
      %s2905 = int_to_ptr.vmem [resolvable:$true] %s2904
      %2910 = dma.vmem_to_hbm [thread:$0]  %s2905, 512, %s8, [#allocation3], 128, 128, 8
    $region37: #{multi_head_attn_forward.1} parent=1 // pred_fallthru
      _
    // Predicated region
    $region38: #{multi_head_attn_forward.1} parent=1 // pred_check
      _
    $region39: #{multi_head_attn_forward.1} parent=1 // pred_check_branch
      %2912 = sbr.rel (0) target = $region41
    $region40: #{multi_head_attn_forward.1} parent=1 // pred_region
      %2913 = dma.done [#allocation3], 512
    $region41: #{multi_head_attn_forward.1} parent=1 // pred_fallthru
      _
    %2914 = vsyncpa [#allocation3], 1

</llo_original>
